<compile_context>
chip_gen: v5e
topology: v5e:2x2
jax: 0.10.0
libtpu: 0.0.40
codegen_flags: <defaults>
</compile_context>

<pallas_src>
import functools

import jax
import jax.numpy as jnp
from jax.experimental import pallas as pl
from jax.experimental.pallas import tpu as pltpu

EPS = 1e-5


def _vmem_limit_bytes():
    """Generation-aware scoped-VMEM cap (v7x: 64 MiB/core, v5e/v6e: 128 MiB)."""
    cap = 128 * 1024 * 1024
    try:
        cap = int(getattr(pltpu.get_tpu_info(), "vmem_capacity_bytes", cap))
    except Exception:
        pass
    return min(64 * 1024 * 1024, (cap * 3) // 4)


_VMEM_LIMIT = _vmem_limit_bytes()


def _compiler_params(n_grid_axes):
    return pltpu.CompilerParams(
        dimension_semantics=("parallel",) * n_grid_axes,
        vmem_limit_bytes=_VMEM_LIMIT,
    )


def _pick_block_h(h, target, row_len=1):
    """Largest divisor of h that is <= target; prefer blocks whose flattened
    row count (bh * row_len) is a multiple of 16 (bf16 sublane packing).
    Never falls back to a non-divisor / whole-tensor block."""
    target = max(1, min(int(target), h))
    divisors = [d for d in range(1, target + 1) if h % d == 0]
    aligned = [d for d in divisors if (d * row_len) % 16 == 0]
    return max(aligned) if aligned else max(divisors)


# --------------------------------------------------------------------------
# Kernel 1: row-tiled matmul + bias (ConvTranspose2d k=2 s=2 hot path)
# --------------------------------------------------------------------------
def _mm_bias_kernel(x_ref, w_ref, b_ref, o_ref):
    acc = jnp.dot(x_ref[0], w_ref[...], preferred_element_type=jnp.float32)
    o_ref[0] = (acc + b_ref[...]).astype(o_ref.dtype)


def conv_transpose_2x2_nhwc(x, wt, bt, *, block_h):
    """PyTorch ConvTranspose2d(kernel_size=2, stride=2), NHWC.

    x: (N,H,W,Cin) ; wt: (Cin,Cout,2,2) ; bt: (Cout,) -> (N,2H,2W,Cout) bf16.
    The matmul runs in a row-tiled Pallas kernel; the (w <-> ki) pixel-shuffle
    interleave is pure layout math left to XLA where it fuses into the
    pad/halo-gather feeding conv_block_1.
    """
    n, h, w, cin = x.shape
    cout = wt.shape[1]
    bh = _pick_block_h(h, block_h, row_len=w)
    if (bh * w) % 8 != 0:           # keep non-full row blocks sublane aligned
        bh = h
    nhb = h // bh
    bm = bh * w

    xm = x.reshape(n, h * w, cin).astype(jnp.bfloat16)
    # weight columns ordered (ki, kj, cout)
    wm = jnp.transpose(wt, (0, 2, 3, 1)).reshape(cin, 4 * cout).astype(jnp.bfloat16)
    bv = jnp.tile(bt.astype(jnp.float32), 4).reshape(1, 4 * cout)

    y = pl.pallas_call(
        _mm_bias_kernel,
        out_shape=jax.ShapeDtypeStruct((n, h * w, 4 * cout), jnp.bfloat16),
        grid=(n, nhb),
        in_specs=[
            pl.BlockSpec((1, bm, cin), lambda ni, hi: (ni, hi, 0)),
            pl.BlockSpec((cin, 4 * cout), lambda ni, hi: (0, 0)),
            pl.BlockSpec((1, 4 * cout), lambda ni, hi: (0, 0)),
        ],
        out_specs=pl.BlockSpec((1, bm, 4 * cout), lambda ni, hi: (ni, hi, 0)),
        compiler_params=_compiler_params(2),
    )(xm, wm, bv)

    # pixel shuffle (n,h,w,ki,kj,c) -> (n,2h,2w,c); fuses with downstream pad/gather.
    y = y.reshape(n, h, w, 2, 2, cout).transpose(0, 1, 3, 2, 4, 5)
    return y.reshape(n, 2 * h, 2 * w, cout)


# --------------------------------------------------------------------------
# Kernel 2: Conv3x3(pad=1) over a fused channel-concat via halo row-blocks,
#           9 shifted MXU dots, bias, bf16 pre-BN output + packed BN stats
# --------------------------------------------------------------------------
def _conv3x3_stats_kernel(*refs, n_src, wp, lv):
    x_refs = refs[:n_src]
    w_refs = refs[n_src:2 * n_src]
    b_ref = refs[2 * n_src]
    m_ref = refs[2 * n_src + 1]
    y_ref, st_ref = refs[2 * n_src + 2], refs[2 * n_src + 3]

    acc = None
    for s in range(n_src):                      # fused channel concat
        xt = x_refs[s][0, 0]                    # (Lp, Cs) bf16, flattened halo rows
        for kh in range(3):
            for kw in range(3):                 # in-kernel "im2col": shifted dots
                off = kh * wp + kw
                part = jnp.dot(xt[off:off + lv, :], w_refs[s][kh * 3 + kw],
                               preferred_element_type=jnp.float32)
                acc = part if acc is None else acc + part
    acc = acc + b_ref[...]                      # (Lv, Cout) f32
    y_ref[0, 0] = acc.astype(y_ref.dtype)       # bf16 pre-BN writeback

    # BN partial stats over valid (non width-pad) positions; one packed store.
    am = acc * m_ref[...]
    st_ref[0, 0] = jnp.concatenate(
        [jnp.sum(am, axis=0, keepdims=True),
         jnp.sum(am * acc, axis=0, keepdims=True)], axis=0)


def _halo_blocks(x, bh):
    """(N,Hh,Ww,C) -> flattened halo row-blocks (N, nHb, (bh+2)*(Ww+2)+8, C).

    Block i holds padded rows [i*bh, i*bh+bh+2); the trailing 8 zero rows keep
    the in-kernel tap slices in bounds.  Only ~2/bh of the input is duplicated
    (vs. 9x for im2col)."""
    n, hh, ww, c = x.shape
    wp = ww + 2
    xp = jnp.pad(x, ((0, 0), (1, 1), (1, 1), (0, 0)))
    nhb = hh // bh
    rows = jnp.arange(nhb)[:, None] * bh + jnp.arange(bh + 2)[None, :]
    xb = xp[:, rows].reshape(n, nhb, (bh + 2) * wp, c)
    return jnp.pad(xb, ((0, 0), (0, 0), (0, 8), (0, 0)))


def conv3x3_stats(x_list, w, b, *, block_h):
    """Conv2d(k=3, pad=1, stride=1) + bias over the (virtual) channel concat of
    x_list (NHWC, identical spatial dims).  Returns the pre-BN output (bf16)
    plus exact per-channel batch sum / sum-of-squares (f32)."""
    n, hh, ww, _ = x_list[0].shape
    cout, cin_total = w.shape[0], w.shape[1]
    wp = ww + 2
    bh = _pick_block_h(hh, block_h)
    nhb = hh // bh
    lv = bh * wp
    lp = (bh + 2) * wp + 8

    xbs, wms, c0 = [], [], 0
    for xs in x_list:
        cs = xs.shape[-1]
        xbs.append(_halo_blocks(xs.astype(jnp.bfloat16), bh))
        # per-tap weight slices, tap-major: (9, Cs, Cout)
        wms.append(jnp.transpose(w[:, c0:c0 + cs], (2, 3, 1, 0))
                   .reshape(9, cs, cout).astype(jnp.bfloat16))
        c0 += cs
    assert c0 == cin_total

    bias = b.reshape(1, cout).astype(jnp.float32)
    mask = (jnp.arange(lv) % wp < ww).astype(jnp.float32).reshape(lv, 1)

    n_src = len(x_list)
    kernel = functools.partial(_conv3x3_stats_kernel, n_src=n_src, wp=wp, lv=lv)

    in_specs = []
    for xb in xbs:
        in_specs.append(
            pl.BlockSpec((1, 1, lp, xb.shape[-1]), lambda ni, hi: (ni, hi, 0, 0)))
    for wm in wms:
        # TODO(synk): pl.Buffered(1) single-buffering + a Cin/Cout grid axis for
        # very large channel counts (weights are grid-resident here).
        in_specs.append(
            pl.BlockSpec((9, wm.shape[1], cout), lambda ni, hi: (0, 0, 0)))
    in_specs.append(pl.BlockSpec((1, cout), lambda ni, hi: (0, 0)))
    in_specs.append(pl.BlockSpec((lv, 1), lambda ni, hi: (0, 0)))

    y_flat, stats = pl.pallas_call(
        kernel,
        out_shape=(jax.ShapeDtypeStruct((n, nhb, lv, cout), jnp.bfloat16),
                   jax.ShapeDtypeStruct((n, nhb, 2, cout), jnp.float32)),
        grid=(n, nhb),
        in_specs=in_specs,
        out_specs=(pl.BlockSpec((1, 1, lv, cout), lambda ni, hi: (ni, hi, 0, 0)),
                   pl.BlockSpec((1, 1, 2, cout), lambda ni, hi: (ni, hi, 0, 0))),
        compiler_params=_compiler_params(2),
    )(*xbs, *wms, bias, mask)

    # strip the two width-pad garbage columns (view math; fuses with consumers)
    y = (y_flat.reshape(n, nhb, bh, wp, cout)[:, :, :, :ww, :]
         .reshape(n, hh, ww, cout))
    s_tot = jnp.sum(stats[:, :, 0, :], axis=(0, 1))
    q_tot = jnp.sum(stats[:, :, 1, :], axis=(0, 1))
    return y, s_tot, q_tot


# --------------------------------------------------------------------------
# BatchNorm2d training-mode scale/shift from batch statistics + forward pass
# --------------------------------------------------------------------------
def _bn_scale_shift(s_tot, q_tot, count, gamma, beta):
    mean = s_tot / count
    var = jnp.maximum(q_tot / count - mean * mean, 0.0)   # clamp: no NaN rsqrt
    scale = gamma.astype(jnp.float32) * jax.lax.rsqrt(var + EPS)
    shift = beta.astype(jnp.float32) - mean * scale
    return scale, shift


def up_block_forward(up_x, down_x, params, *, up_block_h=8, conv_block_h=8):
    """UpBlockForUNetWithResNet50.forward: NCHW f32 in / NCHW f32 out."""
    up_nhwc = jnp.transpose(up_x, (0, 2, 3, 1))
    dn_nhwc = jnp.transpose(down_x, (0, 2, 3, 1)).astype(jnp.bfloat16)

    # 1) upsample = ConvTranspose2d(k=2, s=2)
    x_up = conv_transpose_2x2_nhwc(up_nhwc, params["wt"], params["bt"],
                                   block_h=up_block_h)
    n, h2, w2, _ = x_up.shape
    count = n * h2 * w2

    # 2) conv_block_1 on the virtual concat [x_up, down_x] (concat is fused)
    y1, s1, q1 = conv3x3_stats([x_up, dn_nhwc], params["w1"], params["b1"],
                               block_h=conv_block_h)
    sc1, sh1 = _bn_scale_shift(s1, q1, count, params["g1"], params["be1"])
    # BN + ReLU in plain jnp: XLA fuses it with conv_block_2's pad/halo gather.
    x1 = jnp.maximum(y1.astype(jnp.float32) * sc1 + sh1, 0.0).astype(jnp.bfloat16)

    # 3) conv_block_2
    y2, s2, q2 = conv3x3_stats([x1], params["w2"], params["b2"],
                               block_h=conv_block_h)
    sc2, sh2 = _bn_scale_shift(s2, q2, count, params["g2"], params["be2"])
    out = jnp.maximum(y2.astype(jnp.float32) * sc2 + sh2, 0.0)

    return jnp.transpose(out, (0, 3, 1, 2))               # NCHW f32


# --------------------------------------------------------------------------
# Pure-JAX f32 reference (untiled) for a correctness check
# --------------------------------------------------------------------------
def _ref_conv_block(x, w, b, gamma, beta):
    n, hh, ww, _ = x.shape
    cout = w.shape[0]
    xp = jnp.pad(x, ((0, 0), (1, 1), (1, 1), (0, 0)))
    taps = jnp.stack([xp[:, i:i + hh, j:j + ww, :]
                      for i in range(3) for j in range(3)], axis=3)
    wk = jnp.transpose(w, (2, 3, 1, 0)).reshape(9, w.shape[1], cout)
    y = jnp.einsum('nhwkc,kco->nhwo', taps, wk) + b
    mean = y.mean(axis=(0, 1, 2))
    var = y.var(axis=(0, 1, 2))
    y = (y - mean) * gamma * jax.lax.rsqrt(var + EPS) + beta
    return jnp.maximum(y, 0.0)


def _reference_forward(up_x, down_x, p):
    up = jnp.transpose(up_x, (0, 2, 3, 1)).astype(jnp.float32)
    dn = jnp.transpose(down_x, (0, 2, 3, 1)).astype(jnp.float32)
    n, h, w, _ = up.shape
    cout = p["wt"].shape[1]
    y = jnp.einsum('nhwc,coij->nhwijo', up, p["wt"]) + p["bt"]
    y = y.transpose(0, 1, 3, 2, 4, 5).reshape(n, 2 * h, 2 * w, cout)
    x = jnp.concatenate([y, dn], axis=-1)
    x = _ref_conv_block(x, p["w1"], p["b1"], p["g1"], p["be1"])
    x = _ref_conv_block(x, p["w2"], p["b2"], p["g2"], p["be2"])
    return jnp.transpose(x, (0, 3, 1, 2))


# --------------------------------------------------------------------------
if __name__ == "__main__":
    key = jax.random.PRNGKey(0)
    ks = jax.random.split(key, 12)

    B = 2
    in_ch, out_ch = 8, 4            # module: in_channels=8, out_channels=4
    H = W = 8                       # up_x spatial; down_x / output are 2H x 2W

    up_x = jax.random.normal(ks[0], (B, in_ch, H, W), jnp.float32)
    down_x = jax.random.normal(ks[1], (B, out_ch, 2 * H, 2 * W), jnp.float32)

    params = {
        # ConvTranspose2d(in_ch, out_ch, k=2, s=2): weight (Cin, Cout, 2, 2)
        "wt": 0.1 * jax.random.normal(ks[2], (in_ch, out_ch, 2, 2), jnp.float32),
        "bt": 0.1 * jax.random.normal(ks[3], (out_ch,), jnp.float32),
        # conv_block_1: Conv2d(in_ch, out_ch, 3, pad=1) + BN(out_ch)
        "w1": 0.1 * jax.random.normal(ks[4], (out_ch, in_ch, 3, 3), jnp.float32),
        "b1": 0.1 * jax.random.normal(ks[5], (out_ch,), jnp.float32),
        "g1": 1.0 + 0.1 * jax.random.normal(ks[6], (out_ch,), jnp.float32),
        "be1": 0.1 * jax.random.normal(ks[7], (out_ch,), jnp.float32),
        # conv_block_2: Conv2d(out_ch, out_ch, 3, pad=1) + BN(out_ch)
        "w2": 0.1 * jax.random.normal(ks[8], (out_ch, out_ch, 3, 3), jnp.float32),
        "b2": 0.1 * jax.random.normal(ks[9], (out_ch,), jnp.float32),
        "g2": 1.0 + 0.1 * jax.random.normal(ks[10], (out_ch,), jnp.float32),
        "be2": 0.1 * jax.random.normal(ks[11], (out_ch,), jnp.float32),
    }

    # Small block_h so these tiny test shapes still exercise multi-tile grids:
    # upconv grid = (2, 2); conv-block grids = (2, 4).
    fwd = jax.jit(functools.partial(up_block_forward,
                                    up_block_h=4, conv_block_h=4))
    out = fwd(up_x, down_x, params)
    jax.block_until_ready(out)
    assert out.shape == (B, out_ch, 2 * H, 2 * W), out.shape
    assert bool(jnp.all(jnp.isfinite(out)))

    # numerical check vs. an untiled f32 reference (kernels compute in bf16)
    ref = _reference_forward(up_x, down_x, params)
    err = float(jnp.max(jnp.abs(out - ref)))
    assert err < 0.2, f"max abs err vs f32 reference too large: {err}"
    print("KERNEL_OK")
</pallas_src>

<mosaic_0001>
module attributes {stable_mosaic.version = 11 : i64} {
  func.func @_mm_bias_kernel(%arg0: i32, %arg1: i32, %arg2: memref<1x32x8xbf16, #tpu.memory_space<vmem>>, %arg3: memref<8x16xbf16, #tpu.memory_space<vmem>>, %arg4: memref<1x16xf32, #tpu.memory_space<vmem>>, %arg5: memref<1x32x16xbf16, #tpu.memory_space<vmem>>) attributes {dimension_semantics = [#tpu.dimension_semantics<parallel>, #tpu.dimension_semantics<parallel>], iteration_bounds = array<i64: 2, 2>, scalar_prefetch = 0 : i64, scratch_operands = 0 : i64, tpu.core_type = #tpu.core_type<tc>, window_params = [{transform_indices = @transform_0, window_bounds = array<i64: 1, 32, 8>}, {pipeline_mode = #tpu.pipeline_mode<synchronous>, transform_indices = @transform_1, window_bounds = array<i64: 8, 16>}, {pipeline_mode = #tpu.pipeline_mode<synchronous>, transform_indices = @transform_2, window_bounds = array<i64: 1, 16>}, {transform_indices = @transform_3, window_bounds = array<i64: 1, 32, 16>}]} {
    %c0 = arith.constant 0 : index
    %c0_0 = arith.constant 0 : index
    %c0_1 = arith.constant 0 : index
    %0 = vector.load %arg2[%c0, %c0_0, %c0_1] : memref<1x32x8xbf16, #tpu.memory_space<vmem>>, vector<1x32x8xbf16>
    %1 = vector.shape_cast %0 : vector<1x32x8xbf16> to vector<32x8xbf16>
    %c0_2 = arith.constant 0 : index
    %c0_3 = arith.constant 0 : index
    %2 = vector.load %arg3[%c0_2, %c0_3] : memref<8x16xbf16, #tpu.memory_space<vmem>>, vector<8x16xbf16>
    %cst = arith.constant dense<0.000000e+00> : vector<32x16xf32>
    %3 = tpu.matmul %1, %2, %cst {dimension_numbers = #tpu.dot_dimension_numbers<[1], [0], [0], [1], [0, 0, 1, 1], [], []>} : vector<32x8xbf16>, vector<8x16xbf16>, vector<32x16xf32> -> vector<32x16xf32>
    %c0_4 = arith.constant 0 : index
    %c0_5 = arith.constant 0 : index
    %4 = vector.load %arg4[%c0_4, %c0_5] : memref<1x16xf32, #tpu.memory_space<vmem>>, vector<1x16xf32>
    %5 = vector.broadcast %4 : vector<1x16xf32> to vector<32x16xf32>
    %6 = arith.addf %3, %5 : vector<32x16xf32>
    %7 = arith.truncf %6 : vector<32x16xf32> to vector<32x16xbf16>
    %c0_6 = arith.constant 0 : index
    %c0_7 = arith.constant 0 : index
    %c0_8 = arith.constant 0 : index
    %8 = vector.load %arg5[%c0_6, %c0_7, %c0_8] : memref<1x32x16xbf16, #tpu.memory_space<vmem>>, vector<1x32x16xbf16>
    %9 = vector.shape_cast %8 : vector<1x32x16xbf16> to vector<32x16xbf16>
    %10 = vector.shape_cast %7 : vector<32x16xbf16> to vector<1x32x16xbf16>
    tpu.vector_store %arg5[%c0_6, %c0_7, %c0_8], %10 {strides = array<i32>} : memref<1x32x16xbf16, #tpu.memory_space<vmem>>, vector<1x32x16xbf16>,
    return
  }
  func.func @transform_0(%arg0: i32, %arg1: i32) -> (i32, i32, i32) {
    %c0_i32 = arith.constant 0 : i32
    %c0_i32_0 = arith.constant 0 : i32
    return %arg0, %arg1, %c0_i32 : i32, i32, i32
  }
  func.func @transform_1(%arg0: i32, %arg1: i32) -> (i32, i32) {
    %c0_i32 = arith.constant 0 : i32
    %c0_i32_0 = arith.constant 0 : i32
    %c0_i32_1 = arith.constant 0 : i32
    return %c0_i32, %c0_i32_0 : i32, i32
  }
  func.func @transform_2(%arg0: i32, %arg1: i32) -> (i32, i32) {
    %c0_i32 = arith.constant 0 : i32
    %c0_i32_0 = arith.constant 0 : i32
    %c0_i32_1 = arith.constant 0 : i32
    return %c0_i32, %c0_i32_0 : i32, i32
  }
  func.func @transform_3(%arg0: i32, %arg1: i32) -> (i32, i32, i32) {
    %c0_i32 = arith.constant 0 : i32
    %c0_i32_0 = arith.constant 0 : i32
    return %arg0, %arg1, %c0_i32 : i32, i32, i32
  }
}

module attributes {stable_mosaic.version = 11 : i64} {
  func.func @_conv3x3_stats_kernel(%arg0: i32, %arg1: i32, %arg2: memref<1x1x116x4xbf16, #tpu.memory_space<vmem>>, %arg3: memref<1x1x116x4xbf16, #tpu.memory_space<vmem>>, %arg4: memref<9x4x4xbf16, #tpu.memory_space<vmem>>, %arg5: memref<9x4x4xbf16, #tpu.memory_space<vmem>>, %arg6: memref<1x4xf32, #tpu.memory_space<vmem>>, %arg7: memref<72x1xf32, #tpu.memory_space<vmem>>, %arg8: memref<1x1x72x4xbf16, #tpu.memory_space<vmem>>, %arg9: memref<1x1x2x4xf32, #tpu.memory_space<vmem>>) attributes {dimension_semantics = [#tpu.dimension_semantics<parallel>, #tpu.dimension_semantics<parallel>], iteration_bounds = array<i64: 2, 4>, scalar_prefetch = 0 : i64, scratch_operands = 0 : i64, tpu.core_type = #tpu.core_type<tc>, window_params = [{transform_indices = @transform_0, window_bounds = array<i64: 1, 1, 116, 4>}, {transform_indices = @transform_1, window_bounds = array<i64: 1, 1, 116, 4>}, {pipeline_mode = #tpu.pipeline_mode<synchronous>, transform_indices = @transform_2, window_bounds = array<i64: 9, 4, 4>}, {pipeline_mode = #tpu.pipeline_mode<synchronous>, transform_indices = @transform_3, window_bounds = array<i64: 9, 4, 4>}, {pipeline_mode = #tpu.pipeline_mode<synchronous>, transform_indices = @transform_4, window_bounds = array<i64: 1, 4>}, {pipeline_mode = #tpu.pipeline_mode<synchronous>, transform_indices = @transform_5, window_bounds = array<i64: 72, 1>}, {transform_indices = @transform_6, window_bounds = array<i64: 1, 1, 72, 4>}, {transform_indices = @transform_7, window_bounds = array<i64: 1, 1, 2, 4>}]} {
    %c0 = arith.constant 0 : index
    %c0_0 = arith.constant 0 : index
    %c0_1 = arith.constant 0 : index
    %c0_2 = arith.constant 0 : index
    %0 = vector.load %arg2[%c0, %c0_0, %c0_1, %c0_2] : memref<1x1x116x4xbf16, #tpu.memory_space<vmem>>, vector<1x1x116x4xbf16>
    %1 = vector.shape_cast %0 : vector<1x1x116x4xbf16> to vector<116x4xbf16>
    %2 = vector.extract_strided_slice %1 {offsets = [0, 0], sizes = [72, 4], strides = [1, 1]} : vector<116x4xbf16> to vector<72x4xbf16>
    %c0_3 = arith.constant 0 : index
    %c0_4 = arith.constant 0 : index
    %c0_5 = arith.constant 0 : index
    %3 = vector.load %arg4[%c0_3, %c0_4, %c0_5] : memref<9x4x4xbf16, #tpu.memory_space<vmem>>, vector<1x4x4xbf16>
    %4 = vector.shape_cast %3 : vector<1x4x4xbf16> to vector<4x4xbf16>
    %cst = arith.constant dense<0.000000e+00> : vector<72x4xf32>
    %5 = tpu.matmul %2, %4, %cst {dimension_numbers = #tpu.dot_dimension_numbers<[1], [0], [0], [1], [0, 0, 1, 1], [], []>} : vector<72x4xbf16>, vector<4x4xbf16>, vector<72x4xf32> -> vector<72x4xf32>
    %6 = vector.extract_strided_slice %1 {offsets = [1, 0], sizes = [72, 4], strides = [1, 1]} : vector<116x4xbf16> to vector<72x4xbf16>
    %c1 = arith.constant 1 : index
    %c0_6 = arith.constant 0 : index
    %c0_7 = arith.constant 0 : index
    %7 = vector.load %arg4[%c1, %c0_6, %c0_7] : memref<9x4x4xbf16, #tpu.memory_space<vmem>>, vector<1x4x4xbf16>
    %8 = vector.shape_cast %7 : vector<1x4x4xbf16> to vector<4x4xbf16>
    %cst_8 = arith.constant dense<0.000000e+00> : vector<72x4xf32>
    %9 = tpu.matmul %6, %8, %cst_8 {dimension_numbers = #tpu.dot_dimension_numbers<[1], [0], [0], [1], [0, 0, 1, 1], [], []>} : vector<72x4xbf16>, vector<4x4xbf16>, vector<72x4xf32> -> vector<72x4xf32>
    %10 = arith.addf %5, %9 : vector<72x4xf32>
    %11 = vector.extract_strided_slice %1 {offsets = [2, 0], sizes = [72, 4], strides = [1, 1]} : vector<116x4xbf16> to vector<72x4xbf16>
    %c2 = arith.constant 2 : index
    %c0_9 = arith.constant 0 : index
    %c0_10 = arith.constant 0 : index
    %12 = vector.load %arg4[%c2, %c0_9, %c0_10] : memref<9x4x4xbf16, #tpu.memory_space<vmem>>, vector<1x4x4xbf16>
    %13 = vector.shape_cast %12 : vector<1x4x4xbf16> to vector<4x4xbf16>
    %cst_11 = arith.constant dense<0.000000e+00> : vector<72x4xf32>
    %14 = tpu.matmul %11, %13, %cst_11 {dimension_numbers = #tpu.dot_dimension_numbers<[1], [0], [0], [1], [0, 0, 1, 1], [], []>} : vector<72x4xbf16>, vector<4x4xbf16>, vector<72x4xf32> -> vector<72x4xf32>
    %15 = arith.addf %10, %14 : vector<72x4xf32>
    %16 = vector.extract_strided_slice %1 {offsets = [18, 0], sizes = [72, 4], strides = [1, 1]} : vector<116x4xbf16> to vector<72x4xbf16>
    %c3 = arith.constant 3 : index
    %c0_12 = arith.constant 0 : index
    %c0_13 = arith.constant 0 : index
    %17 = vector.load %arg4[%c3, %c0_12, %c0_13] : memref<9x4x4xbf16, #tpu.memory_space<vmem>>, vector<1x4x4xbf16>
    %18 = vector.shape_cast %17 : vector<1x4x4xbf16> to vector<4x4xbf16>
    %cst_14 = arith.constant dense<0.000000e+00> : vector<72x4xf32>
    %19 = tpu.matmul %16, %18, %cst_14 {dimension_numbers = #tpu.dot_dimension_numbers<[1], [0], [0], [1], [0, 0, 1, 1], [], []>} : vector<72x4xbf16>, vector<4x4xbf16>, vector<72x4xf32> -> vector<72x4xf32>
    %20 = arith.addf %15, %19 : vector<72x4xf32>
    %21 = vector.extract_strided_slice %1 {offsets = [19, 0], sizes = [72, 4], strides = [1, 1]} : vector<116x4xbf16> to vector<72x4xbf16>
    %c4 = arith.constant 4 : index
    %c0_15 = arith.constant 0 : index
    %c0_16 = arith.constant 0 : index
    %22 = vector.load %arg4[%c4, %c0_15, %c0_16] : memref<9x4x4xbf16, #tpu.memory_space<vmem>>, vector<1x4x4xbf16>
    %23 = vector.shape_cast %22 : vector<1x4x4xbf16> to vector<4x4xbf16>
    %cst_17 = arith.constant dense<0.000000e+00> : vector<72x4xf32>
    %24 = tpu.matmul %21, %23, %cst_17 {dimension_numbers = #tpu.dot_dimension_numbers<[1], [0], [0], [1], [0, 0, 1, 1], [], []>} : vector<72x4xbf16>, vector<4x4xbf16>, vector<72x4xf32> -> vector<72x4xf32>
    %25 = arith.addf %20, %24 : vector<72x4xf32>
    %26 = vector.extract_strided_slice %1 {offsets = [20, 0], sizes = [72, 4], strides = [1, 1]} : vector<116x4xbf16> to vector<72x4xbf16>
    %c5 = arith.constant 5 : index
    %c0_18 = arith.constant 0 : index
    %c0_19 = arith.constant 0 : index
    %27 = vector.load %arg4[%c5, %c0_18, %c0_19] : memref<9x4x4xbf16, #tpu.memory_space<vmem>>, vector<1x4x4xbf16>
    %28 = vector.shape_cast %27 : vector<1x4x4xbf16> to vector<4x4xbf16>
    %cst_20 = arith.constant dense<0.000000e+00> : vector<72x4xf32>
    %29 = tpu.matmul %26, %28, %cst_20 {dimension_numbers = #tpu.dot_dimension_numbers<[1], [0], [0], [1], [0, 0, 1, 1], [], []>} : vector<72x4xbf16>, vector<4x4xbf16>, vector<72x4xf32> -> vector<72x4xf32>
    %30 = arith.addf %25, %29 : vector<72x4xf32>
    %31 = vector.extract_strided_slice %1 {offsets = [36, 0], sizes = [72, 4], strides = [1, 1]} : vector<116x4xbf16> to vector<72x4xbf16>
    %c6 = arith.constant 6 : index
    %c0_21 = arith.constant 0 : index
    %c0_22 = arith.constant 0 : index
    %32 = vector.load %arg4[%c6, %c0_21, %c0_22] : memref<9x4x4xbf16, #tpu.memory_space<vmem>>, vector<1x4x4xbf16>
    %33 = vector.shape_cast %32 : vector<1x4x4xbf16> to vector<4x4xbf16>
    %cst_23 = arith.constant dense<0.000000e+00> : vector<72x4xf32>
    %34 = tpu.matmul %31, %33, %cst_23 {dimension_numbers = #tpu.dot_dimension_numbers<[1], [0], [0], [1], [0, 0, 1, 1], [], []>} : vector<72x4xbf16>, vector<4x4xbf16>, vector<72x4xf32> -> vector<72x4xf32>
    %35 = arith.addf %30, %34 : vector<72x4xf32>
    %36 = vector.extract_strided_slice %1 {offsets = [37, 0], sizes = [72, 4], strides = [1, 1]} : vector<116x4xbf16> to vector<72x4xbf16>
    %c7 = arith.constant 7 : index
    %c0_24 = arith.constant 0 : index
    %c0_25 = arith.constant 0 : index
    %37 = vector.load %arg4[%c7, %c0_24, %c0_25] : memref<9x4x4xbf16, #tpu.memory_space<vmem>>, vector<1x4x4xbf16>
    %38 = vector.shape_cast %37 : vector<1x4x4xbf16> to vector<4x4xbf16>
    %cst_26 = arith.constant dense<0.000000e+00> : vector<72x4xf32>
    %39 = tpu.matmul %36, %38, %cst_26 {dimension_numbers = #tpu.dot_dimension_numbers<[1], [0], [0], [1], [0, 0, 1, 1], [], []>} : vector<72x4xbf16>, vector<4x4xbf16>, vector<72x4xf32> -> vector<72x4xf32>
    %40 = arith.addf %35, %39 : vector<72x4xf32>
    %41 = vector.extract_strided_slice %1 {offsets = [38, 0], sizes = [72, 4], strides = [1, 1]} : vector<116x4xbf16> to vector<72x4xbf16>
    %c8 = arith.constant 8 : index
    %c0_27 = arith.constant 0 : index
    %c0_28 = arith.constant 0 : index
    %42 = vector.load %arg4[%c8, %c0_27, %c0_28] : memref<9x4x4xbf16, #tpu.memory_space<vmem>>, vector<1x4x4xbf16>
    %43 = vector.shape_cast %42 : vector<1x4x4xbf16> to vector<4x4xbf16>
    %cst_29 = arith.constant dense<0.000000e+00> : vector<72x4xf32>
    %44 = tpu.matmul %41, %43, %cst_29 {dimension_numbers = #tpu.dot_dimension_numbers<[1], [0], [0], [1], [0, 0, 1, 1], [], []>} : vector<72x4xbf16>, vector<4x4xbf16>, vector<72x4xf32> -> vector<72x4xf32>
    %45 = arith.addf %40, %44 : vector<72x4xf32>
    %c0_30 = arith.constant 0 : index
    %c0_31 = arith.constant 0 : index
    %c0_32 = arith.constant 0 : index
    %c0_33 = arith.constant 0 : index
    %46 = vector.load %arg3[%c0_30, %c0_31, %c0_32, %c0_33] : memref<1x1x116x4xbf16, #tpu.memory_space<vmem>>, vector<1x1x116x4xbf16>
    %47 = vector.shape_cast %46 : vector<1x1x116x4xbf16> to vector<116x4xbf16>
    %48 = vector.extract_strided_slice %47 {offsets = [0, 0], sizes = [72, 4], strides = [1, 1]} : vector<116x4xbf16> to vector<72x4xbf16>
    %c0_34 = arith.constant 0 : index
    %c0_35 = arith.constant 0 : index
    %c0_36 = arith.constant 0 : index
    %49 = vector.load %arg5[%c0_34, %c0_35, %c0_36] : memref<9x4x4xbf16, #tpu.memory_space<vmem>>, vector<1x4x4xbf16>
    %50 = vector.shape_cast %49 : vector<1x4x4xbf16> to vector<4x4xbf16>
    %cst_37 = arith.constant dense<0.000000e+00> : vector<72x4xf32>
    %51 = tpu.matmul %48, %50, %cst_37 {dimension_numbers = #tpu.dot_dimension_numbers<[1], [0], [0], [1], [0, 0, 1, 1], [], []>} : vector<72x4xbf16>, vector<4x4xbf16>, vector<72x4xf32> -> vector<72x4xf32>
    %52 = arith.addf %45, %51 : vector<72x4xf32>
    %53 = vector.extract_strided_slice %47 {offsets = [1, 0], sizes = [72, 4], strides = [1, 1]} : vector<116x4xbf16> to vector<72x4xbf16>
    %c1_38 = arith.constant 1 : index
    %c0_39 = arith.constant 0 : index
    %c0_40 = arith.constant 0 : index
    %54 = vector.load %arg5[%c1_38, %c0_39, %c0_40] : memref<9x4x4xbf16, #tpu.memory_space<vmem>>, vector<1x4x4xbf16>
    %55 = vector.shape_cast %54 : vector<1x4x4xbf16> to vector<4x4xbf16>
    %cst_41 = arith.constant dense<0.000000e+00> : vector<72x4xf32>
    %56 = tpu.matmul %53, %55, %cst_41 {dimension_numbers = #tpu.dot_dimension_numbers<[1], [0], [0], [1], [0, 0, 1, 1], [], []>} : vector<72x4xbf16>, vector<4x4xbf16>, vector<72x4xf32> -> vector<72x4xf32>
    %57 = arith.addf %52, %56 : vector<72x4xf32>
    %58 = vector.extract_strided_slice %47 {offsets = [2, 0], sizes = [72, 4], strides = [1, 1]} : vector<116x4xbf16> to vector<72x4xbf16>
    %c2_42 = arith.constant 2 : index
    %c0_43 = arith.constant 0 : index
    %c0_44 = arith.constant 0 : index
    %59 = vector.load %arg5[%c2_42, %c0_43, %c0_44] : memref<9x4x4xbf16, #tpu.memory_space<vmem>>, vector<1x4x4xbf16>
    %60 = vector.shape_cast %59 : vector<1x4x4xbf16> to vector<4x4xbf16>
    %cst_45 = arith.constant dense<0.000000e+00> : vector<72x4xf32>
    %61 = tpu.matmul %58, %60, %cst_45 {dimension_numbers = #tpu.dot_dimension_numbers<[1], [0], [0], [1], [0, 0, 1, 1], [], []>} : vector<72x4xbf16>, vector<4x4xbf16>, vector<72x4xf32> -> vector<72x4xf32>
    %62 = arith.addf %57, %61 : vector<72x4xf32>
    %63 = vector.extract_strided_slice %47 {offsets = [18, 0], sizes = [72, 4], strides = [1, 1]} : vector<116x4xbf16> to vector<72x4xbf16>
    %c3_46 = arith.constant 3 : index
    %c0_47 = arith.constant 0 : index
    %c0_48 = arith.constant 0 : index
    %64 = vector.load %arg5[%c3_46, %c0_47, %c0_48] : memref<9x4x4xbf16, #tpu.memory_space<vmem>>, vector<1x4x4xbf16>
    %65 = vector.shape_cast %64 : vector<1x4x4xbf16> to vector<4x4xbf16>
    %cst_49 = arith.constant dense<0.000000e+00> : vector<72x4xf32>
    %66 = tpu.matmul %63, %65, %cst_49 {dimension_numbers = #tpu.dot_dimension_numbers<[1], [0], [0], [1], [0, 0, 1, 1], [], []>} : vector<72x4xbf16>, vector<4x4xbf16>, vector<72x4xf32> -> vector<72x4xf32>
    %67 = arith.addf %62, %66 : vector<72x4xf32>
    %68 = vector.extract_strided_slice %47 {offsets = [19, 0], sizes = [72, 4], strides = [1, 1]} : vector<116x4xbf16> to vector<72x4xbf16>
    %c4_50 = arith.constant 4 : index
    %c0_51 = arith.constant 0 : index
    %c0_52 = arith.constant 0 : index
    %69 = vector.load %arg5[%c4_50, %c0_51, %c0_52] : memref<9x4x4xbf16, #tpu.memory_space<vmem>>, vector<1x4x4xbf16>
    %70 = vector.shape_cast %69 : vector<1x4x4xbf16> to vector<4x4xbf16>
    %cst_53 = arith.constant dense<0.000000e+00> : vector<72x4xf32>
    %71 = tpu.matmul %68, %70, %cst_53 {dimension_numbers = #tpu.dot_dimension_numbers<[1], [0], [0], [1], [0, 0, 1, 1], [], []>} : vector<72x4xbf16>, vector<4x4xbf16>, vector<72x4xf32> -> vector<72x4xf32>
    %72 = arith.addf %67, %71 : vector<72x4xf32>
    %73 = vector.extract_strided_slice %47 {offsets = [20, 0], sizes = [72, 4], strides = [1, 1]} : vector<116x4xbf16> to vector<72x4xbf16>
    %c5_54 = arith.constant 5 : index
    %c0_55 = arith.constant 0 : index
    %c0_56 = arith.constant 0 : index
    %74 = vector.load %arg5[%c5_54, %c0_55, %c0_56] : memref<9x4x4xbf16, #tpu.memory_space<vmem>>, vector<1x4x4xbf16>
    %75 = vector.shape_cast %74 : vector<1x4x4xbf16> to vector<4x4xbf16>
    %cst_57 = arith.constant dense<0.000000e+00> : vector<72x4xf32>
    %76 = tpu.matmul %73, %75, %cst_57 {dimension_numbers = #tpu.dot_dimension_numbers<[1], [0], [0], [1], [0, 0, 1, 1], [], []>} : vector<72x4xbf16>, vector<4x4xbf16>, vector<72x4xf32> -> vector<72x4xf32>
    %77 = arith.addf %72, %76 : vector<72x4xf32>
    %78 = vector.extract_strided_slice %47 {offsets = [36, 0], sizes = [72, 4], strides = [1, 1]} : vector<116x4xbf16> to vector<72x4xbf16>
    %c6_58 = arith.constant 6 : index
    %c0_59 = arith.constant 0 : index
    %c0_60 = arith.constant 0 : index
    %79 = vector.load %arg5[%c6_58, %c0_59, %c0_60] : memref<9x4x4xbf16, #tpu.memory_space<vmem>>, vector<1x4x4xbf16>
    %80 = vector.shape_cast %79 : vector<1x4x4xbf16> to vector<4x4xbf16>
    %cst_61 = arith.constant dense<0.000000e+00> : vector<72x4xf32>
    %81 = tpu.matmul %78, %80, %cst_61 {dimension_numbers = #tpu.dot_dimension_numbers<[1], [0], [0], [1], [0, 0, 1, 1], [], []>} : vector<72x4xbf16>, vector<4x4xbf16>, vector<72x4xf32> -> vector<72x4xf32>
    %82 = arith.addf %77, %81 : vector<72x4xf32>
    %83 = vector.extract_strided_slice %47 {offsets = [37, 0], sizes = [72, 4], strides = [1, 1]} : vector<116x4xbf16> to vector<72x4xbf16>
    %c7_62 = arith.constant 7 : index
    %c0_63 = arith.constant 0 : index
    %c0_64 = arith.constant 0 : index
    %84 = vector.load %arg5[%c7_62, %c0_63, %c0_64] : memref<9x4x4xbf16, #tpu.memory_space<vmem>>, vector<1x4x4xbf16>
    %85 = vector.shape_cast %84 : vector<1x4x4xbf16> to vector<4x4xbf16>
    %cst_65 = arith.constant dense<0.000000e+00> : vector<72x4xf32>
    %86 = tpu.matmul %83, %85, %cst_65 {dimension_numbers = #tpu.dot_dimension_numbers<[1], [0], [0], [1], [0, 0, 1, 1], [], []>} : vector<72x4xbf16>, vector<4x4xbf16>, vector<72x4xf32> -> vector<72x4xf32>
    %87 = arith.addf %82, %86 : vector<72x4xf32>
    %88 = vector.extract_strided_slice %47 {offsets = [38, 0], sizes = [72, 4], strides = [1, 1]} : vector<116x4xbf16> to vector<72x4xbf16>
    %c8_66 = arith.constant 8 : index
    %c0_67 = arith.constant 0 : index
    %c0_68 = arith.constant 0 : index
    %89 = vector.load %arg5[%c8_66, %c0_67, %c0_68] : memref<9x4x4xbf16, #tpu.memory_space<vmem>>, vector<1x4x4xbf16>
    %90 = vector.shape_cast %89 : vector<1x4x4xbf16> to vector<4x4xbf16>
    %cst_69 = arith.constant dense<0.000000e+00> : vector<72x4xf32>
    %91 = tpu.matmul %88, %90, %cst_69 {dimension_numbers = #tpu.dot_dimension_numbers<[1], [0], [0], [1], [0, 0, 1, 1], [], []>} : vector<72x4xbf16>, vector<4x4xbf16>, vector<72x4xf32> -> vector<72x4xf32>
    %92 = arith.addf %87, %91 : vector<72x4xf32>
    %c0_70 = arith.constant 0 : index
    %c0_71 = arith.constant 0 : index
    %93 = vector.load %arg6[%c0_70, %c0_71] : memref<1x4xf32, #tpu.memory_space<vmem>>, vector<1x4xf32>
    %94 = vector.broadcast %93 : vector<1x4xf32> to vector<72x4xf32>
    %95 = arith.addf %92, %94 : vector<72x4xf32>
    %96 = arith.truncf %95 : vector<72x4xf32> to vector<72x4xbf16>
    %c0_72 = arith.constant 0 : index
    %c0_73 = arith.constant 0 : index
    %c0_74 = arith.constant 0 : index
    %c0_75 = arith.constant 0 : index
    %97 = vector.load %arg8[%c0_72, %c0_73, %c0_74, %c0_75] : memref<1x1x72x4xbf16, #tpu.memory_space<vmem>>, vector<1x1x72x4xbf16>
    %98 = vector.shape_cast %97 : vector<1x1x72x4xbf16> to vector<72x4xbf16>
    %99 = vector.shape_cast %96 : vector<72x4xbf16> to vector<1x1x72x4xbf16>
    tpu.vector_store %arg8[%c0_72, %c0_73, %c0_74, %c0_75], %99 {strides = array<i32>} : memref<1x1x72x4xbf16, #tpu.memory_space<vmem>>, vector<1x1x72x4xbf16>,
    %c0_76 = arith.constant 0 : index
    %c0_77 = arith.constant 0 : index
    %100 = vector.load %arg7[%c0_76, %c0_77] : memref<72x1xf32, #tpu.memory_space<vmem>>, vector<72x1xf32>
    %101 = vector.broadcast %100 : vector<72x1xf32> to vector<72x4xf32>
    %102 = arith.mulf %95, %101 : vector<72x4xf32>
    %cst_78 = arith.constant dense<0.000000e+00> : vector<4xf32>
    %103 = vector.multi_reduction <add>, %102, %cst_78 [0] : vector<72x4xf32> to vector<4xf32>
    %104 = vector.shape_cast %103 : vector<4xf32> to vector<1x4xf32>
    %105 = arith.mulf %102, %95 : vector<72x4xf32>
    %cst_79 = arith.constant dense<0.000000e+00> : vector<4xf32>
    %106 = vector.multi_reduction <add>, %105, %cst_79 [0] : vector<72x4xf32> to vector<4xf32>
    %107 = vector.shape_cast %106 : vector<4xf32> to vector<1x4xf32>
    %108 = tpu.concatenate %104, %107 in 0 : vector<1x4xf32>, vector<1x4xf32> -> vector<2x4xf32>
    %c0_80 = arith.constant 0 : index
    %c0_81 = arith.constant 0 : index
    %c0_82 = arith.constant 0 : index
    %c0_83 = arith.constant 0 : index
    %109 = vector.load %arg9[%c0_80, %c0_81, %c0_82, %c0_83] : memref<1x1x2x4xf32, #tpu.memory_space<vmem>>, vector<1x1x2x4xf32>
    %110 = vector.shape_cast %109 : vector<1x1x2x4xf32> to vector<2x4xf32>
    %111 = vector.shape_cast %108 : vector<2x4xf32> to vector<1x1x2x4xf32>
    tpu.vector_store %arg9[%c0_80, %c0_81, %c0_82, %c0_83], %111 {strides = array<i32>} : memref<1x1x2x4xf32, #tpu.memory_space<vmem>>, vector<1x1x2x4xf32>,
    return
  }
  func.func @transform_0(%arg0: i32, %arg1: i32) -> (i32, i32, i32, i32) {
    %c0_i32 = arith.constant 0 : i32
    %c0_i32_0 = arith.constant 0 : i32
    %c0_i32_1 = arith.constant 0 : i32
    return %arg0, %arg1, %c0_i32, %c0_i32_0 : i32, i32, i32, i32
  }
  func.func @transform_1(%arg0: i32, %arg1: i32) -> (i32, i32, i32, i32) {
    %c0_i32 = arith.constant 0 : i32
    %c0_i32_0 = arith.constant 0 : i32
    %c0_i32_1 = arith.constant 0 : i32
    return %arg0, %arg1, %c0_i32, %c0_i32_0 : i32, i32, i32, i32
  }
  func.func @transform_2(%arg0: i32, %arg1: i32) -> (i32, i32, i32) {
    %c0_i32 = arith.constant 0 : i32
    %c0_i32_0 = arith.constant 0 : i32
    %c0_i32_1 = arith.constant 0 : i32
    %c0_i32_2 = arith.constant 0 : i32
    return %c0_i32, %c0_i32_0, %c0_i32_1 : i32, i32, i32
  }
  func.func @transform_3(%arg0: i32, %arg1: i32) -> (i32, i32, i32) {
    %c0_i32 = arith.constant 0 : i32
    %c0_i32_0 = arith.constant 0 : i32
    %c0_i32_1 = arith.constant 0 : i32
    %c0_i32_2 = arith.constant 0 : i32
    return %c0_i32, %c0_i32_0, %c0_i32_1 : i32, i32, i32
  }
  func.func @transform_4(%arg0: i32, %arg1: i32) -> (i32, i32) {
    %c0_i32 = arith.constant 0 : i32
    %c0_i32_0 = arith.constant 0 : i32
    %c0_i32_1 = arith.constant 0 : i32
    return %c0_i32, %c0_i32_0 : i32, i32
  }
  func.func @transform_5(%arg0: i32, %arg1: i32) -> (i32, i32) {
    %c0_i32 = arith.constant 0 : i32
    %c0_i32_0 = arith.constant 0 : i32
    %c0_i32_1 = arith.constant 0 : i32
    return %c0_i32, %c0_i32_0 : i32, i32
  }
  func.func @transform_6(%arg0: i32, %arg1: i32) -> (i32, i32, i32, i32) {
    %c0_i32 = arith.constant 0 : i32
    %c0_i32_0 = arith.constant 0 : i32
    %c0_i32_1 = arith.constant 0 : i32
    return %arg0, %arg1, %c0_i32, %c0_i32_0 : i32, i32, i32, i32
  }
  func.func @transform_7(%arg0: i32, %arg1: i32) -> (i32, i32, i32, i32) {
    %c0_i32 = arith.constant 0 : i32
    %c0_i32_0 = arith.constant 0 : i32
    %c0_i32_1 = arith.constant 0 : i32
    return %arg0, %arg1, %c0_i32, %c0_i32_0 : i32, i32, i32, i32
  }
}

module attributes {stable_mosaic.version = 11 : i64} {
  func.func @_conv3x3_stats_kernel(%arg0: i32, %arg1: i32, %arg2: memref<1x1x116x4xbf16, #tpu.memory_space<vmem>>, %arg3: memref<9x4x4xbf16, #tpu.memory_space<vmem>>, %arg4: memref<1x4xf32, #tpu.memory_space<vmem>>, %arg5: memref<72x1xf32, #tpu.memory_space<vmem>>, %arg6: memref<1x1x72x4xbf16, #tpu.memory_space<vmem>>, %arg7: memref<1x1x2x4xf32, #tpu.memory_space<vmem>>) attributes {dimension_semantics = [#tpu.dimension_semantics<parallel>, #tpu.dimension_semantics<parallel>], iteration_bounds = array<i64: 2, 4>, scalar_prefetch = 0 : i64, scratch_operands = 0 : i64, tpu.core_type = #tpu.core_type<tc>, window_params = [{transform_indices = @transform_0, window_bounds = array<i64: 1, 1, 116, 4>}, {pipeline_mode = #tpu.pipeline_mode<synchronous>, transform_indices = @transform_1, window_bounds = array<i64: 9, 4, 4>}, {pipeline_mode = #tpu.pipeline_mode<synchronous>, transform_indices = @transform_2, window_bounds = array<i64: 1, 4>}, {pipeline_mode = #tpu.pipeline_mode<synchronous>, transform_indices = @transform_3, window_bounds = array<i64: 72, 1>}, {transform_indices = @transform_4, window_bounds = array<i64: 1, 1, 72, 4>}, {transform_indices = @transform_5, window_bounds = array<i64: 1, 1, 2, 4>}]} {
    %c0 = arith.constant 0 : index
    %c0_0 = arith.constant 0 : index
    %c0_1 = arith.constant 0 : index
    %c0_2 = arith.constant 0 : index
    %0 = vector.load %arg2[%c0, %c0_0, %c0_1, %c0_2] : memref<1x1x116x4xbf16, #tpu.memory_space<vmem>>, vector<1x1x116x4xbf16>
    %1 = vector.shape_cast %0 : vector<1x1x116x4xbf16> to vector<116x4xbf16>
    %2 = vector.extract_strided_slice %1 {offsets = [0, 0], sizes = [72, 4], strides = [1, 1]} : vector<116x4xbf16> to vector<72x4xbf16>
    %c0_3 = arith.constant 0 : index
    %c0_4 = arith.constant 0 : index
    %c0_5 = arith.constant 0 : index
    %3 = vector.load %arg3[%c0_3, %c0_4, %c0_5] : memref<9x4x4xbf16, #tpu.memory_space<vmem>>, vector<1x4x4xbf16>
    %4 = vector.shape_cast %3 : vector<1x4x4xbf16> to vector<4x4xbf16>
    %cst = arith.constant dense<0.000000e+00> : vector<72x4xf32>
    %5 = tpu.matmul %2, %4, %cst {dimension_numbers = #tpu.dot_dimension_numbers<[1], [0], [0], [1], [0, 0, 1, 1], [], []>} : vector<72x4xbf16>, vector<4x4xbf16>, vector<72x4xf32> -> vector<72x4xf32>
    %6 = vector.extract_strided_slice %1 {offsets = [1, 0], sizes = [72, 4], strides = [1, 1]} : vector<116x4xbf16> to vector<72x4xbf16>
    %c1 = arith.constant 1 : index
    %c0_6 = arith.constant 0 : index
    %c0_7 = arith.constant 0 : index
    %7 = vector.load %arg3[%c1, %c0_6, %c0_7] : memref<9x4x4xbf16, #tpu.memory_space<vmem>>, vector<1x4x4xbf16>
    %8 = vector.shape_cast %7 : vector<1x4x4xbf16> to vector<4x4xbf16>
    %cst_8 = arith.constant dense<0.000000e+00> : vector<72x4xf32>
    %9 = tpu.matmul %6, %8, %cst_8 {dimension_numbers = #tpu.dot_dimension_numbers<[1], [0], [0], [1], [0, 0, 1, 1], [], []>} : vector<72x4xbf16>, vector<4x4xbf16>, vector<72x4xf32> -> vector<72x4xf32>
    %10 = arith.addf %5, %9 : vector<72x4xf32>
    %11 = vector.extract_strided_slice %1 {offsets = [2, 0], sizes = [72, 4], strides = [1, 1]} : vector<116x4xbf16> to vector<72x4xbf16>
    %c2 = arith.constant 2 : index
    %c0_9 = arith.constant 0 : index
    %c0_10 = arith.constant 0 : index
    %12 = vector.load %arg3[%c2, %c0_9, %c0_10] : memref<9x4x4xbf16, #tpu.memory_space<vmem>>, vector<1x4x4xbf16>
    %13 = vector.shape_cast %12 : vector<1x4x4xbf16> to vector<4x4xbf16>
    %cst_11 = arith.constant dense<0.000000e+00> : vector<72x4xf32>
    %14 = tpu.matmul %11, %13, %cst_11 {dimension_numbers = #tpu.dot_dimension_numbers<[1], [0], [0], [1], [0, 0, 1, 1], [], []>} : vector<72x4xbf16>, vector<4x4xbf16>, vector<72x4xf32> -> vector<72x4xf32>
    %15 = arith.addf %10, %14 : vector<72x4xf32>
    %16 = vector.extract_strided_slice %1 {offsets = [18, 0], sizes = [72, 4], strides = [1, 1]} : vector<116x4xbf16> to vector<72x4xbf16>
    %c3 = arith.constant 3 : index
    %c0_12 = arith.constant 0 : index
    %c0_13 = arith.constant 0 : index
    %17 = vector.load %arg3[%c3, %c0_12, %c0_13] : memref<9x4x4xbf16, #tpu.memory_space<vmem>>, vector<1x4x4xbf16>
    %18 = vector.shape_cast %17 : vector<1x4x4xbf16> to vector<4x4xbf16>
    %cst_14 = arith.constant dense<0.000000e+00> : vector<72x4xf32>
    %19 = tpu.matmul %16, %18, %cst_14 {dimension_numbers = #tpu.dot_dimension_numbers<[1], [0], [0], [1], [0, 0, 1, 1], [], []>} : vector<72x4xbf16>, vector<4x4xbf16>, vector<72x4xf32> -> vector<72x4xf32>
    %20 = arith.addf %15, %19 : vector<72x4xf32>
    %21 = vector.extract_strided_slice %1 {offsets = [19, 0], sizes = [72, 4], strides = [1, 1]} : vector<116x4xbf16> to vector<72x4xbf16>
    %c4 = arith.constant 4 : index
    %c0_15 = arith.constant 0 : index
    %c0_16 = arith.constant 0 : index
    %22 = vector.load %arg3[%c4, %c0_15, %c0_16] : memref<9x4x4xbf16, #tpu.memory_space<vmem>>, vector<1x4x4xbf16>
    %23 = vector.shape_cast %22 : vector<1x4x4xbf16> to vector<4x4xbf16>
    %cst_17 = arith.constant dense<0.000000e+00> : vector<72x4xf32>
    %24 = tpu.matmul %21, %23, %cst_17 {dimension_numbers = #tpu.dot_dimension_numbers<[1], [0], [0], [1], [0, 0, 1, 1], [], []>} : vector<72x4xbf16>, vector<4x4xbf16>, vector<72x4xf32> -> vector<72x4xf32>
    %25 = arith.addf %20, %24 : vector<72x4xf32>
    %26 = vector.extract_strided_slice %1 {offsets = [20, 0], sizes = [72, 4], strides = [1, 1]} : vector<116x4xbf16> to vector<72x4xbf16>
    %c5 = arith.constant 5 : index
    %c0_18 = arith.constant 0 : index
    %c0_19 = arith.constant 0 : index
    %27 = vector.load %arg3[%c5, %c0_18, %c0_19] : memref<9x4x4xbf16, #tpu.memory_space<vmem>>, vector<1x4x4xbf16>
    %28 = vector.shape_cast %27 : vector<1x4x4xbf16> to vector<4x4xbf16>
    %cst_20 = arith.constant dense<0.000000e+00> : vector<72x4xf32>
    %29 = tpu.matmul %26, %28, %cst_20 {dimension_numbers = #tpu.dot_dimension_numbers<[1], [0], [0], [1], [0, 0, 1, 1], [], []>} : vector<72x4xbf16>, vector<4x4xbf16>, vector<72x4xf32> -> vector<72x4xf32>
    %30 = arith.addf %25, %29 : vector<72x4xf32>
    %31 = vector.extract_strided_slice %1 {offsets = [36, 0], sizes = [72, 4], strides = [1, 1]} : vector<116x4xbf16> to vector<72x4xbf16>
    %c6 = arith.constant 6 : index
    %c0_21 = arith.constant 0 : index
    %c0_22 = arith.constant 0 : index
    %32 = vector.load %arg3[%c6, %c0_21, %c0_22] : memref<9x4x4xbf16, #tpu.memory_space<vmem>>, vector<1x4x4xbf16>
    %33 = vector.shape_cast %32 : vector<1x4x4xbf16> to vector<4x4xbf16>
    %cst_23 = arith.constant dense<0.000000e+00> : vector<72x4xf32>
    %34 = tpu.matmul %31, %33, %cst_23 {dimension_numbers = #tpu.dot_dimension_numbers<[1], [0], [0], [1], [0, 0, 1, 1], [], []>} : vector<72x4xbf16>, vector<4x4xbf16>, vector<72x4xf32> -> vector<72x4xf32>
    %35 = arith.addf %30, %34 : vector<72x4xf32>
    %36 = vector.extract_strided_slice %1 {offsets = [37, 0], sizes = [72, 4], strides = [1, 1]} : vector<116x4xbf16> to vector<72x4xbf16>
    %c7 = arith.constant 7 : index
    %c0_24 = arith.constant 0 : index
    %c0_25 = arith.constant 0 : index
    %37 = vector.load %arg3[%c7, %c0_24, %c0_25] : memref<9x4x4xbf16, #tpu.memory_space<vmem>>, vector<1x4x4xbf16>
    %38 = vector.shape_cast %37 : vector<1x4x4xbf16> to vector<4x4xbf16>
    %cst_26 = arith.constant dense<0.000000e+00> : vector<72x4xf32>
    %39 = tpu.matmul %36, %38, %cst_26 {dimension_numbers = #tpu.dot_dimension_numbers<[1], [0], [0], [1], [0, 0, 1, 1], [], []>} : vector<72x4xbf16>, vector<4x4xbf16>, vector<72x4xf32> -> vector<72x4xf32>
    %40 = arith.addf %35, %39 : vector<72x4xf32>
    %41 = vector.extract_strided_slice %1 {offsets = [38, 0], sizes = [72, 4], strides = [1, 1]} : vector<116x4xbf16> to vector<72x4xbf16>
    %c8 = arith.constant 8 : index
    %c0_27 = arith.constant 0 : index
    %c0_28 = arith.constant 0 : index
    %42 = vector.load %arg3[%c8, %c0_27, %c0_28] : memref<9x4x4xbf16, #tpu.memory_space<vmem>>, vector<1x4x4xbf16>
    %43 = vector.shape_cast %42 : vector<1x4x4xbf16> to vector<4x4xbf16>
    %cst_29 = arith.constant dense<0.000000e+00> : vector<72x4xf32>
    %44 = tpu.matmul %41, %43, %cst_29 {dimension_numbers = #tpu.dot_dimension_numbers<[1], [0], [0], [1], [0, 0, 1, 1], [], []>} : vector<72x4xbf16>, vector<4x4xbf16>, vector<72x4xf32> -> vector<72x4xf32>
    %45 = arith.addf %40, %44 : vector<72x4xf32>
    %c0_30 = arith.constant 0 : index
    %c0_31 = arith.constant 0 : index
    %46 = vector.load %arg4[%c0_30, %c0_31] : memref<1x4xf32, #tpu.memory_space<vmem>>, vector<1x4xf32>
    %47 = vector.broadcast %46 : vector<1x4xf32> to vector<72x4xf32>
    %48 = arith.addf %45, %47 : vector<72x4xf32>
    %49 = arith.truncf %48 : vector<72x4xf32> to vector<72x4xbf16>
    %c0_32 = arith.constant 0 : index
    %c0_33 = arith.constant 0 : index
    %c0_34 = arith.constant 0 : index
    %c0_35 = arith.constant 0 : index
    %50 = vector.load %arg6[%c0_32, %c0_33, %c0_34, %c0_35] : memref<1x1x72x4xbf16, #tpu.memory_space<vmem>>, vector<1x1x72x4xbf16>
    %51 = vector.shape_cast %50 : vector<1x1x72x4xbf16> to vector<72x4xbf16>
    %52 = vector.shape_cast %49 : vector<72x4xbf16> to vector<1x1x72x4xbf16>
    tpu.vector_store %arg6[%c0_32, %c0_33, %c0_34, %c0_35], %52 {strides = array<i32>} : memref<1x1x72x4xbf16, #tpu.memory_space<vmem>>, vector<1x1x72x4xbf16>,
    %c0_36 = arith.constant 0 : index
    %c0_37 = arith.constant 0 : index
    %53 = vector.load %arg5[%c0_36, %c0_37] : memref<72x1xf32, #tpu.memory_space<vmem>>, vector<72x1xf32>
    %54 = vector.broadcast %53 : vector<72x1xf32> to vector<72x4xf32>
    %55 = arith.mulf %48, %54 : vector<72x4xf32>
    %cst_38 = arith.constant dense<0.000000e+00> : vector<4xf32>
    %56 = vector.multi_reduction <add>, %55, %cst_38 [0] : vector<72x4xf32> to vector<4xf32>
    %57 = vector.shape_cast %56 : vector<4xf32> to vector<1x4xf32>
    %58 = arith.mulf %55, %48 : vector<72x4xf32>
    %cst_39 = arith.constant dense<0.000000e+00> : vector<4xf32>
    %59 = vector.multi_reduction <add>, %58, %cst_39 [0] : vector<72x4xf32> to vector<4xf32>
    %60 = vector.shape_cast %59 : vector<4xf32> to vector<1x4xf32>
    %61 = tpu.concatenate %57, %60 in 0 : vector<1x4xf32>, vector<1x4xf32> -> vector<2x4xf32>
    %c0_40 = arith.constant 0 : index
    %c0_41 = arith.constant 0 : index
    %c0_42 = arith.constant 0 : index
    %c0_43 = arith.constant 0 : index
    %62 = vector.load %arg7[%c0_40, %c0_41, %c0_42, %c0_43] : memref<1x1x2x4xf32, #tpu.memory_space<vmem>>, vector<1x1x2x4xf32>
    %63 = vector.shape_cast %62 : vector<1x1x2x4xf32> to vector<2x4xf32>
    %64 = vector.shape_cast %61 : vector<2x4xf32> to vector<1x1x2x4xf32>
    tpu.vector_store %arg7[%c0_40, %c0_41, %c0_42, %c0_43], %64 {strides = array<i32>} : memref<1x1x2x4xf32, #tpu.memory_space<vmem>>, vector<1x1x2x4xf32>,
    return
  }
  func.func @transform_0(%arg0: i32, %arg1: i32) -> (i32, i32, i32, i32) {
    %c0_i32 = arith.constant 0 : i32
    %c0_i32_0 = arith.constant 0 : i32
    %c0_i32_1 = arith.constant 0 : i32
    return %arg0, %arg1, %c0_i32, %c0_i32_0 : i32, i32, i32, i32
  }
  func.func @transform_1(%arg0: i32, %arg1: i32) -> (i32, i32, i32) {
    %c0_i32 = arith.constant 0 : i32
    %c0_i32_0 = arith.constant 0 : i32
    %c0_i32_1 = arith.constant 0 : i32
    %c0_i32_2 = arith.constant 0 : i32
    return %c0_i32, %c0_i32_0, %c0_i32_1 : i32, i32, i32
  }
  func.func @transform_2(%arg0: i32, %arg1: i32) -> (i32, i32) {
    %c0_i32 = arith.constant 0 : i32
    %c0_i32_0 = arith.constant 0 : i32
    %c0_i32_1 = arith.constant 0 : i32
    return %c0_i32, %c0_i32_0 : i32, i32
  }
  func.func @transform_3(%arg0: i32, %arg1: i32) -> (i32, i32) {
    %c0_i32 = arith.constant 0 : i32
    %c0_i32_0 = arith.constant 0 : i32
    %c0_i32_1 = arith.constant 0 : i32
    return %c0_i32, %c0_i32_0 : i32, i32
  }
  func.func @transform_4(%arg0: i32, %arg1: i32) -> (i32, i32, i32, i32) {
    %c0_i32 = arith.constant 0 : i32
    %c0_i32_0 = arith.constant 0 : i32
    %c0_i32_1 = arith.constant 0 : i32
    return %arg0, %arg1, %c0_i32, %c0_i32_0 : i32, i32, i32, i32
  }
  func.func @transform_5(%arg0: i32, %arg1: i32) -> (i32, i32, i32, i32) {
    %c0_i32 = arith.constant 0 : i32
    %c0_i32_0 = arith.constant 0 : i32
    %c0_i32_1 = arith.constant 0 : i32
    return %arg0, %arg1, %c0_i32, %c0_i32_0 : i32, i32, i32, i32
  }
}

</mosaic_0001>

<llo_original>
// kernel: tile.8
$region0: #{tile.8}
  #allocation0 [shape = 's32[1]{0}', space=sflag, size = 0x4, scoped, tag = 'scoped memory for tile.8']
  %s0 = inlined_call_operand.vmem [shape: f32[4], index: 0, kind: input, shape index: {}]
  %s1 = inlined_call_operand.vmem [shape: f32[4,4], index: 1, kind: output, shape index: {}]
  // Predicated region
  $region2: #{tile.8} parent=0 // pred_check
    _
  $region3: #{tile.8} parent=0 // pred_check_branch
    %3 = sbr.rel (0) target = $region5
  $region4: #{tile.8} parent=0 // pred_region
    _
  $region5: #{tile.8} parent=0 // pred_fallthru
    _
  %v4 = vld [vmem:[%s0] ss:$0 sm:$0xff]
  %5 = vst [vmem:[%s1] sm:$0xf] %v4

// kernel: tile.9
$region0: #{tile.9}
  %s0 = inlined_call_operand.vmem [shape: f32[4,4], index: 0, kind: input, shape index: {}]
  %s1 = inlined_call_operand.vmem [shape: f32[1,16], index: 1, kind: output, shape index: {}]
  $region1: #{tile.9} parent=0
    #allocation0 [shape = 'u8[4096]{0}', space=vmem, size = 0x1000, scoped, tag = 'scoped mem for output reshape']
    #allocation1 [shape = 'u8[4096]{0}', space=vmem, size = 0x1000, scoped, tag = 'scoped mem for input reshape']
    %s3 = ssub.s32 16, 1
    %v4 = vld [vmem:[%s0] sm:%s3]
    %5 = vst [vmem:[#allocation1] sm:%s3] %v4
    %v6 = vld [vmem:[#allocation1] sm:$0x1]
    %vm7 = vcmask 31744
    %8 = vst.msk [vmem:[#allocation0] sm:$0x1] %vm7, %v6
    %s9 = scalar_lea.vmem [#allocation1], 3
    %v10 = vld [vmem:[%s9] sm:$0x1]
    %11 = vrot.lane.b32.xlu0 %v10, 12
    %v12 = vpop.permute.xlu0 %11
    %vm13 = vcmask 130144
    %14 = vst.msk [vmem:[#allocation0] sm:$0x1] %vm13, %v12
    %s15 = scalar_lea.vmem [#allocation1], 2
    %v16 = vld [vmem:[%s15] sm:$0x1]
    %17 = vrot.lane.b32.xlu0 %v16, 8
    %v18 = vpop.permute.xlu0 %17
    %vm19 = vcmask 97344
    %20 = vst.msk [vmem:[#allocation0] sm:$0x1] %vm19, %v18
    %s21 = scalar_lea.vmem [#allocation1], 1
    %v22 = vld [vmem:[%s21] sm:$0x1]
    %23 = vrot.lane.b32.xlu0 %v22, 4
    %v24 = vpop.permute.xlu0 %23
    %vm25 = vcmask 64544
    %26 = vst.msk [vmem:[#allocation0] sm:$0x1] %vm25, %v24
    %s28 = ssub.s32 2, 1
    %v29 = vld [vmem:[#allocation0] sm:%s28]
    %s31 = ssub.s32 2, 1
    %32 = vst [vmem:[%s1] sm:%s31] %v29

// kernel: up_block_forward.3
$region0: #{up_block_forward.3}
  #allocation0 [shape = 'u32[]', space=smem, size = 0x4, offset = 0x4, fixed_abs, tag = 'smem constant byte address 0x4 - core index']
  #allocation1 [shape = 'u32[72,128]{1,0:T(1,128)}', space=vmem, size = 0x9000, scoped, tag = 'internal scratch']
  %s0 = inlined_call_operand.vmem [shape: bf16[2,64,8], index: 0, kind: input, shape index: {}]
  %s1 = inlined_call_operand.vmem [shape: bf16[8,16], index: 1, kind: input, shape index: {}]
  %s2 = inlined_call_operand.vmem [shape: f32[1,16], index: 2, kind: input, shape index: {}]
  %s3 = inlined_call_operand.vmem [shape: bf16[2,64,16], index: 3, kind: output, shape index: {}]
  %s4 = sld [smem:[#allocation0]]
  $region45: #{up_block_forward.3} parent=0
    _
  %s6 = ssub.s32 1, %s4
  %s7 = scalar_select 0, %s6, %s4
  loop: start=0, step=1, limit=6
  $region2: #{up_block_forward.3} parent=0 // loop_pre_header
    _
  $region3: #{up_block_forward.3} parent=0 // loop_header
    %s9 = sphi 0, %s13
    %p10 = scmp.ge.s32.totalorder %s9, 6
    %s16 = sphi 0, %s28
    %s17 = sphi 0, %s24
    %s18 = sphi 0, %s16
    %s19 = sphi 0, %s17
    %s20 = sphi 0, %s18
    %s21 = sphi 0, %s19
    %s33 = sphi 0, %s35
    %s36 = sphi 0, %s33
    %s37 = sphi 0, %s36
    %s53 = sphi 0, %s37
    %s57 = sphi 0, %s57
    %s59 = sphi 0, %s57
    %s60 = sphi 0, %s59
    %s74 = sphi 0, %s60
    %s78 = sphi 0, %s78
    %s80 = sphi 0, %s78
    %s81 = sphi 0, %s80
    %s95 = sphi 0, %s81
    %s103 = sphi 0, %s105
    %s106 = sphi 0, %s103
    %s107 = sphi 0, %s106
    %s123 = sphi 0, %s107
  $region4: #{up_block_forward.3} parent=0 // loop_header_branch
    %12 = sbr.rel (%p10) target = $region8
  $region5: #{up_block_forward.3} parent=0 // loop_body
    %s14 = ssub.s32 %s9, 1
    %s15 = ssub.s32 %s9, 2
    %s22 = sadd.s32 1, %s17
    %p23 = scmp.ge.s32.totalorder %s22, 2
    %s24 = scalar_select %p23, 0, %s22
    %s25 = sadd.s32 1, %s16
    %s26 = scalar_select %p23, %s25, %s16
    %p27 = scmp.ge.s32.totalorder %s26, 2
    %s28 = scalar_select %p27, 0, %s26
    %s29 = ssub.s32 %s16, %s28
    %s30 = ssub.s32 %s17, %s24
    %s31 = sor.u32 %s29, %s30
    %p32 = scmp.eq.s32.totalorder %s31, 0
    %s34 = sadd.s32 %s33, 1
    %s35 = scalar_select %p32, %s33, %s34
    %p38 = pneg %p32
    %p39 = scmp.eq.s32.totalorder %s9, 3
    %p40 = por %p38, %p39
    %p41 = scmp.ne.s32.totalorder %s33, %s36
    %p42 = scmp.eq.s32.totalorder %s9, 0
    %p43 = por %p41, %p42
    %p44 = scmp.ne.s32.totalorder %s33, %s36
    %p45 = scmp.eq.s32.totalorder %s14, 3
    %p46 = por %p44, %p45
    %p47 = scmp.ne.s32.totalorder %s36, %s37
    %p48 = scmp.eq.s32.totalorder %s14, 0
    %p49 = por %p47, %p48
    %p50 = scmp.ne.s32.totalorder %s36, %s37
    %p51 = scmp.eq.s32.totalorder %s15, 3
    %p52 = por %p50, %p51
    %p54 = scmp.ne.s32.totalorder %s37, %s53
    %p55 = scmp.eq.s32.totalorder %s15, 0
    %p56 = por %p54, %p55
    %s58 = sadd.s32 %s57, 1
    %p61 = scmp.eq.s32.totalorder %s9, 3
    %p62 = scmp.ne.s32.totalorder %s57, %s59
    %p63 = scmp.eq.s32.totalorder %s9, 0
    %p64 = por %p62, %p63
    %p65 = scmp.ne.s32.totalorder %s57, %s59
    %p66 = scmp.eq.s32.totalorder %s14, 3
    %p67 = por %p65, %p66
    %p68 = scmp.ne.s32.totalorder %s59, %s60
    %p69 = scmp.eq.s32.totalorder %s14, 0
    %p70 = por %p68, %p69
    %p71 = scmp.ne.s32.totalorder %s59, %s60
    %p72 = scmp.eq.s32.totalorder %s15, 3
    %p73 = por %p71, %p72
    %p75 = scmp.ne.s32.totalorder %s60, %s74
    %p76 = scmp.eq.s32.totalorder %s15, 0
    %p77 = por %p75, %p76
    %s79 = sadd.s32 %s78, 1
    %p82 = scmp.eq.s32.totalorder %s9, 3
    %p83 = scmp.ne.s32.totalorder %s78, %s80
    %p84 = scmp.eq.s32.totalorder %s9, 0
    %p85 = por %p83, %p84
    %p86 = scmp.ne.s32.totalorder %s78, %s80
    %p87 = scmp.eq.s32.totalorder %s14, 3
    %p88 = por %p86, %p87
    %p89 = scmp.ne.s32.totalorder %s80, %s81
    %p90 = scmp.eq.s32.totalorder %s14, 0
    %p91 = por %p89, %p90
    %p92 = scmp.ne.s32.totalorder %s80, %s81
    %p93 = scmp.eq.s32.totalorder %s15, 3
    %p94 = por %p92, %p93
    %p96 = scmp.ne.s32.totalorder %s81, %s95
    %p97 = scmp.eq.s32.totalorder %s15, 0
    %p98 = por %p96, %p97
    %s99 = ssub.s32 %s16, %s28
    %s100 = ssub.s32 %s17, %s24
    %s101 = sor.u32 %s99, %s100
    %p102 = scmp.eq.s32.totalorder %s101, 0
    %s104 = sadd.s32 %s103, 1
    %s105 = scalar_select %p102, %s103, %s104
    %p108 = pneg %p102
    %p109 = scmp.eq.s32.totalorder %s9, 3
    %p110 = por %p108, %p109
    %p111 = scmp.ne.s32.totalorder %s103, %s106
    %p112 = scmp.eq.s32.totalorder %s9, 0
    %p113 = por %p111, %p112
    %p114 = scmp.ne.s32.totalorder %s103, %s106
    %p115 = scmp.eq.s32.totalorder %s14, 3
    %p116 = por %p114, %p115
    %p117 = scmp.ne.s32.totalorder %s106, %s107
    %p118 = scmp.eq.s32.totalorder %s14, 0
    %p119 = por %p117, %p118
    %p120 = scmp.ne.s32.totalorder %s106, %s107
    %p121 = scmp.eq.s32.totalorder %s15, 3
    %p122 = por %p120, %p121
    %p124 = scmp.ne.s32.totalorder %s107, %s123
    %p125 = scmp.eq.s32.totalorder %s15, 0
    %p126 = por %p124, %p125
    %p127 = scmp.le.s32.totalorder 1, %s9
    %p128 = scmp.lt.s32.totalorder %s9, 5
    %p129 = pnand %p127, %p128
    %p130 = pneg %p129
    // Predicated region
    $region9: #{up_block_forward.3} parent=5 // pred_check
      _
    $region10: #{up_block_forward.3} parent=5 // pred_check_branch
      %132 = sbr.rel (%p129) target = $region12
    $region11: #{up_block_forward.3} parent=5 // pred_region
      %s133 = ssub.s32 %s9, 1
      // Predicated region
      $region13: #{up_block_forward.3} parent=11 // pred_check
        %p134 = pneg %p70
      $region14: #{up_block_forward.3} parent=11 // pred_check_branch
        %136 = sbr.rel (%p134) target = $region16
      $region15: #{up_block_forward.3} parent=11 // pred_region
        _
      $region16: #{up_block_forward.3} parent=11 // pred_fallthru
        _
      // Predicated region
      $region17: #{up_block_forward.3} parent=11 // pred_check
        %p137 = pneg %p91
      $region18: #{up_block_forward.3} parent=11 // pred_check_branch
        %139 = sbr.rel (%p137) target = $region20
      $region19: #{up_block_forward.3} parent=11 // pred_region
        _
      $region20: #{up_block_forward.3} parent=11 // pred_fallthru
        _
    $region12: #{up_block_forward.3} parent=5 // pred_fallthru
      _
    %p140 = scmp.lt.s32.totalorder %s9, 4
    // Predicated region
    $region21: #{up_block_forward.3} parent=5 // pred_check
      %p141 = pneg %p140
    $region22: #{up_block_forward.3} parent=5 // pred_check_branch
      %143 = sbr.rel (%p141) target = $region24
    $region23: #{up_block_forward.3} parent=5 // pred_region
      // Predicated region
      $region25: #{up_block_forward.3} parent=23 // pred_check
        %p144 = pneg %p43
      $region26: #{up_block_forward.3} parent=23 // pred_check_branch
        %146 = sbr.rel (%p144) target = $region28
      $region27: #{up_block_forward.3} parent=23 // pred_region
        %s147 = smul.u32 4, %s17
        %p148 = scmp.lt.s32.totalorder %s16, 1
        %s149 = scalar_select %p148, %s16, 1
        %p150 = scmp.lt.s32.totalorder %s147, 7
        %s151 = scalar_select %p150, %s147, 7
        %s152 = smul.addr %s149, 8
        %s153 = sadd.s32 %s151, %s152
        %s154 = smul.addr %s153, 4
        %s155 = scalar_lea.vmem %s0, %s154
        %s156 = smul.u32 4, %s17
      $region28: #{up_block_forward.3} parent=23 // pred_fallthru
        _
    $region24: #{up_block_forward.3} parent=5 // pred_fallthru
      _
    %p157 = scmp.le.s32.totalorder 1, %s9
    %p158 = scmp.lt.s32.totalorder %s9, 5
    %p159 = pnand %p157, %p158
    %p160 = pneg %p159
    // Predicated region
    $region29: #{up_block_forward.3} parent=5 // pred_check
      _
    $region30: #{up_block_forward.3} parent=5 // pred_check_branch
      %162 = sbr.rel (%p159) target = $region32
    $region31: #{up_block_forward.3} parent=5 // pred_region
      %s163 = ssub.s32 %s9, 1
      %s164 = smul.u32 4, %s19
      %p165 = scmp.lt.s32.totalorder %s18, 1
      %s166 = scalar_select %p165, %s18, 1
      %p167 = scmp.lt.s32.totalorder %s164, 7
      %s168 = scalar_select %p167, %s164, 7
      %s169 = smul.addr %s166, 8
      %s170 = sadd.s32 %s168, %s169
      %s171 = smul.addr %s170, 4
      %s172 = scalar_lea.vmem %s0, %s171
      %p173 = pneg %p49
      %p174 = pneg %p46
      %p175 = pneg %p70
      %p176 = pneg %p67
      %p177 = pneg %p91
      %p178 = pneg %p88
      %p179 = pneg %p119
      %p180 = pneg %p116
      %s181 = smul.u32 4, %s19
      %p182 = scmp.lt.s32.totalorder %s18, 1
      %s183 = scalar_select %p182, %s18, 1
      %p184 = scmp.lt.s32.totalorder %s181, 7
      %s185 = scalar_select %p184, %s181, 7
      %s186 = smul.addr %s183, 8
      %s187 = sadd.s32 %s185, %s186
      %s188 = smul.addr %s187, 4
      %s189 = scalar_lea.vmem %s3, %s188
      %s190 = smul.u32 4, %s19
      %p191 = scmp.lt.s32.totalorder %s18, 1
      %s192 = scalar_select %p191, %s18, 1
      %p193 = scmp.lt.s32.totalorder %s190, 7
      %s194 = scalar_select %p193, %s190, 7
      %s195 = smul.addr %s192, 8
      %s196 = sadd.s32 %s194, %s195
      %s197 = smul.addr %s196, 4
      %s198 = scalar_lea.vmem %s0, %s197
      %s199 = smul.u32 4, %s19
      %s200 = smul.u32 4, %s19
      %p201 = scmp.lt.s32.totalorder %s18, 1
      %s202 = scalar_select %p201, %s18, 1
      %p203 = scmp.lt.s32.totalorder %s200, 7
      %s204 = scalar_select %p203, %s200, 7
      %s205 = smul.addr %s202, 8
      %s206 = sadd.s32 %s204, %s205
      %s207 = smul.addr %s206, 4
      %s208 = scalar_lea.vmem %s3, %s207
      %s209 = smul.u32 4, %s19
      %v211 = vld [vmem:[%s198] sm:$0xf]
      %v212 = vld [vmem:[%s198 + $0x4] sm:$0xf]
      %v213 = vld [vmem:[%s198 + $0x8] sm:$0xf]
      %v214 = vld [vmem:[%s198 + $0xc] sm:$0xf]
      %v215 = vld [vmem:[%s1] sm:$0xf]
      %v216 = vld [vmem:[%s2] sm:$0x1]
      %v218 = vperm.slane %v216, 0
      %v224 = vunpack.c.l.b16 %v211
      %v225 = vunpack.c.l.b16 %v212
      %v226 = vunpack.c.l.b16 %v213
      %v227 = vunpack.c.l.b16 %v214
      %v228 = vpack.c.b16 %v225, %v224
      %v229 = vpack.c.b16 %v227, %v226
      %vm230 = vcmask 64512
      %v232 = vsel %vm230, %v228, 0
      %v235 = vsel %vm230, %v229, 0
      %vm237 = vcmask 1043456
      %v239 = vsel %vm237, %v215, 0
      %241 = vmatpush.bf16.msra.mxu0 0
      %242 = vmatpush.bf16.msra.mxu0 0
      %243 = vmatpush.bf16.msra.mxu0 0
      %244 = vmatpush.bf16.msra.mxu0 0
      %245 = vmatpush.bf16.msra.mxu0 0
      %246 = vmatpush.bf16.msra.mxu0 0
      %247 = vmatpush.bf16.msra.mxu0 0
      %248 = vmatpush.bf16.msra.mxu0 %v239
      %249 = vmatmul.bf16.gmra.mxu0 %v232
      %v250 = vpop.f32.mrf.mxu0
      %v251 = vadd.f32 %v218, %v250
      %v252 = vpop.f32.mrf.mxu0
      %v253 = vadd.f32 %v218, %v252
      %254 = vmatmul.bf16.gmra.mxu0 %v235
      %v255 = vpop.f32.mrf.mxu0
      %v256 = vadd.f32 %v218, %v255
      %v257 = vpop.f32.mrf.mxu0
      %v258 = vadd.f32 %v218, %v257
      %259 = vdwg.mxu0
      %v260 = vpack.c.bf16 %v251, %v251
      %v261 = vpack.c.bf16 %v253, %v253
      %v262 = vpack.c.bf16 %v256, %v256
      %v263 = vpack.c.bf16 %v258, %v258
      %vm264 = vcmask 125952
      %265 = vst.msk [vmem:[%s208] sm:$0xf] %vm264, %v260
      %266 = vst.msk [vmem:[%s208 + $0x4] sm:$0xf] %vm264, %v261
      %267 = vst.msk [vmem:[%s208 + $0x8] sm:$0xf] %vm264, %v262
      %268 = vst.msk [vmem:[%s208 + $0xc] sm:$0xf] %vm264, %v263
      %s269 = smul.u32 4, %s19
      %p270 = scmp.lt.s32.totalorder %s18, 1
      %s271 = scalar_select %p270, %s18, 1
      %p272 = scmp.lt.s32.totalorder %s269, 7
      %s273 = scalar_select %p272, %s269, 7
      %s274 = smul.addr %s271, 8
      %s275 = sadd.s32 %s273, %s274
      %s276 = smul.addr %s275, 4
      %s277 = scalar_lea.vmem %s3, %s276
      // Predicated region
      $region33: #{up_block_forward.3} parent=31 // pred_check
        %p278 = pneg %p116
      $region34: #{up_block_forward.3} parent=31 // pred_check_branch
        %280 = sbr.rel (%p278) target = $region36
      $region35: #{up_block_forward.3} parent=31 // pred_region
        %s281 = smul.u32 4, %s19
      $region36: #{up_block_forward.3} parent=31 // pred_fallthru
        _
    $region32: #{up_block_forward.3} parent=5 // pred_fallthru
      _
    %p282 = scmp.le.s32.totalorder 2, %s9
    // Predicated region
    $region37: #{up_block_forward.3} parent=5 // pred_check
      %p283 = pneg %p282
    $region38: #{up_block_forward.3} parent=5 // pred_check_branch
      %285 = sbr.rel (%p283) target = $region40
    $region39: #{up_block_forward.3} parent=5 // pred_region
      %s286 = ssub.s32 %s9, 2
      // Predicated region
      $region41: #{up_block_forward.3} parent=39 // pred_check
        %p287 = pneg %p122
      $region42: #{up_block_forward.3} parent=39 // pred_check_branch
        %289 = sbr.rel (%p287) target = $region44
      $region43: #{up_block_forward.3} parent=39 // pred_region
        %s290 = smul.u32 4, %s21
        %p291 = scmp.lt.s32.totalorder %s20, 1
        %s292 = scalar_select %p291, %s20, 1
        %p293 = scmp.lt.s32.totalorder %s290, 7
        %s294 = scalar_select %p293, %s290, 7
        %s295 = smul.addr %s292, 8
        %s296 = sadd.s32 %s294, %s295
        %s297 = smul.addr %s296, 4
        %s298 = scalar_lea.vmem %s3, %s297
      $region44: #{up_block_forward.3} parent=39 // pred_fallthru
        _
    $region40: #{up_block_forward.3} parent=5 // pred_fallthru
      _
  $region6: #{up_block_forward.3} parent=0 // loop_footer
    %s13 = sadd.s32 1, %s9
  $region7: #{up_block_forward.3} parent=0 // loop_footer_branch
    %8 = sbr.rel target = $region3
  $region8: #{up_block_forward.3} parent=0 // loop_exit
    _

// kernel: up_block_forward.5
$region0: #{up_block_forward.5}
  #allocation0 [shape = 'u32[]', space=smem, size = 0x4, offset = 0x4, fixed_abs, tag = 'smem constant byte address 0x4 - core index']
  #allocation1 [shape = 'u32[72,128]{1,0:T(1,128)}', space=vmem, size = 0x9000, scoped, tag = 'internal scratch']
  %s0 = inlined_call_operand.vmem [shape: bf16[2,4,116,4], index: 0, kind: input, shape index: {}]
  %s1 = inlined_call_operand.vmem [shape: bf16[9,4,4], index: 1, kind: input, shape index: {}]
  %s2 = inlined_call_operand.vmem [shape: f32[1,4], index: 2, kind: input, shape index: {}]
  %s3 = inlined_call_operand.vmem [shape: f32[72,1], index: 3, kind: input, shape index: {}]
  %s4 = inlined_call_operand.vmem [shape: bf16[2,4,72,4], index: 4, kind: output, shape index: {0}]
  %s5 = inlined_call_operand.vmem [shape: f32[2,4,2,4], index: 5, kind: output, shape index: {1}]
  %6 = xla_tuple %s4, %s5
  %s7 = sld [smem:[#allocation0]]
  $region57: #{up_block_forward.5} parent=0
    _
  %s9 = ssub.s32 1, %s7
  %s10 = scalar_select 0, %s9, %s7
  loop: start=0, step=1, limit=10
  $region2: #{up_block_forward.5} parent=0 // loop_pre_header
    _
  $region3: #{up_block_forward.5} parent=0 // loop_header
    %s12 = sphi 0, %s16
    %p13 = scmp.ge.s32.totalorder %s12, 10
    %s19 = sphi 0, %s31
    %s20 = sphi 0, %s27
    %s21 = sphi 0, %s19
    %s22 = sphi 0, %s20
    %s23 = sphi 0, %s21
    %s24 = sphi 0, %s22
    %s36 = sphi 0, %s38
    %s39 = sphi 0, %s36
    %s40 = sphi 0, %s39
    %s56 = sphi 0, %s40
    %s60 = sphi 0, %s60
    %s62 = sphi 0, %s60
    %s63 = sphi 0, %s62
    %s77 = sphi 0, %s63
    %s81 = sphi 0, %s81
    %s83 = sphi 0, %s81
    %s84 = sphi 0, %s83
    %s98 = sphi 0, %s84
    %s102 = sphi 0, %s102
    %s104 = sphi 0, %s102
    %s105 = sphi 0, %s104
    %s119 = sphi 0, %s105
    %s127 = sphi 0, %s129
    %s130 = sphi 0, %s127
    %s131 = sphi 0, %s130
    %s147 = sphi 0, %s131
    %s155 = sphi 0, %s157
    %s158 = sphi 0, %s155
    %s159 = sphi 0, %s158
    %s175 = sphi 0, %s159
  $region4: #{up_block_forward.5} parent=0 // loop_header_branch
    %15 = sbr.rel (%p13) target = $region8
  $region5: #{up_block_forward.5} parent=0 // loop_body
    %s17 = ssub.s32 %s12, 1
    %s18 = ssub.s32 %s12, 2
    %s25 = sadd.s32 1, %s20
    %p26 = scmp.ge.s32.totalorder %s25, 4
    %s27 = scalar_select %p26, 0, %s25
    %s28 = sadd.s32 1, %s19
    %s29 = scalar_select %p26, %s28, %s19
    %p30 = scmp.ge.s32.totalorder %s29, 2
    %s31 = scalar_select %p30, 0, %s29
    %s32 = ssub.s32 %s19, %s31
    %s33 = ssub.s32 %s20, %s27
    %s34 = sor.u32 %s32, %s33
    %p35 = scmp.eq.s32.totalorder %s34, 0
    %s37 = sadd.s32 %s36, 1
    %s38 = scalar_select %p35, %s36, %s37
    %p41 = pneg %p35
    %p42 = scmp.eq.s32.totalorder %s12, 7
    %p43 = por %p41, %p42
    %p44 = scmp.ne.s32.totalorder %s36, %s39
    %p45 = scmp.eq.s32.totalorder %s12, 0
    %p46 = por %p44, %p45
    %p47 = scmp.ne.s32.totalorder %s36, %s39
    %p48 = scmp.eq.s32.totalorder %s17, 7
    %p49 = por %p47, %p48
    %p50 = scmp.ne.s32.totalorder %s39, %s40
    %p51 = scmp.eq.s32.totalorder %s17, 0
    %p52 = por %p50, %p51
    %p53 = scmp.ne.s32.totalorder %s39, %s40
    %p54 = scmp.eq.s32.totalorder %s18, 7
    %p55 = por %p53, %p54
    %p57 = scmp.ne.s32.totalorder %s40, %s56
    %p58 = scmp.eq.s32.totalorder %s18, 0
    %p59 = por %p57, %p58
    %s61 = sadd.s32 %s60, 1
    %p64 = scmp.eq.s32.totalorder %s12, 7
    %p65 = scmp.ne.s32.totalorder %s60, %s62
    %p66 = scmp.eq.s32.totalorder %s12, 0
    %p67 = por %p65, %p66
    %p68 = scmp.ne.s32.totalorder %s60, %s62
    %p69 = scmp.eq.s32.totalorder %s17, 7
    %p70 = por %p68, %p69
    %p71 = scmp.ne.s32.totalorder %s62, %s63
    %p72 = scmp.eq.s32.totalorder %s17, 0
    %p73 = por %p71, %p72
    %p74 = scmp.ne.s32.totalorder %s62, %s63
    %p75 = scmp.eq.s32.totalorder %s18, 7
    %p76 = por %p74, %p75
    %p78 = scmp.ne.s32.totalorder %s63, %s77
    %p79 = scmp.eq.s32.totalorder %s18, 0
    %p80 = por %p78, %p79
    %s82 = sadd.s32 %s81, 1
    %p85 = scmp.eq.s32.totalorder %s12, 7
    %p86 = scmp.ne.s32.totalorder %s81, %s83
    %p87 = scmp.eq.s32.totalorder %s12, 0
    %p88 = por %p86, %p87
    %p89 = scmp.ne.s32.totalorder %s81, %s83
    %p90 = scmp.eq.s32.totalorder %s17, 7
    %p91 = por %p89, %p90
    %p92 = scmp.ne.s32.totalorder %s83, %s84
    %p93 = scmp.eq.s32.totalorder %s17, 0
    %p94 = por %p92, %p93
    %p95 = scmp.ne.s32.totalorder %s83, %s84
    %p96 = scmp.eq.s32.totalorder %s18, 7
    %p97 = por %p95, %p96
    %p99 = scmp.ne.s32.totalorder %s84, %s98
    %p100 = scmp.eq.s32.totalorder %s18, 0
    %p101 = por %p99, %p100
    %s103 = sadd.s32 %s102, 1
    %p106 = scmp.eq.s32.totalorder %s12, 7
    %p107 = scmp.ne.s32.totalorder %s102, %s104
    %p108 = scmp.eq.s32.totalorder %s12, 0
    %p109 = por %p107, %p108
    %p110 = scmp.ne.s32.totalorder %s102, %s104
    %p111 = scmp.eq.s32.totalorder %s17, 7
    %p112 = por %p110, %p111
    %p113 = scmp.ne.s32.totalorder %s104, %s105
    %p114 = scmp.eq.s32.totalorder %s17, 0
    %p115 = por %p113, %p114
    %p116 = scmp.ne.s32.totalorder %s104, %s105
    %p117 = scmp.eq.s32.totalorder %s18, 7
    %p118 = por %p116, %p117
    %p120 = scmp.ne.s32.totalorder %s105, %s119
    %p121 = scmp.eq.s32.totalorder %s18, 0
    %p122 = por %p120, %p121
    %s123 = ssub.s32 %s19, %s31
    %s124 = ssub.s32 %s20, %s27
    %s125 = sor.u32 %s123, %s124
    %p126 = scmp.eq.s32.totalorder %s125, 0
    %s128 = sadd.s32 %s127, 1
    %s129 = scalar_select %p126, %s127, %s128
    %p132 = pneg %p126
    %p133 = scmp.eq.s32.totalorder %s12, 7
    %p134 = por %p132, %p133
    %p135 = scmp.ne.s32.totalorder %s127, %s130
    %p136 = scmp.eq.s32.totalorder %s12, 0
    %p137 = por %p135, %p136
    %p138 = scmp.ne.s32.totalorder %s127, %s130
    %p139 = scmp.eq.s32.totalorder %s17, 7
    %p140 = por %p138, %p139
    %p141 = scmp.ne.s32.totalorder %s130, %s131
    %p142 = scmp.eq.s32.totalorder %s17, 0
    %p143 = por %p141, %p142
    %p144 = scmp.ne.s32.totalorder %s130, %s131
    %p145 = scmp.eq.s32.totalorder %s18, 7
    %p146 = por %p144, %p145
    %p148 = scmp.ne.s32.totalorder %s131, %s147
    %p149 = scmp.eq.s32.totalorder %s18, 0
    %p150 = por %p148, %p149
    %s151 = ssub.s32 %s19, %s31
    %s152 = ssub.s32 %s20, %s27
    %s153 = sor.u32 %s151, %s152
    %p154 = scmp.eq.s32.totalorder %s153, 0
    %s156 = sadd.s32 %s155, 1
    %s157 = scalar_select %p154, %s155, %s156
    %p160 = pneg %p154
    %p161 = scmp.eq.s32.totalorder %s12, 7
    %p162 = por %p160, %p161
    %p163 = scmp.ne.s32.totalorder %s155, %s158
    %p164 = scmp.eq.s32.totalorder %s12, 0
    %p165 = por %p163, %p164
    %p166 = scmp.ne.s32.totalorder %s155, %s158
    %p167 = scmp.eq.s32.totalorder %s17, 7
    %p168 = por %p166, %p167
    %p169 = scmp.ne.s32.totalorder %s158, %s159
    %p170 = scmp.eq.s32.totalorder %s17, 0
    %p171 = por %p169, %p170
    %p172 = scmp.ne.s32.totalorder %s158, %s159
    %p173 = scmp.eq.s32.totalorder %s18, 7
    %p174 = por %p172, %p173
    %p176 = scmp.ne.s32.totalorder %s159, %s175
    %p177 = scmp.eq.s32.totalorder %s18, 0
    %p178 = por %p176, %p177
    %p179 = scmp.le.s32.totalorder 1, %s12
    %p180 = scmp.lt.s32.totalorder %s12, 9
    %p181 = pnand %p179, %p180
    %p182 = pneg %p181
    // Predicated region
    $region9: #{up_block_forward.5} parent=5 // pred_check
      _
    $region10: #{up_block_forward.5} parent=5 // pred_check_branch
      %184 = sbr.rel (%p181) target = $region12
    $region11: #{up_block_forward.5} parent=5 // pred_region
      %s185 = ssub.s32 %s12, 1
      // Predicated region
      $region13: #{up_block_forward.5} parent=11 // pred_check
        %p186 = pneg %p73
      $region14: #{up_block_forward.5} parent=11 // pred_check_branch
        %188 = sbr.rel (%p186) target = $region16
      $region15: #{up_block_forward.5} parent=11 // pred_region
        _
      $region16: #{up_block_forward.5} parent=11 // pred_fallthru
        _
      // Predicated region
      $region17: #{up_block_forward.5} parent=11 // pred_check
        %p189 = pneg %p94
      $region18: #{up_block_forward.5} parent=11 // pred_check_branch
        %191 = sbr.rel (%p189) target = $region20
      $region19: #{up_block_forward.5} parent=11 // pred_region
        _
      $region20: #{up_block_forward.5} parent=11 // pred_fallthru
        _
      // Predicated region
      $region21: #{up_block_forward.5} parent=11 // pred_check
        %p192 = pneg %p115
      $region22: #{up_block_forward.5} parent=11 // pred_check_branch
        %194 = sbr.rel (%p192) target = $region24
      $region23: #{up_block_forward.5} parent=11 // pred_region
        _
      $region24: #{up_block_forward.5} parent=11 // pred_fallthru
        _
    $region12: #{up_block_forward.5} parent=5 // pred_fallthru
      _
    %p195 = scmp.lt.s32.totalorder %s12, 8
    // Predicated region
    $region25: #{up_block_forward.5} parent=5 // pred_check
      %p196 = pneg %p195
    $region26: #{up_block_forward.5} parent=5 // pred_check_branch
      %198 = sbr.rel (%p196) target = $region28
    $region27: #{up_block_forward.5} parent=5 // pred_region
      // Predicated region
      $region29: #{up_block_forward.5} parent=27 // pred_check
        %p199 = pneg %p46
      $region30: #{up_block_forward.5} parent=27 // pred_check_branch
        %201 = sbr.rel (%p199) target = $region32
      $region31: #{up_block_forward.5} parent=27 // pred_region
        %p202 = scmp.lt.s32.totalorder %s19, 1
        %s203 = scalar_select %p202, %s19, 1
        %p204 = scmp.lt.s32.totalorder %s20, 3
        %s205 = scalar_select %p204, %s20, 3
        %s206 = smul.addr %s205, 15
        %s207 = smul.addr %s203, 60
        %s208 = sadd.s32 %s206, %s207
        %s209 = smul.addr %s208, 4
        %s210 = scalar_lea.vmem %s0, %s209
      $region32: #{up_block_forward.5} parent=27 // pred_fallthru
        _
    $region28: #{up_block_forward.5} parent=5 // pred_fallthru
      _
    %p211 = scmp.le.s32.totalorder 1, %s12
    %p212 = scmp.lt.s32.totalorder %s12, 9
    %p213 = pnand %p211, %p212
    %p214 = pneg %p213
    // Predicated region
    $region33: #{up_block_forward.5} parent=5 // pred_check
      _
    $region34: #{up_block_forward.5} parent=5 // pred_check_branch
      %216 = sbr.rel (%p213) target = $region36
    $region35: #{up_block_forward.5} parent=5 // pred_region
      %s217 = ssub.s32 %s12, 1
      %p218 = scmp.lt.s32.totalorder %s21, 1
      %s219 = scalar_select %p218, %s21, 1
      %p220 = scmp.lt.s32.totalorder %s22, 3
      %s221 = scalar_select %p220, %s22, 3
      %s222 = smul.addr %s221, 15
      %s223 = smul.addr %s219, 60
      %s224 = sadd.s32 %s222, %s223
      %s225 = smul.addr %s224, 4
      %s226 = scalar_lea.vmem %s0, %s225
      %p227 = pneg %p52
      %p228 = pneg %p49
      %p229 = pneg %p73
      %p230 = pneg %p70
      %p231 = pneg %p94
      %p232 = pneg %p91
      %p233 = pneg %p115
      %p234 = pneg %p112
      %p235 = pneg %p143
      %p236 = pneg %p140
      %p237 = scmp.lt.s32.totalorder %s21, 1
      %s238 = scalar_select %p237, %s21, 1
      %p239 = scmp.lt.s32.totalorder %s22, 3
      %s240 = scalar_select %p239, %s22, 3
      %s241 = smul.addr %s240, 9
      %s242 = smul.addr %s238, 36
      %s243 = sadd.s32 %s241, %s242
      %s244 = smul.addr %s243, 4
      %s245 = scalar_lea.vmem %s4, %s244
      %p246 = pneg %p171
      %p247 = pneg %p168
      %p248 = scmp.lt.s32.totalorder %s21, 1
      %s249 = scalar_select %p248, %s21, 1
      %p250 = scmp.lt.s32.totalorder %s22, 3
      %s251 = scalar_select %p250, %s22, 3
      %s252 = smul.addr %s249, 4
      %s253 = sadd.s32 %s251, %s252
      %s254 = smul.addr %s253, 2
      %s255 = scalar_lea.vmem %s5, %s254
      %p256 = scmp.lt.s32.totalorder %s21, 1
      %s257 = scalar_select %p256, %s21, 1
      %p258 = scmp.lt.s32.totalorder %s22, 3
      %s259 = scalar_select %p258, %s22, 3
      %s260 = smul.addr %s259, 15
      %s261 = smul.addr %s257, 60
      %s262 = sadd.s32 %s260, %s261
      %s263 = smul.addr %s262, 4
      %s264 = scalar_lea.vmem %s0, %s263
      %p265 = scmp.lt.s32.totalorder %s21, 1
      %s266 = scalar_select %p265, %s21, 1
      %p267 = scmp.lt.s32.totalorder %s22, 3
      %s268 = scalar_select %p267, %s22, 3
      %s269 = smul.addr %s268, 9
      %s270 = smul.addr %s266, 36
      %s271 = sadd.s32 %s269, %s270
      %s272 = smul.addr %s271, 4
      %s273 = scalar_lea.vmem %s4, %s272
      %p274 = scmp.lt.s32.totalorder %s21, 1
      %s275 = scalar_select %p274, %s21, 1
      %p276 = scmp.lt.s32.totalorder %s22, 3
      %s277 = scalar_select %p276, %s22, 3
      %s278 = smul.addr %s275, 4
      %s279 = sadd.s32 %s277, %s278
      %s280 = smul.addr %s279, 2
      %s281 = scalar_lea.vmem %s5, %s280
      %v283 = vld [vmem:[%s264] sm:$0xf]
      %v284 = vld [vmem:[%s264 + $0x4] sm:$0xf]
      %v285 = vld [vmem:[%s264 + $0x8] sm:$0xf]
      %v286 = vld [vmem:[%s264 + $0xc] sm:$0xf]
      %v287 = vld [vmem:[%s264 + $0x10] sm:$0xf]
      %v288 = vld [vmem:[%s264 + $0x14] sm:$0xf]
      %v289 = vld [vmem:[%s264 + $0x18] sm:$0xf]
      %v290 = vld [vmem:[%s264 + $0x1c] sm:$0xf]
      %v291 = vld [vmem:[%s264 + $0x20] sm:$0xf]
      %v292 = vld [vmem:[%s264 + $0x24] sm:$0xf]
      %v293 = vld [vmem:[%s264 + $0x28] sm:$0xf]
      %v294 = vld [vmem:[%s264 + $0x2c] sm:$0xf]
      %v295 = vld [vmem:[%s264 + $0x30] sm:$0xf]
      %v296 = vld [vmem:[%s264 + $0x34] sm:$0xf]
      %v297 = vld [vmem:[%s1] sm:$0x3]
      %s298 = scalar_lea.vmem %s1, 2
      %v299 = vld [vmem:[%s298] sm:$0x3]
      %v310 = vunpack.c.l.b16 %v283
      %v311 = vunpack.c.l.b16 %v284
      %v312 = vunpack.c.l.b16 %v285
      %v313 = vunpack.c.l.b16 %v286
      %v314 = vunpack.c.l.b16 %v287
      %v315 = vunpack.c.l.b16 %v288
      %v316 = vunpack.c.l.b16 %v289
      %v317 = vunpack.c.l.b16 %v290
      %v318 = vunpack.c.l.b16 %v291
      %v319 = vunpack.c.l.b16 %v292
      %v320 = vpack.c.b16 %v311, %v310
      %v321 = vpack.c.b16 %v313, %v312
      %v322 = vpack.c.b16 %v315, %v314
      %v323 = vpack.c.b16 %v317, %v316
      %v324 = vpack.c.b16 %v319, %v318
      %vm325 = vsmask.f32 7424
      %v327 = vshrl.u32 %v320, 16
      %v329 = vshll.u32 %v320, 16
      %v331 = vrot.slane %v329, 1
      %v332 = vor.u32 %v327, %v331
      %v334 = vshll.u32 %v321, 16
      %v336 = vrot.slane %v334, 1
      %v337 = vsel %vm325, %v332, %v336
      %v338 = vshrl.u32 %v321, 16
      %v340 = vor.u32 %v338, %v336
      %v342 = vshll.u32 %v322, 16
      %v344 = vrot.slane %v342, 1
      %v345 = vsel %vm325, %v340, %v344
      %v346 = vshrl.u32 %v322, 16
      %v348 = vor.u32 %v346, %v344
      %v350 = vshll.u32 %v323, 16
      %v352 = vrot.slane %v350, 1
      %v353 = vsel %vm325, %v348, %v352
      %v354 = vshrl.u32 %v323, 16
      %v356 = vor.u32 %v354, %v352
      %v358 = vshll.u32 %v324, 16
      %v360 = vrot.slane %v358, 1
      %v361 = vsel %vm325, %v356, %v360
      %v362 = vshrl.u32 %v324, 16
      %v364 = vor.u32 %v362, %v360
      %vm365 = vcmask 31744
      %v367 = vsel %vm365, %v337, 0
      %v370 = vsel %vm365, %v345, 0
      %v373 = vsel %vm365, %v353, 0
      %v376 = vsel %vm365, %v361, 0
      %v379 = vsel %vm365, %v364, 0
      %vm381 = vcmask 1041408
      %v383 = vsel %vm381, %v299, 0
      %385 = vmatpush.bf16.msra.mxu0 0
      %386 = vmatpush.bf16.msra.mxu0 0
      %387 = vmatpush.bf16.msra.mxu0 0
      %388 = vmatpush.bf16.msra.mxu0 0
      %389 = vmatpush.bf16.msra.mxu0 0
      %390 = vmatpush.bf16.msra.mxu0 0
      %391 = vmatpush.bf16.msra.mxu0 0
      %392 = vmatpush.bf16.msra.mxu0 %v383
      %393 = vmatmul.bf16.gmra.mxu0 %v367
      %v394 = vpop.f32.mrf.mxu0
      %v395 = vadd.f32 0.0, %v394
      %v396 = vpop.f32.mrf.mxu0
      %v397 = vadd.f32 0.0, %v396
      %398 = vmatmul.bf16.gmra.mxu0 %v370
      %v399 = vpop.f32.mrf.mxu0
      %v400 = vadd.f32 0.0, %v399
      %v401 = vpop.f32.mrf.mxu0
      %v402 = vadd.f32 0.0, %v401
      %403 = vmatmul.bf16.gmra.mxu0 %v373
      %v404 = vpop.f32.mrf.mxu0
      %v405 = vadd.f32 0.0, %v404
      %v406 = vpop.f32.mrf.mxu0
      %v407 = vadd.f32 0.0, %v406
      %408 = vmatmul.bf16.gmra.mxu0 %v376
      %v409 = vpop.f32.mrf.mxu0
      %v410 = vadd.f32 0.0, %v409
      %v411 = vpop.f32.mrf.mxu0
      %v412 = vadd.f32 0.0, %v411
      %413 = vmatmul.bf16.gmra.mxu0 %v379
      %v414 = vpop.f32.mrf.mxu0
      %v415 = vadd.f32 0.0, %v414
      %v416 = vpop.f32.mrf.mxu0
      %417 = vdwg.mxu0
      %v418 = vpack.c.b16 %v318, %v318
      %v419 = vsel %vm365, %v320, 0
      %v421 = vsel %vm365, %v321, 0
      %v423 = vsel %vm365, %v322, 0
      %v425 = vsel %vm365, %v323, 0
      %v428 = vsel %vm365, %v418, 0
      %v431 = vsel %vm381, %v297, 0
      %433 = vmatpush.bf16.msra.mxu0 0
      %434 = vmatpush.bf16.msra.mxu0 0
      %435 = vmatpush.bf16.msra.mxu0 0
      %436 = vmatpush.bf16.msra.mxu0 0
      %437 = vmatpush.bf16.msra.mxu0 0
      %438 = vmatpush.bf16.msra.mxu0 0
      %439 = vmatpush.bf16.msra.mxu0 0
      %440 = vmatpush.bf16.msra.mxu0 %v431
      %441 = vmatmul.bf16.gmra.mxu0 %v419
      %v442 = vpop.f32.mrf.mxu0
      %v443 = vadd.f32 %v395, %v442
      %v444 = vpop.f32.mrf.mxu0
      %v445 = vadd.f32 %v397, %v444
      %446 = vmatmul.bf16.gmra.mxu0 %v421
      %v447 = vpop.f32.mrf.mxu0
      %v448 = vadd.f32 %v400, %v447
      %v449 = vpop.f32.mrf.mxu0
      %v450 = vadd.f32 %v402, %v449
      %451 = vmatmul.bf16.gmra.mxu0 %v423
      %v452 = vpop.f32.mrf.mxu0
      %v453 = vadd.f32 %v405, %v452
      %v454 = vpop.f32.mrf.mxu0
      %v455 = vadd.f32 %v407, %v454
      %456 = vmatmul.bf16.gmra.mxu0 %v425
      %v457 = vpop.f32.mrf.mxu0
      %v458 = vadd.f32 %v410, %v457
      %v459 = vpop.f32.mrf.mxu0
      %v460 = vadd.f32 %v412, %v459
      %461 = vmatmul.bf16.gmra.mxu0 %v428
      %v462 = vpop.f32.mrf.mxu0
      %v463 = vadd.f32 %v415, %v462
      %v464 = vpop.f32.mrf.mxu0
      %465 = vdwg.mxu0
      %s466 = scalar_lea.vmem %s1, 4
      %v467 = vld [vmem:[%s466] sm:$0x3]
      %vm468 = vcmask 1046528
      %v469 = vrot.slane %v320, 1
      %v470 = vrot.slane %v321, 1
      %v471 = vsel %vm468, %v469, %v470
      %v472 = vrot.slane %v322, 1
      %v473 = vsel %vm468, %v470, %v472
      %v474 = vrot.slane %v323, 1
      %v475 = vsel %vm468, %v472, %v474
      %v476 = vrot.slane %v324, 1
      %v477 = vsel %vm468, %v474, %v476
      %v479 = vsel %vm365, %v471, 0
      %v482 = vsel %vm365, %v473, 0
      %v485 = vsel %vm365, %v475, 0
      %v488 = vsel %vm365, %v477, 0
      %v491 = vsel %vm365, %v476, 0
      %v494 = vsel %vm381, %v467, 0
      %496 = vmatpush.bf16.msra.mxu0 0
      %497 = vmatpush.bf16.msra.mxu0 0
      %498 = vmatpush.bf16.msra.mxu0 0
      %499 = vmatpush.bf16.msra.mxu0 0
      %500 = vmatpush.bf16.msra.mxu0 0
      %501 = vmatpush.bf16.msra.mxu0 0
      %502 = vmatpush.bf16.msra.mxu0 0
      %503 = vmatpush.bf16.msra.mxu0 %v494
      %504 = vmatmul.bf16.gmra.mxu0 %v479
      %v505 = vpop.f32.mrf.mxu0
      %v506 = vadd.f32 0.0, %v505
      %v507 = vpop.f32.mrf.mxu0
      %v508 = vadd.f32 0.0, %v507
      %509 = vmatmul.bf16.gmra.mxu0 %v482
      %v510 = vpop.f32.mrf.mxu0
      %v511 = vadd.f32 0.0, %v510
      %v512 = vpop.f32.mrf.mxu0
      %v513 = vadd.f32 0.0, %v512
      %514 = vmatmul.bf16.gmra.mxu0 %v485
      %v515 = vpop.f32.mrf.mxu0
      %v516 = vadd.f32 0.0, %v515
      %v517 = vpop.f32.mrf.mxu0
      %v518 = vadd.f32 0.0, %v517
      %519 = vmatmul.bf16.gmra.mxu0 %v488
      %v520 = vpop.f32.mrf.mxu0
      %v521 = vadd.f32 0.0, %v520
      %v522 = vpop.f32.mrf.mxu0
      %v523 = vadd.f32 0.0, %v522
      %524 = vmatmul.bf16.gmra.mxu0 %v491
      %v525 = vpop.f32.mrf.mxu0
      %v526 = vadd.f32 0.0, %v525
      %v527 = vpop.f32.mrf.mxu0
      %528 = vdwg.mxu0
      %v529 = vadd.f32 %v443, %v506
      %v530 = vadd.f32 %v445, %v508
      %v531 = vadd.f32 %v448, %v511
      %v532 = vadd.f32 %v450, %v513
      %v533 = vadd.f32 %v453, %v516
      %v534 = vadd.f32 %v455, %v518
      %v535 = vadd.f32 %v458, %v521
      %v536 = vadd.f32 %v460, %v523
      %v537 = vadd.f32 %v463, %v526
      %s538 = scalar_lea.vmem %s1, 6
      %v539 = vld [vmem:[%s538] sm:$0x3]
      %v542 = vunpack.c.l.b16 %v293
      %v543 = vunpack.c.l.b16 %v294
      %v544 = vpack.c.b16 %v543, %v542
      %v545 = vrot.slane %v544, 1
      %v546 = vsel %vm468, %v476, %v545
      %v548 = vsel %vm365, %v546, 0
      %v551 = vsel %vm365, %v545, 0
      %v554 = vsel %vm381, %v539, 0
      %556 = vmatpush.bf16.msra.mxu0 0
      %557 = vmatpush.bf16.msra.mxu0 0
      %558 = vmatpush.bf16.msra.mxu0 0
      %559 = vmatpush.bf16.msra.mxu0 0
      %560 = vmatpush.bf16.msra.mxu0 0
      %561 = vmatpush.bf16.msra.mxu0 0
      %562 = vmatpush.bf16.msra.mxu0 0
      %563 = vmatpush.bf16.msra.mxu0 %v554
      %564 = vmatmul.bf16.gmra.mxu0 %v482
      %v565 = vpop.f32.mrf.mxu0
      %v566 = vadd.f32 0.0, %v565
      %v567 = vpop.f32.mrf.mxu0
      %v568 = vadd.f32 0.0, %v567
      %569 = vmatmul.bf16.gmra.mxu0 %v485
      %v570 = vpop.f32.mrf.mxu0
      %v571 = vadd.f32 0.0, %v570
      %v572 = vpop.f32.mrf.mxu0
      %v573 = vadd.f32 0.0, %v572
      %574 = vmatmul.bf16.gmra.mxu0 %v488
      %v575 = vpop.f32.mrf.mxu0
      %v576 = vadd.f32 0.0, %v575
      %v577 = vpop.f32.mrf.mxu0
      %v578 = vadd.f32 0.0, %v577
      %579 = vmatmul.bf16.gmra.mxu0 %v548
      %v580 = vpop.f32.mrf.mxu0
      %v581 = vadd.f32 0.0, %v580
      %v582 = vpop.f32.mrf.mxu0
      %v583 = vadd.f32 0.0, %v582
      %584 = vmatmul.bf16.gmra.mxu0 %v551
      %v585 = vpop.f32.mrf.mxu0
      %v586 = vadd.f32 0.0, %v585
      %v587 = vpop.f32.mrf.mxu0
      %588 = vdwg.mxu0
      %v589 = vadd.f32 %v529, %v566
      %v590 = vadd.f32 %v530, %v568
      %v591 = vadd.f32 %v531, %v571
      %v592 = vadd.f32 %v532, %v573
      %v593 = vadd.f32 %v533, %v576
      %v594 = vadd.f32 %v534, %v578
      %v595 = vadd.f32 %v535, %v581
      %v596 = vadd.f32 %v536, %v583
      %v597 = vadd.f32 %v537, %v586
      %s598 = scalar_lea.vmem %s1, 8
      %v599 = vld [vmem:[%s598] sm:$0x3]
      %vm600 = vsmask.f32 6400
      %v601 = vrot.slane %v338, 1
      %v602 = vrot.slane %v334, 2
      %v603 = vor.u32 %v601, %v602
      %v604 = vrot.slane %v346, 1
      %v605 = vrot.slane %v342, 2
      %v606 = vor.u32 %v604, %v605
      %v607 = vsel %vm600, %v603, %v606
      %v608 = vrot.slane %v354, 1
      %v609 = vrot.slane %v350, 2
      %v610 = vor.u32 %v608, %v609
      %v611 = vsel %vm600, %v606, %v610
      %v612 = vrot.slane %v362, 1
      %v613 = vrot.slane %v358, 2
      %v614 = vor.u32 %v612, %v613
      %v615 = vsel %vm600, %v610, %v614
      %v617 = vshrl.u32 %v544, 16
      %v619 = vrot.slane %v617, 1
      %v620 = vshll.u32 %v544, 16
      %v622 = vrot.slane %v620, 2
      %v623 = vor.u32 %v619, %v622
      %v624 = vsel %vm600, %v614, %v623
      %v626 = vsel %vm365, %v607, 0
      %v629 = vsel %vm365, %v611, 0
      %v632 = vsel %vm365, %v615, 0
      %v635 = vsel %vm365, %v624, 0
      %v638 = vsel %vm365, %v623, 0
      %v641 = vsel %vm381, %v599, 0
      %643 = vmatpush.bf16.msra.mxu0 0
      %644 = vmatpush.bf16.msra.mxu0 0
      %645 = vmatpush.bf16.msra.mxu0 0
      %646 = vmatpush.bf16.msra.mxu0 0
      %647 = vmatpush.bf16.msra.mxu0 0
      %648 = vmatpush.bf16.msra.mxu0 0
      %649 = vmatpush.bf16.msra.mxu0 0
      %650 = vmatpush.bf16.msra.mxu0 %v641
      %651 = vmatmul.bf16.gmra.mxu0 %v626
      %v652 = vpop.f32.mrf.mxu0
      %v653 = vadd.f32 0.0, %v652
      %v654 = vpop.f32.mrf.mxu0
      %v655 = vadd.f32 0.0, %v654
      %656 = vmatmul.bf16.gmra.mxu0 %v629
      %v657 = vpop.f32.mrf.mxu0
      %v658 = vadd.f32 0.0, %v657
      %v659 = vpop.f32.mrf.mxu0
      %v660 = vadd.f32 0.0, %v659
      %661 = vmatmul.bf16.gmra.mxu0 %v632
      %v662 = vpop.f32.mrf.mxu0
      %v663 = vadd.f32 0.0, %v662
      %v664 = vpop.f32.mrf.mxu0
      %v665 = vadd.f32 0.0, %v664
      %666 = vmatmul.bf16.gmra.mxu0 %v635
      %v667 = vpop.f32.mrf.mxu0
      %v668 = vadd.f32 0.0, %v667
      %v669 = vpop.f32.mrf.mxu0
      %v670 = vadd.f32 0.0, %v669
      %671 = vmatmul.bf16.gmra.mxu0 %v638
      %v672 = vpop.f32.mrf.mxu0
      %v673 = vadd.f32 0.0, %v672
      %v674 = vpop.f32.mrf.mxu0
      %675 = vdwg.mxu0
      %v676 = vadd.f32 %v589, %v653
      %v677 = vadd.f32 %v590, %v655
      %v678 = vadd.f32 %v591, %v658
      %v679 = vadd.f32 %v592, %v660
      %v680 = vadd.f32 %v593, %v663
      %v681 = vadd.f32 %v594, %v665
      %v682 = vadd.f32 %v595, %v668
      %v683 = vadd.f32 %v596, %v670
      %v684 = vadd.f32 %v597, %v673
      %s685 = scalar_lea.vmem %s1, 10
      %v686 = vld [vmem:[%s685] sm:$0x3]
      %vm687 = vcmask 1045504
      %v688 = vrot.slane %v321, 2
      %v689 = vrot.slane %v322, 2
      %v690 = vsel %vm687, %v688, %v689
      %v691 = vrot.slane %v323, 2
      %v692 = vsel %vm687, %v689, %v691
      %v693 = vrot.slane %v324, 2
      %v694 = vsel %vm687, %v691, %v693
      %v695 = vrot.slane %v544, 2
      %v696 = vsel %vm687, %v693, %v695
      %v698 = vsel %vm365, %v690, 0
      %v701 = vsel %vm365, %v692, 0
      %v704 = vsel %vm365, %v694, 0
      %v707 = vsel %vm365, %v696, 0
      %v710 = vsel %vm365, %v695, 0
      %v713 = vsel %vm381, %v686, 0
      %715 = vmatpush.bf16.msra.mxu0 0
      %716 = vmatpush.bf16.msra.mxu0 0
      %717 = vmatpush.bf16.msra.mxu0 0
      %718 = vmatpush.bf16.msra.mxu0 0
      %719 = vmatpush.bf16.msra.mxu0 0
      %720 = vmatpush.bf16.msra.mxu0 0
      %721 = vmatpush.bf16.msra.mxu0 0
      %722 = vmatpush.bf16.msra.mxu0 %v713
      %723 = vmatmul.bf16.gmra.mxu0 %v698
      %v724 = vpop.f32.mrf.mxu0
      %v725 = vadd.f32 0.0, %v724
      %v726 = vpop.f32.mrf.mxu0
      %v727 = vadd.f32 0.0, %v726
      %728 = vmatmul.bf16.gmra.mxu0 %v701
      %v729 = vpop.f32.mrf.mxu0
      %v730 = vadd.f32 0.0, %v729
      %v731 = vpop.f32.mrf.mxu0
      %v732 = vadd.f32 0.0, %v731
      %733 = vmatmul.bf16.gmra.mxu0 %v704
      %v734 = vpop.f32.mrf.mxu0
      %v735 = vadd.f32 0.0, %v734
      %v736 = vpop.f32.mrf.mxu0
      %v737 = vadd.f32 0.0, %v736
      %738 = vmatmul.bf16.gmra.mxu0 %v707
      %v739 = vpop.f32.mrf.mxu0
      %v740 = vadd.f32 0.0, %v739
      %v741 = vpop.f32.mrf.mxu0
      %v742 = vadd.f32 0.0, %v741
      %743 = vmatmul.bf16.gmra.mxu0 %v710
      %v744 = vpop.f32.mrf.mxu0
      %v745 = vadd.f32 0.0, %v744
      %v746 = vpop.f32.mrf.mxu0
      %747 = vdwg.mxu0
      %v748 = vadd.f32 %v676, %v725
      %v749 = vadd.f32 %v677, %v727
      %v750 = vadd.f32 %v678, %v730
      %v751 = vadd.f32 %v679, %v732
      %v752 = vadd.f32 %v680, %v735
      %v753 = vadd.f32 %v681, %v737
      %v754 = vadd.f32 %v682, %v740
      %v755 = vadd.f32 %v683, %v742
      %v756 = vadd.f32 %v684, %v745
      %s757 = scalar_lea.vmem %s1, 12
      %v758 = vld [vmem:[%s757] sm:$0x3]
      %v761 = vunpack.c.l.b16 %v295
      %v762 = vunpack.c.l.b16 %v296
      %v763 = vpack.c.b16 %v762, %v761
      %v764 = vrot.slane %v763, 2
      %v765 = vsel %vm687, %v695, %v764
      %v767 = vsel %vm365, %v765, 0
      %v770 = vsel %vm365, %v764, 0
      %v773 = vsel %vm381, %v758, 0
      %775 = vmatpush.bf16.msra.mxu0 0
      %776 = vmatpush.bf16.msra.mxu0 0
      %777 = vmatpush.bf16.msra.mxu0 0
      %778 = vmatpush.bf16.msra.mxu0 0
      %779 = vmatpush.bf16.msra.mxu0 0
      %780 = vmatpush.bf16.msra.mxu0 0
      %781 = vmatpush.bf16.msra.mxu0 0
      %782 = vmatpush.bf16.msra.mxu0 %v773
      %783 = vmatmul.bf16.gmra.mxu0 %v701
      %v784 = vpop.f32.mrf.mxu0
      %v785 = vadd.f32 0.0, %v784
      %v786 = vpop.f32.mrf.mxu0
      %v787 = vadd.f32 0.0, %v786
      %788 = vmatmul.bf16.gmra.mxu0 %v704
      %v789 = vpop.f32.mrf.mxu0
      %v790 = vadd.f32 0.0, %v789
      %v791 = vpop.f32.mrf.mxu0
      %v792 = vadd.f32 0.0, %v791
      %793 = vmatmul.bf16.gmra.mxu0 %v707
      %v794 = vpop.f32.mrf.mxu0
      %v795 = vadd.f32 0.0, %v794
      %v796 = vpop.f32.mrf.mxu0
      %v797 = vadd.f32 0.0, %v796
      %798 = vmatmul.bf16.gmra.mxu0 %v767
      %v799 = vpop.f32.mrf.mxu0
      %v800 = vadd.f32 0.0, %v799
      %v801 = vpop.f32.mrf.mxu0
      %v802 = vadd.f32 0.0, %v801
      %803 = vmatmul.bf16.gmra.mxu0 %v770
      %v804 = vpop.f32.mrf.mxu0
      %v805 = vadd.f32 0.0, %v804
      %v806 = vpop.f32.mrf.mxu0
      %807 = vdwg.mxu0
      %v808 = vadd.f32 %v748, %v785
      %v809 = vadd.f32 %v749, %v787
      %v810 = vadd.f32 %v750, %v790
      %v811 = vadd.f32 %v751, %v792
      %v812 = vadd.f32 %v752, %v795
      %v813 = vadd.f32 %v753, %v797
      %v814 = vadd.f32 %v754, %v800
      %v815 = vadd.f32 %v755, %v802
      %v816 = vadd.f32 %v756, %v805
      %s817 = scalar_lea.vmem %s1, 14
      %v818 = vld [vmem:[%s817] sm:$0x3]
      %vm819 = vsmask.f32 5376
      %v820 = vrot.slane %v346, 2
      %v821 = vrot.slane %v342, 3
      %v822 = vor.u32 %v820, %v821
      %v823 = vrot.slane %v354, 2
      %v824 = vrot.slane %v350, 3
      %v825 = vor.u32 %v823, %v824
      %v826 = vsel %vm819, %v822, %v825
      %v827 = vrot.slane %v362, 2
      %v828 = vrot.slane %v358, 3
      %v829 = vor.u32 %v827, %v828
      %v830 = vsel %vm819, %v825, %v829
      %v831 = vrot.slane %v617, 2
      %v832 = vrot.slane %v620, 3
      %v833 = vor.u32 %v831, %v832
      %v834 = vsel %vm819, %v829, %v833
      %v836 = vshrl.u32 %v763, 16
      %v838 = vrot.slane %v836, 2
      %v839 = vshll.u32 %v763, 16
      %v841 = vrot.slane %v839, 3
      %v842 = vor.u32 %v838, %v841
      %v843 = vsel %vm819, %v833, %v842
      %v845 = vsel %vm365, %v826, 0
      %v848 = vsel %vm365, %v830, 0
      %v851 = vsel %vm365, %v834, 0
      %v854 = vsel %vm365, %v843, 0
      %v857 = vsel %vm365, %v842, 0
      %v860 = vsel %vm381, %v818, 0
      %862 = vmatpush.bf16.msra.mxu0 0
      %863 = vmatpush.bf16.msra.mxu0 0
      %864 = vmatpush.bf16.msra.mxu0 0
      %865 = vmatpush.bf16.msra.mxu0 0
      %866 = vmatpush.bf16.msra.mxu0 0
      %867 = vmatpush.bf16.msra.mxu0 0
      %868 = vmatpush.bf16.msra.mxu0 0
      %869 = vmatpush.bf16.msra.mxu0 %v860
      %870 = vmatmul.bf16.gmra.mxu0 %v845
      %v871 = vpop.f32.mrf.mxu0
      %v872 = vadd.f32 0.0, %v871
      %v873 = vpop.f32.mrf.mxu0
      %v874 = vadd.f32 0.0, %v873
      %875 = vmatmul.bf16.gmra.mxu0 %v848
      %v876 = vpop.f32.mrf.mxu0
      %v877 = vadd.f32 0.0, %v876
      %v878 = vpop.f32.mrf.mxu0
      %v879 = vadd.f32 0.0, %v878
      %880 = vmatmul.bf16.gmra.mxu0 %v851
      %v881 = vpop.f32.mrf.mxu0
      %v882 = vadd.f32 0.0, %v881
      %v883 = vpop.f32.mrf.mxu0
      %v884 = vadd.f32 0.0, %v883
      %885 = vmatmul.bf16.gmra.mxu0 %v854
      %v886 = vpop.f32.mrf.mxu0
      %v887 = vadd.f32 0.0, %v886
      %v888 = vpop.f32.mrf.mxu0
      %v889 = vadd.f32 0.0, %v888
      %890 = vmatmul.bf16.gmra.mxu0 %v857
      %v891 = vpop.f32.mrf.mxu0
      %v892 = vadd.f32 0.0, %v891
      %v893 = vpop.f32.mrf.mxu0
      %894 = vdwg.mxu0
      %v895 = vadd.f32 %v808, %v872
      %v896 = vadd.f32 %v809, %v874
      %v897 = vadd.f32 %v810, %v877
      %v898 = vadd.f32 %v811, %v879
      %v899 = vadd.f32 %v812, %v882
      %v900 = vadd.f32 %v813, %v884
      %v901 = vadd.f32 %v814, %v887
      %v902 = vadd.f32 %v815, %v889
      %v903 = vadd.f32 %v816, %v892
      %s904 = scalar_lea.vmem %s1, 16
      %v905 = vld [vmem:[%s904] sm:$0x3]
      %vm906 = vcmask 1044480
      %v907 = vrot.slane %v322, 3
      %v908 = vrot.slane %v323, 3
      %v909 = vsel %vm906, %v907, %v908
      %v910 = vrot.slane %v324, 3
      %v911 = vsel %vm906, %v908, %v910
      %v912 = vrot.slane %v544, 3
      %v913 = vsel %vm906, %v910, %v912
      %v914 = vrot.slane %v763, 3
      %v915 = vsel %vm906, %v912, %v914
      %v917 = vsel %vm365, %v909, 0
      %v920 = vsel %vm365, %v911, 0
      %v923 = vsel %vm365, %v913, 0
      %v926 = vsel %vm365, %v915, 0
      %v929 = vsel %vm365, %v914, 0
      %v932 = vsel %vm381, %v905, 0
      %934 = vmatpush.bf16.msra.mxu0 0
      %935 = vmatpush.bf16.msra.mxu0 0
      %936 = vmatpush.bf16.msra.mxu0 0
      %937 = vmatpush.bf16.msra.mxu0 0
      %938 = vmatpush.bf16.msra.mxu0 0
      %939 = vmatpush.bf16.msra.mxu0 0
      %940 = vmatpush.bf16.msra.mxu0 0
      %941 = vmatpush.bf16.msra.mxu0 %v932
      %942 = vmatmul.bf16.gmra.mxu0 %v917
      %v943 = vpop.f32.mrf.mxu0
      %v944 = vadd.f32 0.0, %v943
      %v945 = vpop.f32.mrf.mxu0
      %v946 = vadd.f32 0.0, %v945
      %947 = vmatmul.bf16.gmra.mxu0 %v920
      %v948 = vpop.f32.mrf.mxu0
      %v949 = vadd.f32 0.0, %v948
      %v950 = vpop.f32.mrf.mxu0
      %v951 = vadd.f32 0.0, %v950
      %952 = vmatmul.bf16.gmra.mxu0 %v923
      %v953 = vpop.f32.mrf.mxu0
      %v954 = vadd.f32 0.0, %v953
      %v955 = vpop.f32.mrf.mxu0
      %v956 = vadd.f32 0.0, %v955
      %957 = vmatmul.bf16.gmra.mxu0 %v926
      %v958 = vpop.f32.mrf.mxu0
      %v959 = vadd.f32 0.0, %v958
      %v960 = vpop.f32.mrf.mxu0
      %v961 = vadd.f32 0.0, %v960
      %962 = vmatmul.bf16.gmra.mxu0 %v929
      %v963 = vpop.f32.mrf.mxu0
      %v964 = vadd.f32 0.0, %v963
      %v965 = vpop.f32.mrf.mxu0
      %966 = vdwg.mxu0
      %v967 = vadd.f32 %v895, %v944
      %v968 = vadd.f32 %v896, %v946
      %v969 = vadd.f32 %v897, %v949
      %v970 = vadd.f32 %v898, %v951
      %v971 = vadd.f32 %v899, %v954
      %v972 = vadd.f32 %v900, %v956
      %v973 = vadd.f32 %v901, %v959
      %v974 = vadd.f32 %v902, %v961
      %v975 = vadd.f32 %v903, %v964
      %v976 = vld [vmem:[%s2] sm:$0x1]
      %v978 = vperm.slane %v976, 0
      %v980 = vadd.f32 %v967, %v978
      %v981 = vadd.f32 %v968, %v978
      %v982 = vadd.f32 %v969, %v978
      %v983 = vadd.f32 %v970, %v978
      %v984 = vadd.f32 %v971, %v978
      %v985 = vadd.f32 %v972, %v978
      %v986 = vadd.f32 %v973, %v978
      %v987 = vadd.f32 %v974, %v978
      %v988 = vadd.f32 %v975, %v978
      %v989 = vpack.c.bf16 %v980, %v980
      %v990 = vpack.c.bf16 %v981, %v981
      %v991 = vpack.c.bf16 %v982, %v982
      %v992 = vpack.c.bf16 %v983, %v983
      %v993 = vpack.c.bf16 %v984, %v984
      %v994 = vpack.c.bf16 %v985, %v985
      %v995 = vpack.c.bf16 %v986, %v986
      %v996 = vpack.c.bf16 %v987, %v987
      %v997 = vpack.c.bf16 %v988, %v988
      %vm998 = vcmask 27648
      %999 = vst.msk [vmem:[%s273] sm:$0xf] %vm998, %v989
      %1000 = vst.msk [vmem:[%s273 + $0x4] sm:$0xf] %vm998, %v990
      %1001 = vst.msk [vmem:[%s273 + $0x8] sm:$0xf] %vm998, %v991
      %1002 = vst.msk [vmem:[%s273 + $0xc] sm:$0xf] %vm998, %v992
      %1003 = vst.msk [vmem:[%s273 + $0x10] sm:$0xf] %vm998, %v993
      %1004 = vst.msk [vmem:[%s273 + $0x14] sm:$0xf] %vm998, %v994
      %1005 = vst.msk [vmem:[%s273 + $0x18] sm:$0xf] %vm998, %v995
      %1006 = vst.msk [vmem:[%s273 + $0x1c] sm:$0xf] %vm998, %v996
      %1007 = vst.msk [vmem:[%s273 + $0x20] sm:$0xf] %vm998, %v997
      %v1008 = vld [vmem:[%s3] sm:$0xff]
      %v1009 = vld [vmem:[%s3 + $0x8] sm:$0xff]
      %v1010 = vld [vmem:[%s3 + $0x10] sm:$0xff]
      %v1011 = vld [vmem:[%s3 + $0x18] sm:$0xff]
      %v1012 = vld [vmem:[%s3 + $0x20] sm:$0xff]
      %v1013 = vld [vmem:[%s3 + $0x28] sm:$0xff]
      %v1014 = vld [vmem:[%s3 + $0x30] sm:$0xff]
      %v1015 = vld [vmem:[%s3 + $0x38] sm:$0xff]
      %v1016 = vld [vmem:[%s3 + $0x40] sm:$0xff]
      %1018 = vset.pattern.permute.xlu0 0
      %1019 = vperm.xlu0 %1018, %v1008
      %v1020 = vpop.permute.xlu0 %1019
      %1023 = vset.pattern.permute.xlu0 0
      %1024 = vperm.xlu0 %1023, %v1009
      %v1025 = vpop.permute.xlu0 %1024
      %1028 = vset.pattern.permute.xlu0 0
      %1029 = vperm.xlu0 %1028, %v1010
      %v1030 = vpop.permute.xlu0 %1029
      %1033 = vset.pattern.permute.xlu0 0
      %1034 = vperm.xlu0 %1033, %v1011
      %v1035 = vpop.permute.xlu0 %1034
      %1038 = vset.pattern.permute.xlu0 0
      %1039 = vperm.xlu0 %1038, %v1012
      %v1040 = vpop.permute.xlu0 %1039
      %1043 = vset.pattern.permute.xlu0 0
      %1044 = vperm.xlu0 %1043, %v1013
      %v1045 = vpop.permute.xlu0 %1044
      %1048 = vset.pattern.permute.xlu0 0
      %1049 = vperm.xlu0 %1048, %v1014
      %v1050 = vpop.permute.xlu0 %1049
      %1053 = vset.pattern.permute.xlu0 0
      %1054 = vperm.xlu0 %1053, %v1015
      %v1055 = vpop.permute.xlu0 %1054
      %1058 = vset.pattern.permute.xlu0 0
      %1059 = vperm.xlu0 %1058, %v1016
      %v1060 = vpop.permute.xlu0 %1059
      %v1062 = vmul.f32 %v980, %v1020
      %v1063 = vmul.f32 %v981, %v1025
      %v1064 = vmul.f32 %v982, %v1030
      %v1065 = vmul.f32 %v983, %v1035
      %v1066 = vmul.f32 %v984, %v1040
      %v1067 = vmul.f32 %v985, %v1045
      %v1068 = vmul.f32 %v986, %v1050
      %v1069 = vmul.f32 %v987, %v1055
      %v1070 = vmul.f32 %v988, %v1060
      %v1071 = vsel %vm365, %v1062, 0.0
      %v1072 = vsel %vm365, %v1063, 0.0
      %v1073 = vadd.f32 %v1071, %v1072
      %v1074 = vsel %vm365, %v1064, 0.0
      %v1075 = vadd.f32 %v1073, %v1074
      %v1076 = vsel %vm365, %v1065, 0.0
      %v1077 = vadd.f32 %v1075, %v1076
      %v1078 = vsel %vm365, %v1066, 0.0
      %v1079 = vadd.f32 %v1077, %v1078
      %v1080 = vsel %vm365, %v1067, 0.0
      %v1081 = vadd.f32 %v1079, %v1080
      %v1082 = vsel %vm365, %v1068, 0.0
      %v1083 = vadd.f32 %v1081, %v1082
      %v1084 = vsel %vm365, %v1069, 0.0
      %v1085 = vadd.f32 %v1083, %v1084
      %v1086 = vsel %vm365, %v1070, 0.0
      %v1087 = vadd.f32 %v1085, %v1086
      %v1088 = vrot.slane %v1087, 4
      %v1089 = vadd.f32 %v1087, %v1088
      %v1090 = vrot.slane %v1089, 2
      %v1091 = vadd.f32 %v1089, %v1090
      %v1092 = vrot.slane %v1091, 1
      %v1093 = vadd.f32 %v1091, %v1092
      %v1094 = vmul.f32 %v1062, %v980
      %v1095 = vmul.f32 %v1063, %v981
      %v1096 = vmul.f32 %v1064, %v982
      %v1097 = vmul.f32 %v1065, %v983
      %v1098 = vmul.f32 %v1066, %v984
      %v1099 = vmul.f32 %v1067, %v985
      %v1100 = vmul.f32 %v1068, %v986
      %v1101 = vmul.f32 %v1069, %v987
      %v1102 = vmul.f32 %v1070, %v988
      %v1103 = vsel %vm365, %v1094, 0.0
      %v1104 = vsel %vm365, %v1095, 0.0
      %v1105 = vadd.f32 %v1103, %v1104
      %v1106 = vsel %vm365, %v1096, 0.0
      %v1107 = vadd.f32 %v1105, %v1106
      %v1108 = vsel %vm365, %v1097, 0.0
      %v1109 = vadd.f32 %v1107, %v1108
      %v1110 = vsel %vm365, %v1098, 0.0
      %v1111 = vadd.f32 %v1109, %v1110
      %v1112 = vsel %vm365, %v1099, 0.0
      %v1113 = vadd.f32 %v1111, %v1112
      %v1114 = vsel %vm365, %v1100, 0.0
      %v1115 = vadd.f32 %v1113, %v1114
      %v1116 = vsel %vm365, %v1101, 0.0
      %v1117 = vadd.f32 %v1115, %v1116
      %v1118 = vsel %vm365, %v1102, 0.0
      %v1119 = vadd.f32 %v1117, %v1118
      %v1120 = vrot.slane %v1119, 4
      %v1121 = vadd.f32 %v1119, %v1120
      %v1122 = vrot.slane %v1121, 2
      %v1123 = vadd.f32 %v1121, %v1122
      %v1124 = vrot.slane %v1123, 1
      %v1125 = vadd.f32 %v1123, %v1124
      %vm1126 = vcmask 1040384
      %v1127 = vsel %vm1126, %v1093, %v1125
      %vm1128 = vcmask 25600
      %1129 = vst.msk [vmem:[%s281] sm:$0x3] %vm1128, %v1127
      %p1130 = scmp.lt.s32.totalorder %s21, 1
      %s1131 = scalar_select %p1130, %s21, 1
      %p1132 = scmp.lt.s32.totalorder %s22, 3
      %s1133 = scalar_select %p1132, %s22, 3
      %s1134 = smul.addr %s1133, 9
      %s1135 = smul.addr %s1131, 36
      %s1136 = sadd.s32 %s1134, %s1135
      %s1137 = smul.addr %s1136, 4
      %s1138 = scalar_lea.vmem %s4, %s1137
      %p1139 = scmp.lt.s32.totalorder %s21, 1
      %s1140 = scalar_select %p1139, %s21, 1
      %p1141 = scmp.lt.s32.totalorder %s22, 3
      %s1142 = scalar_select %p1141, %s22, 3
      %s1143 = smul.addr %s1140, 4
      %s1144 = sadd.s32 %s1142, %s1143
      %s1145 = smul.addr %s1144, 2
      %s1146 = scalar_lea.vmem %s5, %s1145
      // Predicated region
      $region37: #{up_block_forward.5} parent=35 // pred_check
        %p1147 = pneg %p140
      $region38: #{up_block_forward.5} parent=35 // pred_check_branch
        %1149 = sbr.rel (%p1147) target = $region40
      $region39: #{up_block_forward.5} parent=35 // pred_region
        _
      $region40: #{up_block_forward.5} parent=35 // pred_fallthru
        _
      // Predicated region
      $region41: #{up_block_forward.5} parent=35 // pred_check
        %p1150 = pneg %p168
      $region42: #{up_block_forward.5} parent=35 // pred_check_branch
        %1152 = sbr.rel (%p1150) target = $region44
      $region43: #{up_block_forward.5} parent=35 // pred_region
        _
      $region44: #{up_block_forward.5} parent=35 // pred_fallthru
        _
    $region36: #{up_block_forward.5} parent=5 // pred_fallthru
      _
    %p1153 = scmp.le.s32.totalorder 2, %s12
    // Predicated region
    $region45: #{up_block_forward.5} parent=5 // pred_check
      %p1154 = pneg %p1153
    $region46: #{up_block_forward.5} parent=5 // pred_check_branch
      %1156 = sbr.rel (%p1154) target = $region48
    $region47: #{up_block_forward.5} parent=5 // pred_region
      %s1157 = ssub.s32 %s12, 2
      // Predicated region
      $region49: #{up_block_forward.5} parent=47 // pred_check
        %p1158 = pneg %p146
      $region50: #{up_block_forward.5} parent=47 // pred_check_branch
        %1160 = sbr.rel (%p1158) target = $region52
      $region51: #{up_block_forward.5} parent=47 // pred_region
        %p1161 = scmp.lt.s32.totalorder %s23, 1
        %s1162 = scalar_select %p1161, %s23, 1
        %p1163 = scmp.lt.s32.totalorder %s24, 3
        %s1164 = scalar_select %p1163, %s24, 3
        %s1165 = smul.addr %s1164, 9
        %s1166 = smul.addr %s1162, 36
        %s1167 = sadd.s32 %s1165, %s1166
        %s1168 = smul.addr %s1167, 4
        %s1169 = scalar_lea.vmem %s4, %s1168
      $region52: #{up_block_forward.5} parent=47 // pred_fallthru
        _
      // Predicated region
      $region53: #{up_block_forward.5} parent=47 // pred_check
        %p1170 = pneg %p174
      $region54: #{up_block_forward.5} parent=47 // pred_check_branch
        %1172 = sbr.rel (%p1170) target = $region56
      $region55: #{up_block_forward.5} parent=47 // pred_region
        %p1173 = scmp.lt.s32.totalorder %s23, 1
        %s1174 = scalar_select %p1173, %s23, 1
        %p1175 = scmp.lt.s32.totalorder %s24, 3
        %s1176 = scalar_select %p1175, %s24, 3
        %s1177 = smul.addr %s1174, 4
        %s1178 = sadd.s32 %s1176, %s1177
        %s1179 = smul.addr %s1178, 2
        %s1180 = scalar_lea.vmem %s5, %s1179
      $region56: #{up_block_forward.5} parent=47 // pred_fallthru
        _
    $region48: #{up_block_forward.5} parent=5 // pred_fallthru
      _
  $region6: #{up_block_forward.5} parent=0 // loop_footer
    %s16 = sadd.s32 1, %s12
  $region7: #{up_block_forward.5} parent=0 // loop_footer_branch
    %11 = sbr.rel target = $region3
  $region8: #{up_block_forward.5} parent=0 // loop_exit
    _

// kernel: up_block_forward.4
$region0: #{up_block_forward.4}
  #allocation0 [shape = 'u32[]', space=smem, size = 0x4, offset = 0x4, fixed_abs, tag = 'smem constant byte address 0x4 - core index']
  #allocation1 [shape = 'u32[72,128]{1,0:T(1,128)}', space=vmem, size = 0x9000, scoped, tag = 'internal scratch']
  %s0 = inlined_call_operand.vmem [shape: bf16[2,4,116,4], index: 0, kind: input, shape index: {}]
  %s1 = inlined_call_operand.vmem [shape: bf16[2,4,116,4], index: 1, kind: input, shape index: {}]
  %s2 = inlined_call_operand.vmem [shape: bf16[9,4,4], index: 2, kind: input, shape index: {}]
  %s3 = inlined_call_operand.vmem [shape: bf16[9,4,4], index: 3, kind: input, shape index: {}]
  %s4 = inlined_call_operand.vmem [shape: f32[1,4], index: 4, kind: input, shape index: {}]
  %s5 = inlined_call_operand.vmem [shape: f32[72,1], index: 5, kind: input, shape index: {}]
  %s6 = inlined_call_operand.vmem [shape: bf16[2,4,72,4], index: 6, kind: output, shape index: {0}]
  %s7 = inlined_call_operand.vmem [shape: f32[2,4,2,4], index: 7, kind: output, shape index: {1}]
  %8 = xla_tuple %s6, %s7
  %s9 = sld [smem:[#allocation0]]
  $region65: #{up_block_forward.4} parent=0
    _
  %s11 = ssub.s32 1, %s9
  %s12 = scalar_select 0, %s11, %s9
  loop: start=0, step=1, limit=10
  $region2: #{up_block_forward.4} parent=0 // loop_pre_header
    _
  $region3: #{up_block_forward.4} parent=0 // loop_header
    %s14 = sphi 0, %s18
    %p15 = scmp.ge.s32.totalorder %s14, 10
    %s21 = sphi 0, %s33
    %s22 = sphi 0, %s29
    %s23 = sphi 0, %s21
    %s24 = sphi 0, %s22
    %s25 = sphi 0, %s23
    %s26 = sphi 0, %s24
    %s38 = sphi 0, %s40
    %s41 = sphi 0, %s38
    %s42 = sphi 0, %s41
    %s58 = sphi 0, %s42
    %s66 = sphi 0, %s68
    %s69 = sphi 0, %s66
    %s70 = sphi 0, %s69
    %s86 = sphi 0, %s70
    %s90 = sphi 0, %s90
    %s92 = sphi 0, %s90
    %s93 = sphi 0, %s92
    %s107 = sphi 0, %s93
    %s111 = sphi 0, %s111
    %s113 = sphi 0, %s111
    %s114 = sphi 0, %s113
    %s128 = sphi 0, %s114
    %s132 = sphi 0, %s132
    %s134 = sphi 0, %s132
    %s135 = sphi 0, %s134
    %s149 = sphi 0, %s135
    %s153 = sphi 0, %s153
    %s155 = sphi 0, %s153
    %s156 = sphi 0, %s155
    %s170 = sphi 0, %s156
    %s178 = sphi 0, %s180
    %s181 = sphi 0, %s178
    %s182 = sphi 0, %s181
    %s198 = sphi 0, %s182
    %s206 = sphi 0, %s208
    %s209 = sphi 0, %s206
    %s210 = sphi 0, %s209
    %s226 = sphi 0, %s210
  $region4: #{up_block_forward.4} parent=0 // loop_header_branch
    %17 = sbr.rel (%p15) target = $region8
  $region5: #{up_block_forward.4} parent=0 // loop_body
    %s19 = ssub.s32 %s14, 1
    %s20 = ssub.s32 %s14, 2
    %s27 = sadd.s32 1, %s22
    %p28 = scmp.ge.s32.totalorder %s27, 4
    %s29 = scalar_select %p28, 0, %s27
    %s30 = sadd.s32 1, %s21
    %s31 = scalar_select %p28, %s30, %s21
    %p32 = scmp.ge.s32.totalorder %s31, 2
    %s33 = scalar_select %p32, 0, %s31
    %s34 = ssub.s32 %s21, %s33
    %s35 = ssub.s32 %s22, %s29
    %s36 = sor.u32 %s34, %s35
    %p37 = scmp.eq.s32.totalorder %s36, 0
    %s39 = sadd.s32 %s38, 1
    %s40 = scalar_select %p37, %s38, %s39
    %p43 = pneg %p37
    %p44 = scmp.eq.s32.totalorder %s14, 7
    %p45 = por %p43, %p44
    %p46 = scmp.ne.s32.totalorder %s38, %s41
    %p47 = scmp.eq.s32.totalorder %s14, 0
    %p48 = por %p46, %p47
    %p49 = scmp.ne.s32.totalorder %s38, %s41
    %p50 = scmp.eq.s32.totalorder %s19, 7
    %p51 = por %p49, %p50
    %p52 = scmp.ne.s32.totalorder %s41, %s42
    %p53 = scmp.eq.s32.totalorder %s19, 0
    %p54 = por %p52, %p53
    %p55 = scmp.ne.s32.totalorder %s41, %s42
    %p56 = scmp.eq.s32.totalorder %s20, 7
    %p57 = por %p55, %p56
    %p59 = scmp.ne.s32.totalorder %s42, %s58
    %p60 = scmp.eq.s32.totalorder %s20, 0
    %p61 = por %p59, %p60
    %s62 = ssub.s32 %s21, %s33
    %s63 = ssub.s32 %s22, %s29
    %s64 = sor.u32 %s62, %s63
    %p65 = scmp.eq.s32.totalorder %s64, 0
    %s67 = sadd.s32 %s66, 1
    %s68 = scalar_select %p65, %s66, %s67
    %p71 = pneg %p65
    %p72 = scmp.eq.s32.totalorder %s14, 7
    %p73 = por %p71, %p72
    %p74 = scmp.ne.s32.totalorder %s66, %s69
    %p75 = scmp.eq.s32.totalorder %s14, 0
    %p76 = por %p74, %p75
    %p77 = scmp.ne.s32.totalorder %s66, %s69
    %p78 = scmp.eq.s32.totalorder %s19, 7
    %p79 = por %p77, %p78
    %p80 = scmp.ne.s32.totalorder %s69, %s70
    %p81 = scmp.eq.s32.totalorder %s19, 0
    %p82 = por %p80, %p81
    %p83 = scmp.ne.s32.totalorder %s69, %s70
    %p84 = scmp.eq.s32.totalorder %s20, 7
    %p85 = por %p83, %p84
    %p87 = scmp.ne.s32.totalorder %s70, %s86
    %p88 = scmp.eq.s32.totalorder %s20, 0
    %p89 = por %p87, %p88
    %s91 = sadd.s32 %s90, 1
    %p94 = scmp.eq.s32.totalorder %s14, 7
    %p95 = scmp.ne.s32.totalorder %s90, %s92
    %p96 = scmp.eq.s32.totalorder %s14, 0
    %p97 = por %p95, %p96
    %p98 = scmp.ne.s32.totalorder %s90, %s92
    %p99 = scmp.eq.s32.totalorder %s19, 7
    %p100 = por %p98, %p99
    %p101 = scmp.ne.s32.totalorder %s92, %s93
    %p102 = scmp.eq.s32.totalorder %s19, 0
    %p103 = por %p101, %p102
    %p104 = scmp.ne.s32.totalorder %s92, %s93
    %p105 = scmp.eq.s32.totalorder %s20, 7
    %p106 = por %p104, %p105
    %p108 = scmp.ne.s32.totalorder %s93, %s107
    %p109 = scmp.eq.s32.totalorder %s20, 0
    %p110 = por %p108, %p109
    %s112 = sadd.s32 %s111, 1
    %p115 = scmp.eq.s32.totalorder %s14, 7
    %p116 = scmp.ne.s32.totalorder %s111, %s113
    %p117 = scmp.eq.s32.totalorder %s14, 0
    %p118 = por %p116, %p117
    %p119 = scmp.ne.s32.totalorder %s111, %s113
    %p120 = scmp.eq.s32.totalorder %s19, 7
    %p121 = por %p119, %p120
    %p122 = scmp.ne.s32.totalorder %s113, %s114
    %p123 = scmp.eq.s32.totalorder %s19, 0
    %p124 = por %p122, %p123
    %p125 = scmp.ne.s32.totalorder %s113, %s114
    %p126 = scmp.eq.s32.totalorder %s20, 7
    %p127 = por %p125, %p126
    %p129 = scmp.ne.s32.totalorder %s114, %s128
    %p130 = scmp.eq.s32.totalorder %s20, 0
    %p131 = por %p129, %p130
    %s133 = sadd.s32 %s132, 1
    %p136 = scmp.eq.s32.totalorder %s14, 7
    %p137 = scmp.ne.s32.totalorder %s132, %s134
    %p138 = scmp.eq.s32.totalorder %s14, 0
    %p139 = por %p137, %p138
    %p140 = scmp.ne.s32.totalorder %s132, %s134
    %p141 = scmp.eq.s32.totalorder %s19, 7
    %p142 = por %p140, %p141
    %p143 = scmp.ne.s32.totalorder %s134, %s135
    %p144 = scmp.eq.s32.totalorder %s19, 0
    %p145 = por %p143, %p144
    %p146 = scmp.ne.s32.totalorder %s134, %s135
    %p147 = scmp.eq.s32.totalorder %s20, 7
    %p148 = por %p146, %p147
    %p150 = scmp.ne.s32.totalorder %s135, %s149
    %p151 = scmp.eq.s32.totalorder %s20, 0
    %p152 = por %p150, %p151
    %s154 = sadd.s32 %s153, 1
    %p157 = scmp.eq.s32.totalorder %s14, 7
    %p158 = scmp.ne.s32.totalorder %s153, %s155
    %p159 = scmp.eq.s32.totalorder %s14, 0
    %p160 = por %p158, %p159
    %p161 = scmp.ne.s32.totalorder %s153, %s155
    %p162 = scmp.eq.s32.totalorder %s19, 7
    %p163 = por %p161, %p162
    %p164 = scmp.ne.s32.totalorder %s155, %s156
    %p165 = scmp.eq.s32.totalorder %s19, 0
    %p166 = por %p164, %p165
    %p167 = scmp.ne.s32.totalorder %s155, %s156
    %p168 = scmp.eq.s32.totalorder %s20, 7
    %p169 = por %p167, %p168
    %p171 = scmp.ne.s32.totalorder %s156, %s170
    %p172 = scmp.eq.s32.totalorder %s20, 0
    %p173 = por %p171, %p172
    %s174 = ssub.s32 %s21, %s33
    %s175 = ssub.s32 %s22, %s29
    %s176 = sor.u32 %s174, %s175
    %p177 = scmp.eq.s32.totalorder %s176, 0
    %s179 = sadd.s32 %s178, 1
    %s180 = scalar_select %p177, %s178, %s179
    %p183 = pneg %p177
    %p184 = scmp.eq.s32.totalorder %s14, 7
    %p185 = por %p183, %p184
    %p186 = scmp.ne.s32.totalorder %s178, %s181
    %p187 = scmp.eq.s32.totalorder %s14, 0
    %p188 = por %p186, %p187
    %p189 = scmp.ne.s32.totalorder %s178, %s181
    %p190 = scmp.eq.s32.totalorder %s19, 7
    %p191 = por %p189, %p190
    %p192 = scmp.ne.s32.totalorder %s181, %s182
    %p193 = scmp.eq.s32.totalorder %s19, 0
    %p194 = por %p192, %p193
    %p195 = scmp.ne.s32.totalorder %s181, %s182
    %p196 = scmp.eq.s32.totalorder %s20, 7
    %p197 = por %p195, %p196
    %p199 = scmp.ne.s32.totalorder %s182, %s198
    %p200 = scmp.eq.s32.totalorder %s20, 0
    %p201 = por %p199, %p200
    %s202 = ssub.s32 %s21, %s33
    %s203 = ssub.s32 %s22, %s29
    %s204 = sor.u32 %s202, %s203
    %p205 = scmp.eq.s32.totalorder %s204, 0
    %s207 = sadd.s32 %s206, 1
    %s208 = scalar_select %p205, %s206, %s207
    %p211 = pneg %p205
    %p212 = scmp.eq.s32.totalorder %s14, 7
    %p213 = por %p211, %p212
    %p214 = scmp.ne.s32.totalorder %s206, %s209
    %p215 = scmp.eq.s32.totalorder %s14, 0
    %p216 = por %p214, %p215
    %p217 = scmp.ne.s32.totalorder %s206, %s209
    %p218 = scmp.eq.s32.totalorder %s19, 7
    %p219 = por %p217, %p218
    %p220 = scmp.ne.s32.totalorder %s209, %s210
    %p221 = scmp.eq.s32.totalorder %s19, 0
    %p222 = por %p220, %p221
    %p223 = scmp.ne.s32.totalorder %s209, %s210
    %p224 = scmp.eq.s32.totalorder %s20, 7
    %p225 = por %p223, %p224
    %p227 = scmp.ne.s32.totalorder %s210, %s226
    %p228 = scmp.eq.s32.totalorder %s20, 0
    %p229 = por %p227, %p228
    %p230 = scmp.le.s32.totalorder 1, %s14
    %p231 = scmp.lt.s32.totalorder %s14, 9
    %p232 = pnand %p230, %p231
    %p233 = pneg %p232
    // Predicated region
    $region9: #{up_block_forward.4} parent=5 // pred_check
      _
    $region10: #{up_block_forward.4} parent=5 // pred_check_branch
      %235 = sbr.rel (%p232) target = $region12
    $region11: #{up_block_forward.4} parent=5 // pred_region
      %s236 = ssub.s32 %s14, 1
      // Predicated region
      $region13: #{up_block_forward.4} parent=11 // pred_check
        %p237 = pneg %p103
      $region14: #{up_block_forward.4} parent=11 // pred_check_branch
        %239 = sbr.rel (%p237) target = $region16
      $region15: #{up_block_forward.4} parent=11 // pred_region
        _
      $region16: #{up_block_forward.4} parent=11 // pred_fallthru
        _
      // Predicated region
      $region17: #{up_block_forward.4} parent=11 // pred_check
        %p240 = pneg %p124
      $region18: #{up_block_forward.4} parent=11 // pred_check_branch
        %242 = sbr.rel (%p240) target = $region20
      $region19: #{up_block_forward.4} parent=11 // pred_region
        _
      $region20: #{up_block_forward.4} parent=11 // pred_fallthru
        _
      // Predicated region
      $region21: #{up_block_forward.4} parent=11 // pred_check
        %p243 = pneg %p145
      $region22: #{up_block_forward.4} parent=11 // pred_check_branch
        %245 = sbr.rel (%p243) target = $region24
      $region23: #{up_block_forward.4} parent=11 // pred_region
        _
      $region24: #{up_block_forward.4} parent=11 // pred_fallthru
        _
      // Predicated region
      $region25: #{up_block_forward.4} parent=11 // pred_check
        %p246 = pneg %p166
      $region26: #{up_block_forward.4} parent=11 // pred_check_branch
        %248 = sbr.rel (%p246) target = $region28
      $region27: #{up_block_forward.4} parent=11 // pred_region
        _
      $region28: #{up_block_forward.4} parent=11 // pred_fallthru
        _
    $region12: #{up_block_forward.4} parent=5 // pred_fallthru
      _
    %p249 = scmp.lt.s32.totalorder %s14, 8
    // Predicated region
    $region29: #{up_block_forward.4} parent=5 // pred_check
      %p250 = pneg %p249
    $region30: #{up_block_forward.4} parent=5 // pred_check_branch
      %252 = sbr.rel (%p250) target = $region32
    $region31: #{up_block_forward.4} parent=5 // pred_region
      // Predicated region
      $region33: #{up_block_forward.4} parent=31 // pred_check
        %p253 = pneg %p48
      $region34: #{up_block_forward.4} parent=31 // pred_check_branch
        %255 = sbr.rel (%p253) target = $region36
      $region35: #{up_block_forward.4} parent=31 // pred_region
        %p256 = scmp.lt.s32.totalorder %s21, 1
        %s257 = scalar_select %p256, %s21, 1
        %p258 = scmp.lt.s32.totalorder %s22, 3
        %s259 = scalar_select %p258, %s22, 3
        %s260 = smul.addr %s259, 15
        %s261 = smul.addr %s257, 60
        %s262 = sadd.s32 %s260, %s261
        %s263 = smul.addr %s262, 4
        %s264 = scalar_lea.vmem %s0, %s263
      $region36: #{up_block_forward.4} parent=31 // pred_fallthru
        _
      // Predicated region
      $region37: #{up_block_forward.4} parent=31 // pred_check
        %p265 = pneg %p76
      $region38: #{up_block_forward.4} parent=31 // pred_check_branch
        %267 = sbr.rel (%p265) target = $region40
      $region39: #{up_block_forward.4} parent=31 // pred_region
        %p268 = scmp.lt.s32.totalorder %s21, 1
        %s269 = scalar_select %p268, %s21, 1
        %p270 = scmp.lt.s32.totalorder %s22, 3
        %s271 = scalar_select %p270, %s22, 3
        %s272 = smul.addr %s271, 15
        %s273 = smul.addr %s269, 60
        %s274 = sadd.s32 %s272, %s273
        %s275 = smul.addr %s274, 4
        %s276 = scalar_lea.vmem %s1, %s275
      $region40: #{up_block_forward.4} parent=31 // pred_fallthru
        _
    $region32: #{up_block_forward.4} parent=5 // pred_fallthru
      _
    %p277 = scmp.le.s32.totalorder 1, %s14
    %p278 = scmp.lt.s32.totalorder %s14, 9
    %p279 = pnand %p277, %p278
    %p280 = pneg %p279
    // Predicated region
    $region41: #{up_block_forward.4} parent=5 // pred_check
      _
    $region42: #{up_block_forward.4} parent=5 // pred_check_branch
      %282 = sbr.rel (%p279) target = $region44
    $region43: #{up_block_forward.4} parent=5 // pred_region
      %s283 = ssub.s32 %s14, 1
      %p284 = scmp.lt.s32.totalorder %s23, 1
      %s285 = scalar_select %p284, %s23, 1
      %p286 = scmp.lt.s32.totalorder %s24, 3
      %s287 = scalar_select %p286, %s24, 3
      %s288 = smul.addr %s287, 15
      %s289 = smul.addr %s285, 60
      %s290 = sadd.s32 %s288, %s289
      %s291 = smul.addr %s290, 4
      %s292 = scalar_lea.vmem %s0, %s291
      %p293 = pneg %p54
      %p294 = pneg %p51
      %p295 = scmp.lt.s32.totalorder %s23, 1
      %s296 = scalar_select %p295, %s23, 1
      %p297 = scmp.lt.s32.totalorder %s24, 3
      %s298 = scalar_select %p297, %s24, 3
      %s299 = smul.addr %s298, 15
      %s300 = smul.addr %s296, 60
      %s301 = sadd.s32 %s299, %s300
      %s302 = smul.addr %s301, 4
      %s303 = scalar_lea.vmem %s1, %s302
      %p304 = pneg %p82
      %p305 = pneg %p79
      %p306 = pneg %p103
      %p307 = pneg %p100
      %p308 = pneg %p124
      %p309 = pneg %p121
      %p310 = pneg %p145
      %p311 = pneg %p142
      %p312 = pneg %p166
      %p313 = pneg %p163
      %p314 = pneg %p194
      %p315 = pneg %p191
      %p316 = scmp.lt.s32.totalorder %s23, 1
      %s317 = scalar_select %p316, %s23, 1
      %p318 = scmp.lt.s32.totalorder %s24, 3
      %s319 = scalar_select %p318, %s24, 3
      %s320 = smul.addr %s319, 9
      %s321 = smul.addr %s317, 36
      %s322 = sadd.s32 %s320, %s321
      %s323 = smul.addr %s322, 4
      %s324 = scalar_lea.vmem %s6, %s323
      %p325 = pneg %p222
      %p326 = pneg %p219
      %p327 = scmp.lt.s32.totalorder %s23, 1
      %s328 = scalar_select %p327, %s23, 1
      %p329 = scmp.lt.s32.totalorder %s24, 3
      %s330 = scalar_select %p329, %s24, 3
      %s331 = smul.addr %s328, 4
      %s332 = sadd.s32 %s330, %s331
      %s333 = smul.addr %s332, 2
      %s334 = scalar_lea.vmem %s7, %s333
      %p335 = scmp.lt.s32.totalorder %s23, 1
      %s336 = scalar_select %p335, %s23, 1
      %p337 = scmp.lt.s32.totalorder %s24, 3
      %s338 = scalar_select %p337, %s24, 3
      %s339 = smul.addr %s338, 15
      %s340 = smul.addr %s336, 60
      %s341 = sadd.s32 %s339, %s340
      %s342 = smul.addr %s341, 4
      %s343 = scalar_lea.vmem %s0, %s342
      %p344 = scmp.lt.s32.totalorder %s23, 1
      %s345 = scalar_select %p344, %s23, 1
      %p346 = scmp.lt.s32.totalorder %s24, 3
      %s347 = scalar_select %p346, %s24, 3
      %s348 = smul.addr %s347, 15
      %s349 = smul.addr %s345, 60
      %s350 = sadd.s32 %s348, %s349
      %s351 = smul.addr %s350, 4
      %s352 = scalar_lea.vmem %s1, %s351
      %p353 = scmp.lt.s32.totalorder %s23, 1
      %s354 = scalar_select %p353, %s23, 1
      %p355 = scmp.lt.s32.totalorder %s24, 3
      %s356 = scalar_select %p355, %s24, 3
      %s357 = smul.addr %s356, 9
      %s358 = smul.addr %s354, 36
      %s359 = sadd.s32 %s357, %s358
      %s360 = smul.addr %s359, 4
      %s361 = scalar_lea.vmem %s6, %s360
      %p362 = scmp.lt.s32.totalorder %s23, 1
      %s363 = scalar_select %p362, %s23, 1
      %p364 = scmp.lt.s32.totalorder %s24, 3
      %s365 = scalar_select %p364, %s24, 3
      %s366 = smul.addr %s363, 4
      %s367 = sadd.s32 %s365, %s366
      %s368 = smul.addr %s367, 2
      %s369 = scalar_lea.vmem %s7, %s368
      %v371 = vld [vmem:[%s343] sm:$0xf]
      %v372 = vld [vmem:[%s343 + $0x4] sm:$0xf]
      %v373 = vld [vmem:[%s343 + $0x8] sm:$0xf]
      %v374 = vld [vmem:[%s343 + $0xc] sm:$0xf]
      %v375 = vld [vmem:[%s343 + $0x10] sm:$0xf]
      %v376 = vld [vmem:[%s343 + $0x14] sm:$0xf]
      %v377 = vld [vmem:[%s343 + $0x18] sm:$0xf]
      %v378 = vld [vmem:[%s343 + $0x1c] sm:$0xf]
      %v379 = vld [vmem:[%s343 + $0x20] sm:$0xf]
      %v380 = vld [vmem:[%s343 + $0x24] sm:$0xf]
      %v381 = vld [vmem:[%s343 + $0x28] sm:$0xf]
      %v382 = vld [vmem:[%s343 + $0x2c] sm:$0xf]
      %v383 = vld [vmem:[%s343 + $0x30] sm:$0xf]
      %v384 = vld [vmem:[%s343 + $0x34] sm:$0xf]
      %v385 = vld [vmem:[%s2] sm:$0x3]
      %s386 = scalar_lea.vmem %s2, 2
      %v387 = vld [vmem:[%s386] sm:$0x3]
      %v398 = vunpack.c.l.b16 %v371
      %v399 = vunpack.c.l.b16 %v372
      %v400 = vunpack.c.l.b16 %v373
      %v401 = vunpack.c.l.b16 %v374
      %v402 = vunpack.c.l.b16 %v375
      %v403 = vunpack.c.l.b16 %v376
      %v404 = vunpack.c.l.b16 %v377
      %v405 = vunpack.c.l.b16 %v378
      %v406 = vunpack.c.l.b16 %v379
      %v407 = vunpack.c.l.b16 %v380
      %v408 = vpack.c.b16 %v399, %v398
      %v409 = vpack.c.b16 %v401, %v400
      %v410 = vpack.c.b16 %v403, %v402
      %v411 = vpack.c.b16 %v405, %v404
      %v412 = vpack.c.b16 %v407, %v406
      %vm413 = vsmask.f32 7424
      %v415 = vshrl.u32 %v408, 16
      %v417 = vshll.u32 %v408, 16
      %v419 = vrot.slane %v417, 1
      %v420 = vor.u32 %v415, %v419
      %v422 = vshll.u32 %v409, 16
      %v424 = vrot.slane %v422, 1
      %v425 = vsel %vm413, %v420, %v424
      %v426 = vshrl.u32 %v409, 16
      %v428 = vor.u32 %v426, %v424
      %v430 = vshll.u32 %v410, 16
      %v432 = vrot.slane %v430, 1
      %v433 = vsel %vm413, %v428, %v432
      %v434 = vshrl.u32 %v410, 16
      %v436 = vor.u32 %v434, %v432
      %v438 = vshll.u32 %v411, 16
      %v440 = vrot.slane %v438, 1
      %v441 = vsel %vm413, %v436, %v440
      %v442 = vshrl.u32 %v411, 16
      %v444 = vor.u32 %v442, %v440
      %v446 = vshll.u32 %v412, 16
      %v448 = vrot.slane %v446, 1
      %v449 = vsel %vm413, %v444, %v448
      %v450 = vshrl.u32 %v412, 16
      %v452 = vor.u32 %v450, %v448
      %vm453 = vcmask 31744
      %v455 = vsel %vm453, %v425, 0
      %v458 = vsel %vm453, %v433, 0
      %v461 = vsel %vm453, %v441, 0
      %v464 = vsel %vm453, %v449, 0
      %v467 = vsel %vm453, %v452, 0
      %vm469 = vcmask 1041408
      %v471 = vsel %vm469, %v387, 0
      %473 = vmatpush.bf16.msra.mxu0 0
      %474 = vmatpush.bf16.msra.mxu0 0
      %475 = vmatpush.bf16.msra.mxu0 0
      %476 = vmatpush.bf16.msra.mxu0 0
      %477 = vmatpush.bf16.msra.mxu0 0
      %478 = vmatpush.bf16.msra.mxu0 0
      %479 = vmatpush.bf16.msra.mxu0 0
      %480 = vmatpush.bf16.msra.mxu0 %v471
      %481 = vmatmul.bf16.gmra.mxu0 %v455
      %v482 = vpop.f32.mrf.mxu0
      %v483 = vadd.f32 0.0, %v482
      %v484 = vpop.f32.mrf.mxu0
      %v485 = vadd.f32 0.0, %v484
      %486 = vmatmul.bf16.gmra.mxu0 %v458
      %v487 = vpop.f32.mrf.mxu0
      %v488 = vadd.f32 0.0, %v487
      %v489 = vpop.f32.mrf.mxu0
      %v490 = vadd.f32 0.0, %v489
      %491 = vmatmul.bf16.gmra.mxu0 %v461
      %v492 = vpop.f32.mrf.mxu0
      %v493 = vadd.f32 0.0, %v492
      %v494 = vpop.f32.mrf.mxu0
      %v495 = vadd.f32 0.0, %v494
      %496 = vmatmul.bf16.gmra.mxu0 %v464
      %v497 = vpop.f32.mrf.mxu0
      %v498 = vadd.f32 0.0, %v497
      %v499 = vpop.f32.mrf.mxu0
      %v500 = vadd.f32 0.0, %v499
      %501 = vmatmul.bf16.gmra.mxu0 %v467
      %v502 = vpop.f32.mrf.mxu0
      %v503 = vadd.f32 0.0, %v502
      %v504 = vpop.f32.mrf.mxu0
      %505 = vdwg.mxu0
      %v506 = vpack.c.b16 %v406, %v406
      %v507 = vsel %vm453, %v408, 0
      %v509 = vsel %vm453, %v409, 0
      %v511 = vsel %vm453, %v410, 0
      %v513 = vsel %vm453, %v411, 0
      %v516 = vsel %vm453, %v506, 0
      %v519 = vsel %vm469, %v385, 0
      %521 = vmatpush.bf16.msra.mxu0 0
      %522 = vmatpush.bf16.msra.mxu0 0
      %523 = vmatpush.bf16.msra.mxu0 0
      %524 = vmatpush.bf16.msra.mxu0 0
      %525 = vmatpush.bf16.msra.mxu0 0
      %526 = vmatpush.bf16.msra.mxu0 0
      %527 = vmatpush.bf16.msra.mxu0 0
      %528 = vmatpush.bf16.msra.mxu0 %v519
      %529 = vmatmul.bf16.gmra.mxu0 %v507
      %v530 = vpop.f32.mrf.mxu0
      %v531 = vadd.f32 %v483, %v530
      %v532 = vpop.f32.mrf.mxu0
      %v533 = vadd.f32 %v485, %v532
      %534 = vmatmul.bf16.gmra.mxu0 %v509
      %v535 = vpop.f32.mrf.mxu0
      %v536 = vadd.f32 %v488, %v535
      %v537 = vpop.f32.mrf.mxu0
      %v538 = vadd.f32 %v490, %v537
      %539 = vmatmul.bf16.gmra.mxu0 %v511
      %v540 = vpop.f32.mrf.mxu0
      %v541 = vadd.f32 %v493, %v540
      %v542 = vpop.f32.mrf.mxu0
      %v543 = vadd.f32 %v495, %v542
      %544 = vmatmul.bf16.gmra.mxu0 %v513
      %v545 = vpop.f32.mrf.mxu0
      %v546 = vadd.f32 %v498, %v545
      %v547 = vpop.f32.mrf.mxu0
      %v548 = vadd.f32 %v500, %v547
      %549 = vmatmul.bf16.gmra.mxu0 %v516
      %v550 = vpop.f32.mrf.mxu0
      %v551 = vadd.f32 %v503, %v550
      %v552 = vpop.f32.mrf.mxu0
      %553 = vdwg.mxu0
      %s554 = scalar_lea.vmem %s2, 4
      %v555 = vld [vmem:[%s554] sm:$0x3]
      %vm556 = vcmask 1046528
      %v557 = vrot.slane %v408, 1
      %v558 = vrot.slane %v409, 1
      %v559 = vsel %vm556, %v557, %v558
      %v560 = vrot.slane %v410, 1
      %v561 = vsel %vm556, %v558, %v560
      %v562 = vrot.slane %v411, 1
      %v563 = vsel %vm556, %v560, %v562
      %v564 = vrot.slane %v412, 1
      %v565 = vsel %vm556, %v562, %v564
      %v567 = vsel %vm453, %v559, 0
      %v570 = vsel %vm453, %v561, 0
      %v573 = vsel %vm453, %v563, 0
      %v576 = vsel %vm453, %v565, 0
      %v579 = vsel %vm453, %v564, 0
      %v582 = vsel %vm469, %v555, 0
      %584 = vmatpush.bf16.msra.mxu0 0
      %585 = vmatpush.bf16.msra.mxu0 0
      %586 = vmatpush.bf16.msra.mxu0 0
      %587 = vmatpush.bf16.msra.mxu0 0
      %588 = vmatpush.bf16.msra.mxu0 0
      %589 = vmatpush.bf16.msra.mxu0 0
      %590 = vmatpush.bf16.msra.mxu0 0
      %591 = vmatpush.bf16.msra.mxu0 %v582
      %592 = vmatmul.bf16.gmra.mxu0 %v567
      %v593 = vpop.f32.mrf.mxu0
      %v594 = vadd.f32 0.0, %v593
      %v595 = vpop.f32.mrf.mxu0
      %v596 = vadd.f32 0.0, %v595
      %597 = vmatmul.bf16.gmra.mxu0 %v570
      %v598 = vpop.f32.mrf.mxu0
      %v599 = vadd.f32 0.0, %v598
      %v600 = vpop.f32.mrf.mxu0
      %v601 = vadd.f32 0.0, %v600
      %602 = vmatmul.bf16.gmra.mxu0 %v573
      %v603 = vpop.f32.mrf.mxu0
      %v604 = vadd.f32 0.0, %v603
      %v605 = vpop.f32.mrf.mxu0
      %v606 = vadd.f32 0.0, %v605
      %607 = vmatmul.bf16.gmra.mxu0 %v576
      %v608 = vpop.f32.mrf.mxu0
      %v609 = vadd.f32 0.0, %v608
      %v610 = vpop.f32.mrf.mxu0
      %v611 = vadd.f32 0.0, %v610
      %612 = vmatmul.bf16.gmra.mxu0 %v579
      %v613 = vpop.f32.mrf.mxu0
      %v614 = vadd.f32 0.0, %v613
      %v615 = vpop.f32.mrf.mxu0
      %616 = vdwg.mxu0
      %v617 = vadd.f32 %v531, %v594
      %v618 = vadd.f32 %v533, %v596
      %v619 = vadd.f32 %v536, %v599
      %v620 = vadd.f32 %v538, %v601
      %v621 = vadd.f32 %v541, %v604
      %v622 = vadd.f32 %v543, %v606
      %v623 = vadd.f32 %v546, %v609
      %v624 = vadd.f32 %v548, %v611
      %v625 = vadd.f32 %v551, %v614
      %s626 = scalar_lea.vmem %s2, 6
      %v627 = vld [vmem:[%s626] sm:$0x3]
      %v630 = vunpack.c.l.b16 %v381
      %v631 = vunpack.c.l.b16 %v382
      %v632 = vpack.c.b16 %v631, %v630
      %v633 = vrot.slane %v632, 1
      %v634 = vsel %vm556, %v564, %v633
      %v636 = vsel %vm453, %v634, 0
      %v639 = vsel %vm453, %v633, 0
      %v642 = vsel %vm469, %v627, 0
      %644 = vmatpush.bf16.msra.mxu0 0
      %645 = vmatpush.bf16.msra.mxu0 0
      %646 = vmatpush.bf16.msra.mxu0 0
      %647 = vmatpush.bf16.msra.mxu0 0
      %648 = vmatpush.bf16.msra.mxu0 0
      %649 = vmatpush.bf16.msra.mxu0 0
      %650 = vmatpush.bf16.msra.mxu0 0
      %651 = vmatpush.bf16.msra.mxu0 %v642
      %652 = vmatmul.bf16.gmra.mxu0 %v570
      %v653 = vpop.f32.mrf.mxu0
      %v654 = vadd.f32 0.0, %v653
      %v655 = vpop.f32.mrf.mxu0
      %v656 = vadd.f32 0.0, %v655
      %657 = vmatmul.bf16.gmra.mxu0 %v573
      %v658 = vpop.f32.mrf.mxu0
      %v659 = vadd.f32 0.0, %v658
      %v660 = vpop.f32.mrf.mxu0
      %v661 = vadd.f32 0.0, %v660
      %662 = vmatmul.bf16.gmra.mxu0 %v576
      %v663 = vpop.f32.mrf.mxu0
      %v664 = vadd.f32 0.0, %v663
      %v665 = vpop.f32.mrf.mxu0
      %v666 = vadd.f32 0.0, %v665
      %667 = vmatmul.bf16.gmra.mxu0 %v636
      %v668 = vpop.f32.mrf.mxu0
      %v669 = vadd.f32 0.0, %v668
      %v670 = vpop.f32.mrf.mxu0
      %v671 = vadd.f32 0.0, %v670
      %672 = vmatmul.bf16.gmra.mxu0 %v639
      %v673 = vpop.f32.mrf.mxu0
      %v674 = vadd.f32 0.0, %v673
      %v675 = vpop.f32.mrf.mxu0
      %676 = vdwg.mxu0
      %v677 = vadd.f32 %v617, %v654
      %v678 = vadd.f32 %v618, %v656
      %v679 = vadd.f32 %v619, %v659
      %v680 = vadd.f32 %v620, %v661
      %v681 = vadd.f32 %v621, %v664
      %v682 = vadd.f32 %v622, %v666
      %v683 = vadd.f32 %v623, %v669
      %v684 = vadd.f32 %v624, %v671
      %v685 = vadd.f32 %v625, %v674
      %s686 = scalar_lea.vmem %s2, 8
      %v687 = vld [vmem:[%s686] sm:$0x3]
      %vm688 = vsmask.f32 6400
      %v689 = vrot.slane %v426, 1
      %v690 = vrot.slane %v422, 2
      %v691 = vor.u32 %v689, %v690
      %v692 = vrot.slane %v434, 1
      %v693 = vrot.slane %v430, 2
      %v694 = vor.u32 %v692, %v693
      %v695 = vsel %vm688, %v691, %v694
      %v696 = vrot.slane %v442, 1
      %v697 = vrot.slane %v438, 2
      %v698 = vor.u32 %v696, %v697
      %v699 = vsel %vm688, %v694, %v698
      %v700 = vrot.slane %v450, 1
      %v701 = vrot.slane %v446, 2
      %v702 = vor.u32 %v700, %v701
      %v703 = vsel %vm688, %v698, %v702
      %v705 = vshrl.u32 %v632, 16
      %v707 = vrot.slane %v705, 1
      %v708 = vshll.u32 %v632, 16
      %v710 = vrot.slane %v708, 2
      %v711 = vor.u32 %v707, %v710
      %v712 = vsel %vm688, %v702, %v711
      %v714 = vsel %vm453, %v695, 0
      %v717 = vsel %vm453, %v699, 0
      %v720 = vsel %vm453, %v703, 0
      %v723 = vsel %vm453, %v712, 0
      %v726 = vsel %vm453, %v711, 0
      %v729 = vsel %vm469, %v687, 0
      %731 = vmatpush.bf16.msra.mxu0 0
      %732 = vmatpush.bf16.msra.mxu0 0
      %733 = vmatpush.bf16.msra.mxu0 0
      %734 = vmatpush.bf16.msra.mxu0 0
      %735 = vmatpush.bf16.msra.mxu0 0
      %736 = vmatpush.bf16.msra.mxu0 0
      %737 = vmatpush.bf16.msra.mxu0 0
      %738 = vmatpush.bf16.msra.mxu0 %v729
      %739 = vmatmul.bf16.gmra.mxu0 %v714
      %v740 = vpop.f32.mrf.mxu0
      %v741 = vadd.f32 0.0, %v740
      %v742 = vpop.f32.mrf.mxu0
      %v743 = vadd.f32 0.0, %v742
      %744 = vmatmul.bf16.gmra.mxu0 %v717
      %v745 = vpop.f32.mrf.mxu0
      %v746 = vadd.f32 0.0, %v745
      %v747 = vpop.f32.mrf.mxu0
      %v748 = vadd.f32 0.0, %v747
      %749 = vmatmul.bf16.gmra.mxu0 %v720
      %v750 = vpop.f32.mrf.mxu0
      %v751 = vadd.f32 0.0, %v750
      %v752 = vpop.f32.mrf.mxu0
      %v753 = vadd.f32 0.0, %v752
      %754 = vmatmul.bf16.gmra.mxu0 %v723
      %v755 = vpop.f32.mrf.mxu0
      %v756 = vadd.f32 0.0, %v755
      %v757 = vpop.f32.mrf.mxu0
      %v758 = vadd.f32 0.0, %v757
      %759 = vmatmul.bf16.gmra.mxu0 %v726
      %v760 = vpop.f32.mrf.mxu0
      %v761 = vadd.f32 0.0, %v760
      %v762 = vpop.f32.mrf.mxu0
      %763 = vdwg.mxu0
      %v764 = vadd.f32 %v677, %v741
      %v765 = vadd.f32 %v678, %v743
      %v766 = vadd.f32 %v679, %v746
      %v767 = vadd.f32 %v680, %v748
      %v768 = vadd.f32 %v681, %v751
      %v769 = vadd.f32 %v682, %v753
      %v770 = vadd.f32 %v683, %v756
      %v771 = vadd.f32 %v684, %v758
      %v772 = vadd.f32 %v685, %v761
      %s773 = scalar_lea.vmem %s2, 10
      %v774 = vld [vmem:[%s773] sm:$0x3]
      %vm775 = vcmask 1045504
      %v776 = vrot.slane %v409, 2
      %v777 = vrot.slane %v410, 2
      %v778 = vsel %vm775, %v776, %v777
      %v779 = vrot.slane %v411, 2
      %v780 = vsel %vm775, %v777, %v779
      %v781 = vrot.slane %v412, 2
      %v782 = vsel %vm775, %v779, %v781
      %v783 = vrot.slane %v632, 2
      %v784 = vsel %vm775, %v781, %v783
      %v786 = vsel %vm453, %v778, 0
      %v789 = vsel %vm453, %v780, 0
      %v792 = vsel %vm453, %v782, 0
      %v795 = vsel %vm453, %v784, 0
      %v798 = vsel %vm453, %v783, 0
      %v801 = vsel %vm469, %v774, 0
      %803 = vmatpush.bf16.msra.mxu0 0
      %804 = vmatpush.bf16.msra.mxu0 0
      %805 = vmatpush.bf16.msra.mxu0 0
      %806 = vmatpush.bf16.msra.mxu0 0
      %807 = vmatpush.bf16.msra.mxu0 0
      %808 = vmatpush.bf16.msra.mxu0 0
      %809 = vmatpush.bf16.msra.mxu0 0
      %810 = vmatpush.bf16.msra.mxu0 %v801
      %811 = vmatmul.bf16.gmra.mxu0 %v786
      %v812 = vpop.f32.mrf.mxu0
      %v813 = vadd.f32 0.0, %v812
      %v814 = vpop.f32.mrf.mxu0
      %v815 = vadd.f32 0.0, %v814
      %816 = vmatmul.bf16.gmra.mxu0 %v789
      %v817 = vpop.f32.mrf.mxu0
      %v818 = vadd.f32 0.0, %v817
      %v819 = vpop.f32.mrf.mxu0
      %v820 = vadd.f32 0.0, %v819
      %821 = vmatmul.bf16.gmra.mxu0 %v792
      %v822 = vpop.f32.mrf.mxu0
      %v823 = vadd.f32 0.0, %v822
      %v824 = vpop.f32.mrf.mxu0
      %v825 = vadd.f32 0.0, %v824
      %826 = vmatmul.bf16.gmra.mxu0 %v795
      %v827 = vpop.f32.mrf.mxu0
      %v828 = vadd.f32 0.0, %v827
      %v829 = vpop.f32.mrf.mxu0
      %v830 = vadd.f32 0.0, %v829
      %831 = vmatmul.bf16.gmra.mxu0 %v798
      %v832 = vpop.f32.mrf.mxu0
      %v833 = vadd.f32 0.0, %v832
      %v834 = vpop.f32.mrf.mxu0
      %835 = vdwg.mxu0
      %v836 = vadd.f32 %v764, %v813
      %v837 = vadd.f32 %v765, %v815
      %v838 = vadd.f32 %v766, %v818
      %v839 = vadd.f32 %v767, %v820
      %v840 = vadd.f32 %v768, %v823
      %v841 = vadd.f32 %v769, %v825
      %v842 = vadd.f32 %v770, %v828
      %v843 = vadd.f32 %v771, %v830
      %v844 = vadd.f32 %v772, %v833
      %s845 = scalar_lea.vmem %s2, 12
      %v846 = vld [vmem:[%s845] sm:$0x3]
      %v849 = vunpack.c.l.b16 %v383
      %v850 = vunpack.c.l.b16 %v384
      %v851 = vpack.c.b16 %v850, %v849
      %v852 = vrot.slane %v851, 2
      %v853 = vsel %vm775, %v783, %v852
      %v855 = vsel %vm453, %v853, 0
      %v858 = vsel %vm453, %v852, 0
      %v861 = vsel %vm469, %v846, 0
      %863 = vmatpush.bf16.msra.mxu0 0
      %864 = vmatpush.bf16.msra.mxu0 0
      %865 = vmatpush.bf16.msra.mxu0 0
      %866 = vmatpush.bf16.msra.mxu0 0
      %867 = vmatpush.bf16.msra.mxu0 0
      %868 = vmatpush.bf16.msra.mxu0 0
      %869 = vmatpush.bf16.msra.mxu0 0
      %870 = vmatpush.bf16.msra.mxu0 %v861
      %871 = vmatmul.bf16.gmra.mxu0 %v789
      %v872 = vpop.f32.mrf.mxu0
      %v873 = vadd.f32 0.0, %v872
      %v874 = vpop.f32.mrf.mxu0
      %v875 = vadd.f32 0.0, %v874
      %876 = vmatmul.bf16.gmra.mxu0 %v792
      %v877 = vpop.f32.mrf.mxu0
      %v878 = vadd.f32 0.0, %v877
      %v879 = vpop.f32.mrf.mxu0
      %v880 = vadd.f32 0.0, %v879
      %881 = vmatmul.bf16.gmra.mxu0 %v795
      %v882 = vpop.f32.mrf.mxu0
      %v883 = vadd.f32 0.0, %v882
      %v884 = vpop.f32.mrf.mxu0
      %v885 = vadd.f32 0.0, %v884
      %886 = vmatmul.bf16.gmra.mxu0 %v855
      %v887 = vpop.f32.mrf.mxu0
      %v888 = vadd.f32 0.0, %v887
      %v889 = vpop.f32.mrf.mxu0
      %v890 = vadd.f32 0.0, %v889
      %891 = vmatmul.bf16.gmra.mxu0 %v858
      %v892 = vpop.f32.mrf.mxu0
      %v893 = vadd.f32 0.0, %v892
      %v894 = vpop.f32.mrf.mxu0
      %895 = vdwg.mxu0
      %v896 = vadd.f32 %v836, %v873
      %v897 = vadd.f32 %v837, %v875
      %v898 = vadd.f32 %v838, %v878
      %v899 = vadd.f32 %v839, %v880
      %v900 = vadd.f32 %v840, %v883
      %v901 = vadd.f32 %v841, %v885
      %v902 = vadd.f32 %v842, %v888
      %v903 = vadd.f32 %v843, %v890
      %v904 = vadd.f32 %v844, %v893
      %s905 = scalar_lea.vmem %s2, 14
      %v906 = vld [vmem:[%s905] sm:$0x3]
      %vm907 = vsmask.f32 5376
      %v908 = vrot.slane %v434, 2
      %v909 = vrot.slane %v430, 3
      %v910 = vor.u32 %v908, %v909
      %v911 = vrot.slane %v442, 2
      %v912 = vrot.slane %v438, 3
      %v913 = vor.u32 %v911, %v912
      %v914 = vsel %vm907, %v910, %v913
      %v915 = vrot.slane %v450, 2
      %v916 = vrot.slane %v446, 3
      %v917 = vor.u32 %v915, %v916
      %v918 = vsel %vm907, %v913, %v917
      %v919 = vrot.slane %v705, 2
      %v920 = vrot.slane %v708, 3
      %v921 = vor.u32 %v919, %v920
      %v922 = vsel %vm907, %v917, %v921
      %v924 = vshrl.u32 %v851, 16
      %v926 = vrot.slane %v924, 2
      %v927 = vshll.u32 %v851, 16
      %v929 = vrot.slane %v927, 3
      %v930 = vor.u32 %v926, %v929
      %v931 = vsel %vm907, %v921, %v930
      %v933 = vsel %vm453, %v914, 0
      %v936 = vsel %vm453, %v918, 0
      %v939 = vsel %vm453, %v922, 0
      %v942 = vsel %vm453, %v931, 0
      %v945 = vsel %vm453, %v930, 0
      %v948 = vsel %vm469, %v906, 0
      %950 = vmatpush.bf16.msra.mxu0 0
      %951 = vmatpush.bf16.msra.mxu0 0
      %952 = vmatpush.bf16.msra.mxu0 0
      %953 = vmatpush.bf16.msra.mxu0 0
      %954 = vmatpush.bf16.msra.mxu0 0
      %955 = vmatpush.bf16.msra.mxu0 0
      %956 = vmatpush.bf16.msra.mxu0 0
      %957 = vmatpush.bf16.msra.mxu0 %v948
      %958 = vmatmul.bf16.gmra.mxu0 %v933
      %v959 = vpop.f32.mrf.mxu0
      %v960 = vadd.f32 0.0, %v959
      %v961 = vpop.f32.mrf.mxu0
      %v962 = vadd.f32 0.0, %v961
      %963 = vmatmul.bf16.gmra.mxu0 %v936
      %v964 = vpop.f32.mrf.mxu0
      %v965 = vadd.f32 0.0, %v964
      %v966 = vpop.f32.mrf.mxu0
      %v967 = vadd.f32 0.0, %v966
      %968 = vmatmul.bf16.gmra.mxu0 %v939
      %v969 = vpop.f32.mrf.mxu0
      %v970 = vadd.f32 0.0, %v969
      %v971 = vpop.f32.mrf.mxu0
      %v972 = vadd.f32 0.0, %v971
      %973 = vmatmul.bf16.gmra.mxu0 %v942
      %v974 = vpop.f32.mrf.mxu0
      %v975 = vadd.f32 0.0, %v974
      %v976 = vpop.f32.mrf.mxu0
      %v977 = vadd.f32 0.0, %v976
      %978 = vmatmul.bf16.gmra.mxu0 %v945
      %v979 = vpop.f32.mrf.mxu0
      %v980 = vadd.f32 0.0, %v979
      %v981 = vpop.f32.mrf.mxu0
      %982 = vdwg.mxu0
      %v983 = vadd.f32 %v896, %v960
      %v984 = vadd.f32 %v897, %v962
      %v985 = vadd.f32 %v898, %v965
      %v986 = vadd.f32 %v899, %v967
      %v987 = vadd.f32 %v900, %v970
      %v988 = vadd.f32 %v901, %v972
      %v989 = vadd.f32 %v902, %v975
      %v990 = vadd.f32 %v903, %v977
      %v991 = vadd.f32 %v904, %v980
      %s992 = scalar_lea.vmem %s2, 16
      %v993 = vld [vmem:[%s992] sm:$0x3]
      %vm994 = vcmask 1044480
      %v995 = vrot.slane %v410, 3
      %v996 = vrot.slane %v411, 3
      %v997 = vsel %vm994, %v995, %v996
      %v998 = vrot.slane %v412, 3
      %v999 = vsel %vm994, %v996, %v998
      %v1000 = vrot.slane %v632, 3
      %v1001 = vsel %vm994, %v998, %v1000
      %v1002 = vrot.slane %v851, 3
      %v1003 = vsel %vm994, %v1000, %v1002
      %v1005 = vsel %vm453, %v997, 0
      %v1008 = vsel %vm453, %v999, 0
      %v1011 = vsel %vm453, %v1001, 0
      %v1014 = vsel %vm453, %v1003, 0
      %v1017 = vsel %vm453, %v1002, 0
      %v1020 = vsel %vm469, %v993, 0
      %1022 = vmatpush.bf16.msra.mxu0 0
      %1023 = vmatpush.bf16.msra.mxu0 0
      %1024 = vmatpush.bf16.msra.mxu0 0
      %1025 = vmatpush.bf16.msra.mxu0 0
      %1026 = vmatpush.bf16.msra.mxu0 0
      %1027 = vmatpush.bf16.msra.mxu0 0
      %1028 = vmatpush.bf16.msra.mxu0 0
      %1029 = vmatpush.bf16.msra.mxu0 %v1020
      %1030 = vmatmul.bf16.gmra.mxu0 %v1005
      %v1031 = vpop.f32.mrf.mxu0
      %v1032 = vadd.f32 0.0, %v1031
      %v1033 = vpop.f32.mrf.mxu0
      %v1034 = vadd.f32 0.0, %v1033
      %1035 = vmatmul.bf16.gmra.mxu0 %v1008
      %v1036 = vpop.f32.mrf.mxu0
      %v1037 = vadd.f32 0.0, %v1036
      %v1038 = vpop.f32.mrf.mxu0
      %v1039 = vadd.f32 0.0, %v1038
      %1040 = vmatmul.bf16.gmra.mxu0 %v1011
      %v1041 = vpop.f32.mrf.mxu0
      %v1042 = vadd.f32 0.0, %v1041
      %v1043 = vpop.f32.mrf.mxu0
      %v1044 = vadd.f32 0.0, %v1043
      %1045 = vmatmul.bf16.gmra.mxu0 %v1014
      %v1046 = vpop.f32.mrf.mxu0
      %v1047 = vadd.f32 0.0, %v1046
      %v1048 = vpop.f32.mrf.mxu0
      %v1049 = vadd.f32 0.0, %v1048
      %1050 = vmatmul.bf16.gmra.mxu0 %v1017
      %v1051 = vpop.f32.mrf.mxu0
      %v1052 = vadd.f32 0.0, %v1051
      %v1053 = vpop.f32.mrf.mxu0
      %1054 = vdwg.mxu0
      %v1055 = vadd.f32 %v983, %v1032
      %v1056 = vadd.f32 %v984, %v1034
      %v1057 = vadd.f32 %v985, %v1037
      %v1058 = vadd.f32 %v986, %v1039
      %v1059 = vadd.f32 %v987, %v1042
      %v1060 = vadd.f32 %v988, %v1044
      %v1061 = vadd.f32 %v989, %v1047
      %v1062 = vadd.f32 %v990, %v1049
      %v1063 = vadd.f32 %v991, %v1052
      %v1064 = vld [vmem:[%s352] sm:$0xf]
      %v1065 = vld [vmem:[%s352 + $0x4] sm:$0xf]
      %v1066 = vld [vmem:[%s352 + $0x8] sm:$0xf]
      %v1067 = vld [vmem:[%s352 + $0xc] sm:$0xf]
      %v1068 = vld [vmem:[%s352 + $0x10] sm:$0xf]
      %v1069 = vld [vmem:[%s352 + $0x14] sm:$0xf]
      %v1070 = vld [vmem:[%s352 + $0x18] sm:$0xf]
      %v1071 = vld [vmem:[%s352 + $0x1c] sm:$0xf]
      %v1072 = vld [vmem:[%s352 + $0x20] sm:$0xf]
      %v1073 = vld [vmem:[%s352 + $0x24] sm:$0xf]
      %v1074 = vld [vmem:[%s352 + $0x28] sm:$0xf]
      %v1075 = vld [vmem:[%s352 + $0x2c] sm:$0xf]
      %v1076 = vld [vmem:[%s352 + $0x30] sm:$0xf]
      %v1077 = vld [vmem:[%s352 + $0x34] sm:$0xf]
      %v1078 = vld [vmem:[%s3] sm:$0x3]
      %v1088 = vunpack.c.l.b16 %v1064
      %v1089 = vunpack.c.l.b16 %v1065
      %v1090 = vunpack.c.l.b16 %v1066
      %v1091 = vunpack.c.l.b16 %v1067
      %v1092 = vunpack.c.l.b16 %v1068
      %v1093 = vunpack.c.l.b16 %v1069
      %v1094 = vunpack.c.l.b16 %v1070
      %v1095 = vunpack.c.l.b16 %v1071
      %v1096 = vunpack.c.l.b16 %v1072
      %v1097 = vpack.c.b16 %v1089, %v1088
      %v1098 = vpack.c.b16 %v1091, %v1090
      %v1099 = vpack.c.b16 %v1093, %v1092
      %v1100 = vpack.c.b16 %v1095, %v1094
      %v1101 = vpack.c.b16 %v1096, %v1096
      %v1103 = vsel %vm453, %v1097, 0
      %v1106 = vsel %vm453, %v1098, 0
      %v1109 = vsel %vm453, %v1099, 0
      %v1112 = vsel %vm453, %v1100, 0
      %v1115 = vsel %vm453, %v1101, 0
      %v1118 = vsel %vm469, %v1078, 0
      %1120 = vmatpush.bf16.msra.mxu0 0
      %1121 = vmatpush.bf16.msra.mxu0 0
      %1122 = vmatpush.bf16.msra.mxu0 0
      %1123 = vmatpush.bf16.msra.mxu0 0
      %1124 = vmatpush.bf16.msra.mxu0 0
      %1125 = vmatpush.bf16.msra.mxu0 0
      %1126 = vmatpush.bf16.msra.mxu0 0
      %1127 = vmatpush.bf16.msra.mxu0 %v1118
      %1128 = vmatmul.bf16.gmra.mxu0 %v1103
      %v1129 = vpop.f32.mrf.mxu0
      %v1130 = vadd.f32 0.0, %v1129
      %v1131 = vpop.f32.mrf.mxu0
      %v1132 = vadd.f32 0.0, %v1131
      %1133 = vmatmul.bf16.gmra.mxu0 %v1106
      %v1134 = vpop.f32.mrf.mxu0
      %v1135 = vadd.f32 0.0, %v1134
      %v1136 = vpop.f32.mrf.mxu0
      %v1137 = vadd.f32 0.0, %v1136
      %1138 = vmatmul.bf16.gmra.mxu0 %v1109
      %v1139 = vpop.f32.mrf.mxu0
      %v1140 = vadd.f32 0.0, %v1139
      %v1141 = vpop.f32.mrf.mxu0
      %v1142 = vadd.f32 0.0, %v1141
      %1143 = vmatmul.bf16.gmra.mxu0 %v1112
      %v1144 = vpop.f32.mrf.mxu0
      %v1145 = vadd.f32 0.0, %v1144
      %v1146 = vpop.f32.mrf.mxu0
      %v1147 = vadd.f32 0.0, %v1146
      %1148 = vmatmul.bf16.gmra.mxu0 %v1115
      %v1149 = vpop.f32.mrf.mxu0
      %v1150 = vadd.f32 0.0, %v1149
      %v1151 = vpop.f32.mrf.mxu0
      %1152 = vdwg.mxu0
      %v1153 = vadd.f32 %v1055, %v1130
      %v1154 = vadd.f32 %v1056, %v1132
      %v1155 = vadd.f32 %v1057, %v1135
      %v1156 = vadd.f32 %v1058, %v1137
      %v1157 = vadd.f32 %v1059, %v1140
      %v1158 = vadd.f32 %v1060, %v1142
      %v1159 = vadd.f32 %v1061, %v1145
      %v1160 = vadd.f32 %v1062, %v1147
      %v1161 = vadd.f32 %v1063, %v1150
      %s1162 = scalar_lea.vmem %s3, 2
      %v1163 = vld [vmem:[%s1162] sm:$0x3]
      %v1165 = vunpack.c.l.b16 %v1073
      %v1166 = vpack.c.b16 %v1165, %v1096
      %v1167 = vshrl.u32 %v1097, 16
      %v1169 = vshll.u32 %v1097, 16
      %v1171 = vrot.slane %v1169, 1
      %v1172 = vor.u32 %v1167, %v1171
      %v1173 = vshll.u32 %v1098, 16
      %v1175 = vrot.slane %v1173, 1
      %v1176 = vsel %vm413, %v1172, %v1175
      %v1177 = vshrl.u32 %v1098, 16
      %v1179 = vor.u32 %v1177, %v1175
      %v1180 = vshll.u32 %v1099, 16
      %v1182 = vrot.slane %v1180, 1
      %v1183 = vsel %vm413, %v1179, %v1182
      %v1184 = vshrl.u32 %v1099, 16
      %v1186 = vor.u32 %v1184, %v1182
      %v1187 = vshll.u32 %v1100, 16
      %v1189 = vrot.slane %v1187, 1
      %v1190 = vsel %vm413, %v1186, %v1189
      %v1191 = vshrl.u32 %v1100, 16
      %v1193 = vor.u32 %v1191, %v1189
      %v1195 = vshll.u32 %v1166, 16
      %v1197 = vrot.slane %v1195, 1
      %v1198 = vsel %vm413, %v1193, %v1197
      %v1199 = vshrl.u32 %v1166, 16
      %v1201 = vor.u32 %v1199, %v1197
      %v1203 = vsel %vm453, %v1176, 0
      %v1206 = vsel %vm453, %v1183, 0
      %v1209 = vsel %vm453, %v1190, 0
      %v1212 = vsel %vm453, %v1198, 0
      %v1215 = vsel %vm453, %v1201, 0
      %v1218 = vsel %vm469, %v1163, 0
      %1220 = vmatpush.bf16.msra.mxu0 0
      %1221 = vmatpush.bf16.msra.mxu0 0
      %1222 = vmatpush.bf16.msra.mxu0 0
      %1223 = vmatpush.bf16.msra.mxu0 0
      %1224 = vmatpush.bf16.msra.mxu0 0
      %1225 = vmatpush.bf16.msra.mxu0 0
      %1226 = vmatpush.bf16.msra.mxu0 0
      %1227 = vmatpush.bf16.msra.mxu0 %v1218
      %1228 = vmatmul.bf16.gmra.mxu0 %v1203
      %v1229 = vpop.f32.mrf.mxu0
      %v1230 = vadd.f32 0.0, %v1229
      %v1231 = vpop.f32.mrf.mxu0
      %v1232 = vadd.f32 0.0, %v1231
      %1233 = vmatmul.bf16.gmra.mxu0 %v1206
      %v1234 = vpop.f32.mrf.mxu0
      %v1235 = vadd.f32 0.0, %v1234
      %v1236 = vpop.f32.mrf.mxu0
      %v1237 = vadd.f32 0.0, %v1236
      %1238 = vmatmul.bf16.gmra.mxu0 %v1209
      %v1239 = vpop.f32.mrf.mxu0
      %v1240 = vadd.f32 0.0, %v1239
      %v1241 = vpop.f32.mrf.mxu0
      %v1242 = vadd.f32 0.0, %v1241
      %1243 = vmatmul.bf16.gmra.mxu0 %v1212
      %v1244 = vpop.f32.mrf.mxu0
      %v1245 = vadd.f32 0.0, %v1244
      %v1246 = vpop.f32.mrf.mxu0
      %v1247 = vadd.f32 0.0, %v1246
      %1248 = vmatmul.bf16.gmra.mxu0 %v1215
      %v1249 = vpop.f32.mrf.mxu0
      %v1250 = vadd.f32 0.0, %v1249
      %v1251 = vpop.f32.mrf.mxu0
      %1252 = vdwg.mxu0
      %v1253 = vadd.f32 %v1153, %v1230
      %v1254 = vadd.f32 %v1154, %v1232
      %v1255 = vadd.f32 %v1155, %v1235
      %v1256 = vadd.f32 %v1156, %v1237
      %v1257 = vadd.f32 %v1157, %v1240
      %v1258 = vadd.f32 %v1158, %v1242
      %v1259 = vadd.f32 %v1159, %v1245
      %v1260 = vadd.f32 %v1160, %v1247
      %v1261 = vadd.f32 %v1161, %v1250
      %s1262 = scalar_lea.vmem %s3, 4
      %v1263 = vld [vmem:[%s1262] sm:$0x3]
      %v1264 = vrot.slane %v1097, 1
      %v1265 = vrot.slane %v1098, 1
      %v1266 = vsel %vm556, %v1264, %v1265
      %v1267 = vrot.slane %v1099, 1
      %v1268 = vsel %vm556, %v1265, %v1267
      %v1269 = vrot.slane %v1100, 1
      %v1270 = vsel %vm556, %v1267, %v1269
      %v1271 = vrot.slane %v1166, 1
      %v1272 = vsel %vm556, %v1269, %v1271
      %v1274 = vsel %vm453, %v1266, 0
      %v1277 = vsel %vm453, %v1268, 0
      %v1280 = vsel %vm453, %v1270, 0
      %v1283 = vsel %vm453, %v1272, 0
      %v1286 = vsel %vm453, %v1271, 0
      %v1289 = vsel %vm469, %v1263, 0
      %1291 = vmatpush.bf16.msra.mxu0 0
      %1292 = vmatpush.bf16.msra.mxu0 0
      %1293 = vmatpush.bf16.msra.mxu0 0
      %1294 = vmatpush.bf16.msra.mxu0 0
      %1295 = vmatpush.bf16.msra.mxu0 0
      %1296 = vmatpush.bf16.msra.mxu0 0
      %1297 = vmatpush.bf16.msra.mxu0 0
      %1298 = vmatpush.bf16.msra.mxu0 %v1289
      %1299 = vmatmul.bf16.gmra.mxu0 %v1274
      %v1300 = vpop.f32.mrf.mxu0
      %v1301 = vadd.f32 0.0, %v1300
      %v1302 = vpop.f32.mrf.mxu0
      %v1303 = vadd.f32 0.0, %v1302
      %1304 = vmatmul.bf16.gmra.mxu0 %v1277
      %v1305 = vpop.f32.mrf.mxu0
      %v1306 = vadd.f32 0.0, %v1305
      %v1307 = vpop.f32.mrf.mxu0
      %v1308 = vadd.f32 0.0, %v1307
      %1309 = vmatmul.bf16.gmra.mxu0 %v1280
      %v1310 = vpop.f32.mrf.mxu0
      %v1311 = vadd.f32 0.0, %v1310
      %v1312 = vpop.f32.mrf.mxu0
      %v1313 = vadd.f32 0.0, %v1312
      %1314 = vmatmul.bf16.gmra.mxu0 %v1283
      %v1315 = vpop.f32.mrf.mxu0
      %v1316 = vadd.f32 0.0, %v1315
      %v1317 = vpop.f32.mrf.mxu0
      %v1318 = vadd.f32 0.0, %v1317
      %1319 = vmatmul.bf16.gmra.mxu0 %v1286
      %v1320 = vpop.f32.mrf.mxu0
      %v1321 = vadd.f32 0.0, %v1320
      %v1322 = vpop.f32.mrf.mxu0
      %1323 = vdwg.mxu0
      %v1324 = vadd.f32 %v1253, %v1301
      %v1325 = vadd.f32 %v1254, %v1303
      %v1326 = vadd.f32 %v1255, %v1306
      %v1327 = vadd.f32 %v1256, %v1308
      %v1328 = vadd.f32 %v1257, %v1311
      %v1329 = vadd.f32 %v1258, %v1313
      %v1330 = vadd.f32 %v1259, %v1316
      %v1331 = vadd.f32 %v1260, %v1318
      %v1332 = vadd.f32 %v1261, %v1321
      %s1333 = scalar_lea.vmem %s3, 6
      %v1334 = vld [vmem:[%s1333] sm:$0x3]
      %v1337 = vunpack.c.l.b16 %v1074
      %v1338 = vunpack.c.l.b16 %v1075
      %v1339 = vpack.c.b16 %v1338, %v1337
      %v1340 = vrot.slane %v1339, 1
      %v1341 = vsel %vm556, %v1271, %v1340
      %v1343 = vsel %vm453, %v1341, 0
      %v1346 = vsel %vm453, %v1340, 0
      %v1349 = vsel %vm469, %v1334, 0
      %1351 = vmatpush.bf16.msra.mxu0 0
      %1352 = vmatpush.bf16.msra.mxu0 0
      %1353 = vmatpush.bf16.msra.mxu0 0
      %1354 = vmatpush.bf16.msra.mxu0 0
      %1355 = vmatpush.bf16.msra.mxu0 0
      %1356 = vmatpush.bf16.msra.mxu0 0
      %1357 = vmatpush.bf16.msra.mxu0 0
      %1358 = vmatpush.bf16.msra.mxu0 %v1349
      %1359 = vmatmul.bf16.gmra.mxu0 %v1277
      %v1360 = vpop.f32.mrf.mxu0
      %v1361 = vadd.f32 0.0, %v1360
      %v1362 = vpop.f32.mrf.mxu0
      %v1363 = vadd.f32 0.0, %v1362
      %1364 = vmatmul.bf16.gmra.mxu0 %v1280
      %v1365 = vpop.f32.mrf.mxu0
      %v1366 = vadd.f32 0.0, %v1365
      %v1367 = vpop.f32.mrf.mxu0
      %v1368 = vadd.f32 0.0, %v1367
      %1369 = vmatmul.bf16.gmra.mxu0 %v1283
      %v1370 = vpop.f32.mrf.mxu0
      %v1371 = vadd.f32 0.0, %v1370
      %v1372 = vpop.f32.mrf.mxu0
      %v1373 = vadd.f32 0.0, %v1372
      %1374 = vmatmul.bf16.gmra.mxu0 %v1343
      %v1375 = vpop.f32.mrf.mxu0
      %v1376 = vadd.f32 0.0, %v1375
      %v1377 = vpop.f32.mrf.mxu0
      %v1378 = vadd.f32 0.0, %v1377
      %1379 = vmatmul.bf16.gmra.mxu0 %v1346
      %v1380 = vpop.f32.mrf.mxu0
      %v1381 = vadd.f32 0.0, %v1380
      %v1382 = vpop.f32.mrf.mxu0
      %1383 = vdwg.mxu0
      %v1384 = vadd.f32 %v1324, %v1361
      %v1385 = vadd.f32 %v1325, %v1363
      %v1386 = vadd.f32 %v1326, %v1366
      %v1387 = vadd.f32 %v1327, %v1368
      %v1388 = vadd.f32 %v1328, %v1371
      %v1389 = vadd.f32 %v1329, %v1373
      %v1390 = vadd.f32 %v1330, %v1376
      %v1391 = vadd.f32 %v1331, %v1378
      %v1392 = vadd.f32 %v1332, %v1381
      %s1393 = scalar_lea.vmem %s3, 8
      %v1394 = vld [vmem:[%s1393] sm:$0x3]
      %v1395 = vrot.slane %v1177, 1
      %v1396 = vrot.slane %v1173, 2
      %v1397 = vor.u32 %v1395, %v1396
      %v1398 = vrot.slane %v1184, 1
      %v1399 = vrot.slane %v1180, 2
      %v1400 = vor.u32 %v1398, %v1399
      %v1401 = vsel %vm688, %v1397, %v1400
      %v1402 = vrot.slane %v1191, 1
      %v1403 = vrot.slane %v1187, 2
      %v1404 = vor.u32 %v1402, %v1403
      %v1405 = vsel %vm688, %v1400, %v1404
      %v1406 = vrot.slane %v1199, 1
      %v1407 = vrot.slane %v1195, 2
      %v1408 = vor.u32 %v1406, %v1407
      %v1409 = vsel %vm688, %v1404, %v1408
      %v1411 = vshrl.u32 %v1339, 16
      %v1413 = vrot.slane %v1411, 1
      %v1414 = vshll.u32 %v1339, 16
      %v1416 = vrot.slane %v1414, 2
      %v1417 = vor.u32 %v1413, %v1416
      %v1418 = vsel %vm688, %v1408, %v1417
      %v1420 = vsel %vm453, %v1401, 0
      %v1423 = vsel %vm453, %v1405, 0
      %v1426 = vsel %vm453, %v1409, 0
      %v1429 = vsel %vm453, %v1418, 0
      %v1432 = vsel %vm453, %v1417, 0
      %v1435 = vsel %vm469, %v1394, 0
      %1437 = vmatpush.bf16.msra.mxu0 0
      %1438 = vmatpush.bf16.msra.mxu0 0
      %1439 = vmatpush.bf16.msra.mxu0 0
      %1440 = vmatpush.bf16.msra.mxu0 0
      %1441 = vmatpush.bf16.msra.mxu0 0
      %1442 = vmatpush.bf16.msra.mxu0 0
      %1443 = vmatpush.bf16.msra.mxu0 0
      %1444 = vmatpush.bf16.msra.mxu0 %v1435
      %1445 = vmatmul.bf16.gmra.mxu0 %v1420
      %v1446 = vpop.f32.mrf.mxu0
      %v1447 = vadd.f32 0.0, %v1446
      %v1448 = vpop.f32.mrf.mxu0
      %v1449 = vadd.f32 0.0, %v1448
      %1450 = vmatmul.bf16.gmra.mxu0 %v1423
      %v1451 = vpop.f32.mrf.mxu0
      %v1452 = vadd.f32 0.0, %v1451
      %v1453 = vpop.f32.mrf.mxu0
      %v1454 = vadd.f32 0.0, %v1453
      %1455 = vmatmul.bf16.gmra.mxu0 %v1426
      %v1456 = vpop.f32.mrf.mxu0
      %v1457 = vadd.f32 0.0, %v1456
      %v1458 = vpop.f32.mrf.mxu0
      %v1459 = vadd.f32 0.0, %v1458
      %1460 = vmatmul.bf16.gmra.mxu0 %v1429
      %v1461 = vpop.f32.mrf.mxu0
      %v1462 = vadd.f32 0.0, %v1461
      %v1463 = vpop.f32.mrf.mxu0
      %v1464 = vadd.f32 0.0, %v1463
      %1465 = vmatmul.bf16.gmra.mxu0 %v1432
      %v1466 = vpop.f32.mrf.mxu0
      %v1467 = vadd.f32 0.0, %v1466
      %v1468 = vpop.f32.mrf.mxu0
      %1469 = vdwg.mxu0
      %v1470 = vadd.f32 %v1384, %v1447
      %v1471 = vadd.f32 %v1385, %v1449
      %v1472 = vadd.f32 %v1386, %v1452
      %v1473 = vadd.f32 %v1387, %v1454
      %v1474 = vadd.f32 %v1388, %v1457
      %v1475 = vadd.f32 %v1389, %v1459
      %v1476 = vadd.f32 %v1390, %v1462
      %v1477 = vadd.f32 %v1391, %v1464
      %v1478 = vadd.f32 %v1392, %v1467
      %s1479 = scalar_lea.vmem %s3, 10
      %v1480 = vld [vmem:[%s1479] sm:$0x3]
      %v1481 = vrot.slane %v1098, 2
      %v1482 = vrot.slane %v1099, 2
      %v1483 = vsel %vm775, %v1481, %v1482
      %v1484 = vrot.slane %v1100, 2
      %v1485 = vsel %vm775, %v1482, %v1484
      %v1486 = vrot.slane %v1166, 2
      %v1487 = vsel %vm775, %v1484, %v1486
      %v1488 = vrot.slane %v1339, 2
      %v1489 = vsel %vm775, %v1486, %v1488
      %v1491 = vsel %vm453, %v1483, 0
      %v1494 = vsel %vm453, %v1485, 0
      %v1497 = vsel %vm453, %v1487, 0
      %v1500 = vsel %vm453, %v1489, 0
      %v1503 = vsel %vm453, %v1488, 0
      %v1506 = vsel %vm469, %v1480, 0
      %1508 = vmatpush.bf16.msra.mxu0 0
      %1509 = vmatpush.bf16.msra.mxu0 0
      %1510 = vmatpush.bf16.msra.mxu0 0
      %1511 = vmatpush.bf16.msra.mxu0 0
      %1512 = vmatpush.bf16.msra.mxu0 0
      %1513 = vmatpush.bf16.msra.mxu0 0
      %1514 = vmatpush.bf16.msra.mxu0 0
      %1515 = vmatpush.bf16.msra.mxu0 %v1506
      %1516 = vmatmul.bf16.gmra.mxu0 %v1491
      %v1517 = vpop.f32.mrf.mxu0
      %v1518 = vadd.f32 0.0, %v1517
      %v1519 = vpop.f32.mrf.mxu0
      %v1520 = vadd.f32 0.0, %v1519
      %1521 = vmatmul.bf16.gmra.mxu0 %v1494
      %v1522 = vpop.f32.mrf.mxu0
      %v1523 = vadd.f32 0.0, %v1522
      %v1524 = vpop.f32.mrf.mxu0
      %v1525 = vadd.f32 0.0, %v1524
      %1526 = vmatmul.bf16.gmra.mxu0 %v1497
      %v1527 = vpop.f32.mrf.mxu0
      %v1528 = vadd.f32 0.0, %v1527
      %v1529 = vpop.f32.mrf.mxu0
      %v1530 = vadd.f32 0.0, %v1529
      %1531 = vmatmul.bf16.gmra.mxu0 %v1500
      %v1532 = vpop.f32.mrf.mxu0
      %v1533 = vadd.f32 0.0, %v1532
      %v1534 = vpop.f32.mrf.mxu0
      %v1535 = vadd.f32 0.0, %v1534
      %1536 = vmatmul.bf16.gmra.mxu0 %v1503
      %v1537 = vpop.f32.mrf.mxu0
      %v1538 = vadd.f32 0.0, %v1537
      %v1539 = vpop.f32.mrf.mxu0
      %1540 = vdwg.mxu0
      %v1541 = vadd.f32 %v1470, %v1518
      %v1542 = vadd.f32 %v1471, %v1520
      %v1543 = vadd.f32 %v1472, %v1523
      %v1544 = vadd.f32 %v1473, %v1525
      %v1545 = vadd.f32 %v1474, %v1528
      %v1546 = vadd.f32 %v1475, %v1530
      %v1547 = vadd.f32 %v1476, %v1533
      %v1548 = vadd.f32 %v1477, %v1535
      %v1549 = vadd.f32 %v1478, %v1538
      %s1550 = scalar_lea.vmem %s3, 12
      %v1551 = vld [vmem:[%s1550] sm:$0x3]
      %v1554 = vunpack.c.l.b16 %v1076
      %v1555 = vunpack.c.l.b16 %v1077
      %v1556 = vpack.c.b16 %v1555, %v1554
      %v1557 = vrot.slane %v1556, 2
      %v1558 = vsel %vm775, %v1488, %v1557
      %v1560 = vsel %vm453, %v1558, 0
      %v1563 = vsel %vm453, %v1557, 0
      %v1566 = vsel %vm469, %v1551, 0
      %1568 = vmatpush.bf16.msra.mxu0 0
      %1569 = vmatpush.bf16.msra.mxu0 0
      %1570 = vmatpush.bf16.msra.mxu0 0
      %1571 = vmatpush.bf16.msra.mxu0 0
      %1572 = vmatpush.bf16.msra.mxu0 0
      %1573 = vmatpush.bf16.msra.mxu0 0
      %1574 = vmatpush.bf16.msra.mxu0 0
      %1575 = vmatpush.bf16.msra.mxu0 %v1566
      %1576 = vmatmul.bf16.gmra.mxu0 %v1494
      %v1577 = vpop.f32.mrf.mxu0
      %v1578 = vadd.f32 0.0, %v1577
      %v1579 = vpop.f32.mrf.mxu0
      %v1580 = vadd.f32 0.0, %v1579
      %1581 = vmatmul.bf16.gmra.mxu0 %v1497
      %v1582 = vpop.f32.mrf.mxu0
      %v1583 = vadd.f32 0.0, %v1582
      %v1584 = vpop.f32.mrf.mxu0
      %v1585 = vadd.f32 0.0, %v1584
      %1586 = vmatmul.bf16.gmra.mxu0 %v1500
      %v1587 = vpop.f32.mrf.mxu0
      %v1588 = vadd.f32 0.0, %v1587
      %v1589 = vpop.f32.mrf.mxu0
      %v1590 = vadd.f32 0.0, %v1589
      %1591 = vmatmul.bf16.gmra.mxu0 %v1560
      %v1592 = vpop.f32.mrf.mxu0
      %v1593 = vadd.f32 0.0, %v1592
      %v1594 = vpop.f32.mrf.mxu0
      %v1595 = vadd.f32 0.0, %v1594
      %1596 = vmatmul.bf16.gmra.mxu0 %v1563
      %v1597 = vpop.f32.mrf.mxu0
      %v1598 = vadd.f32 0.0, %v1597
      %v1599 = vpop.f32.mrf.mxu0
      %1600 = vdwg.mxu0
      %v1601 = vadd.f32 %v1541, %v1578
      %v1602 = vadd.f32 %v1542, %v1580
      %v1603 = vadd.f32 %v1543, %v1583
      %v1604 = vadd.f32 %v1544, %v1585
      %v1605 = vadd.f32 %v1545, %v1588
      %v1606 = vadd.f32 %v1546, %v1590
      %v1607 = vadd.f32 %v1547, %v1593
      %v1608 = vadd.f32 %v1548, %v1595
      %v1609 = vadd.f32 %v1549, %v1598
      %s1610 = scalar_lea.vmem %s3, 14
      %v1611 = vld [vmem:[%s1610] sm:$0x3]
      %v1612 = vrot.slane %v1184, 2
      %v1613 = vrot.slane %v1180, 3
      %v1614 = vor.u32 %v1612, %v1613
      %v1615 = vrot.slane %v1191, 2
      %v1616 = vrot.slane %v1187, 3
      %v1617 = vor.u32 %v1615, %v1616
      %v1618 = vsel %vm907, %v1614, %v1617
      %v1619 = vrot.slane %v1199, 2
      %v1620 = vrot.slane %v1195, 3
      %v1621 = vor.u32 %v1619, %v1620
      %v1622 = vsel %vm907, %v1617, %v1621
      %v1623 = vrot.slane %v1411, 2
      %v1624 = vrot.slane %v1414, 3
      %v1625 = vor.u32 %v1623, %v1624
      %v1626 = vsel %vm907, %v1621, %v1625
      %v1628 = vshrl.u32 %v1556, 16
      %v1630 = vrot.slane %v1628, 2
      %v1631 = vshll.u32 %v1556, 16
      %v1633 = vrot.slane %v1631, 3
      %v1634 = vor.u32 %v1630, %v1633
      %v1635 = vsel %vm907, %v1625, %v1634
      %v1637 = vsel %vm453, %v1618, 0
      %v1640 = vsel %vm453, %v1622, 0
      %v1643 = vsel %vm453, %v1626, 0
      %v1646 = vsel %vm453, %v1635, 0
      %v1649 = vsel %vm453, %v1634, 0
      %v1652 = vsel %vm469, %v1611, 0
      %1654 = vmatpush.bf16.msra.mxu0 0
      %1655 = vmatpush.bf16.msra.mxu0 0
      %1656 = vmatpush.bf16.msra.mxu0 0
      %1657 = vmatpush.bf16.msra.mxu0 0
      %1658 = vmatpush.bf16.msra.mxu0 0
      %1659 = vmatpush.bf16.msra.mxu0 0
      %1660 = vmatpush.bf16.msra.mxu0 0
      %1661 = vmatpush.bf16.msra.mxu0 %v1652
      %1662 = vmatmul.bf16.gmra.mxu0 %v1637
      %v1663 = vpop.f32.mrf.mxu0
      %v1664 = vadd.f32 0.0, %v1663
      %v1665 = vpop.f32.mrf.mxu0
      %v1666 = vadd.f32 0.0, %v1665
      %1667 = vmatmul.bf16.gmra.mxu0 %v1640
      %v1668 = vpop.f32.mrf.mxu0
      %v1669 = vadd.f32 0.0, %v1668
      %v1670 = vpop.f32.mrf.mxu0
      %v1671 = vadd.f32 0.0, %v1670
      %1672 = vmatmul.bf16.gmra.mxu0 %v1643
      %v1673 = vpop.f32.mrf.mxu0
      %v1674 = vadd.f32 0.0, %v1673
      %v1675 = vpop.f32.mrf.mxu0
      %v1676 = vadd.f32 0.0, %v1675
      %1677 = vmatmul.bf16.gmra.mxu0 %v1646
      %v1678 = vpop.f32.mrf.mxu0
      %v1679 = vadd.f32 0.0, %v1678
      %v1680 = vpop.f32.mrf.mxu0
      %v1681 = vadd.f32 0.0, %v1680
      %1682 = vmatmul.bf16.gmra.mxu0 %v1649
      %v1683 = vpop.f32.mrf.mxu0
      %v1684 = vadd.f32 0.0, %v1683
      %v1685 = vpop.f32.mrf.mxu0
      %1686 = vdwg.mxu0
      %v1687 = vadd.f32 %v1601, %v1664
      %v1688 = vadd.f32 %v1602, %v1666
      %v1689 = vadd.f32 %v1603, %v1669
      %v1690 = vadd.f32 %v1604, %v1671
      %v1691 = vadd.f32 %v1605, %v1674
      %v1692 = vadd.f32 %v1606, %v1676
      %v1693 = vadd.f32 %v1607, %v1679
      %v1694 = vadd.f32 %v1608, %v1681
      %v1695 = vadd.f32 %v1609, %v1684
      %s1696 = scalar_lea.vmem %s3, 16
      %v1697 = vld [vmem:[%s1696] sm:$0x3]
      %v1698 = vrot.slane %v1099, 3
      %v1699 = vrot.slane %v1100, 3
      %v1700 = vsel %vm994, %v1698, %v1699
      %v1701 = vrot.slane %v1166, 3
      %v1702 = vsel %vm994, %v1699, %v1701
      %v1703 = vrot.slane %v1339, 3
      %v1704 = vsel %vm994, %v1701, %v1703
      %v1705 = vrot.slane %v1556, 3
      %v1706 = vsel %vm994, %v1703, %v1705
      %v1708 = vsel %vm453, %v1700, 0
      %v1711 = vsel %vm453, %v1702, 0
      %v1714 = vsel %vm453, %v1704, 0
      %v1717 = vsel %vm453, %v1706, 0
      %v1720 = vsel %vm453, %v1705, 0
      %v1723 = vsel %vm469, %v1697, 0
      %1725 = vmatpush.bf16.msra.mxu0 0
      %1726 = vmatpush.bf16.msra.mxu0 0
      %1727 = vmatpush.bf16.msra.mxu0 0
      %1728 = vmatpush.bf16.msra.mxu0 0
      %1729 = vmatpush.bf16.msra.mxu0 0
      %1730 = vmatpush.bf16.msra.mxu0 0
      %1731 = vmatpush.bf16.msra.mxu0 0
      %1732 = vmatpush.bf16.msra.mxu0 %v1723
      %1733 = vmatmul.bf16.gmra.mxu0 %v1708
      %v1734 = vpop.f32.mrf.mxu0
      %v1735 = vadd.f32 0.0, %v1734
      %v1736 = vpop.f32.mrf.mxu0
      %v1737 = vadd.f32 0.0, %v1736
      %1738 = vmatmul.bf16.gmra.mxu0 %v1711
      %v1739 = vpop.f32.mrf.mxu0
      %v1740 = vadd.f32 0.0, %v1739
      %v1741 = vpop.f32.mrf.mxu0
      %v1742 = vadd.f32 0.0, %v1741
      %1743 = vmatmul.bf16.gmra.mxu0 %v1714
      %v1744 = vpop.f32.mrf.mxu0
      %v1745 = vadd.f32 0.0, %v1744
      %v1746 = vpop.f32.mrf.mxu0
      %v1747 = vadd.f32 0.0, %v1746
      %1748 = vmatmul.bf16.gmra.mxu0 %v1717
      %v1749 = vpop.f32.mrf.mxu0
      %v1750 = vadd.f32 0.0, %v1749
      %v1751 = vpop.f32.mrf.mxu0
      %v1752 = vadd.f32 0.0, %v1751
      %1753 = vmatmul.bf16.gmra.mxu0 %v1720
      %v1754 = vpop.f32.mrf.mxu0
      %v1755 = vadd.f32 0.0, %v1754
      %v1756 = vpop.f32.mrf.mxu0
      %1757 = vdwg.mxu0
      %v1758 = vadd.f32 %v1687, %v1735
      %v1759 = vadd.f32 %v1688, %v1737
      %v1760 = vadd.f32 %v1689, %v1740
      %v1761 = vadd.f32 %v1690, %v1742
      %v1762 = vadd.f32 %v1691, %v1745
      %v1763 = vadd.f32 %v1692, %v1747
      %v1764 = vadd.f32 %v1693, %v1750
      %v1765 = vadd.f32 %v1694, %v1752
      %v1766 = vadd.f32 %v1695, %v1755
      %v1767 = vld [vmem:[%s4] sm:$0x1]
      %v1769 = vperm.slane %v1767, 0
      %v1771 = vadd.f32 %v1758, %v1769
      %v1772 = vadd.f32 %v1759, %v1769
      %v1773 = vadd.f32 %v1760, %v1769
      %v1774 = vadd.f32 %v1761, %v1769
      %v1775 = vadd.f32 %v1762, %v1769
      %v1776 = vadd.f32 %v1763, %v1769
      %v1777 = vadd.f32 %v1764, %v1769
      %v1778 = vadd.f32 %v1765, %v1769
      %v1779 = vadd.f32 %v1766, %v1769
      %v1780 = vpack.c.bf16 %v1771, %v1771
      %v1781 = vpack.c.bf16 %v1772, %v1772
      %v1782 = vpack.c.bf16 %v1773, %v1773
      %v1783 = vpack.c.bf16 %v1774, %v1774
      %v1784 = vpack.c.bf16 %v1775, %v1775
      %v1785 = vpack.c.bf16 %v1776, %v1776
      %v1786 = vpack.c.bf16 %v1777, %v1777
      %v1787 = vpack.c.bf16 %v1778, %v1778
      %v1788 = vpack.c.bf16 %v1779, %v1779
      %vm1789 = vcmask 27648
      %1790 = vst.msk [vmem:[%s361] sm:$0xf] %vm1789, %v1780
      %1791 = vst.msk [vmem:[%s361 + $0x4] sm:$0xf] %vm1789, %v1781
      %1792 = vst.msk [vmem:[%s361 + $0x8] sm:$0xf] %vm1789, %v1782
      %1793 = vst.msk [vmem:[%s361 + $0xc] sm:$0xf] %vm1789, %v1783
      %1794 = vst.msk [vmem:[%s361 + $0x10] sm:$0xf] %vm1789, %v1784
      %1795 = vst.msk [vmem:[%s361 + $0x14] sm:$0xf] %vm1789, %v1785
      %1796 = vst.msk [vmem:[%s361 + $0x18] sm:$0xf] %vm1789, %v1786
      %1797 = vst.msk [vmem:[%s361 + $0x1c] sm:$0xf] %vm1789, %v1787
      %1798 = vst.msk [vmem:[%s361 + $0x20] sm:$0xf] %vm1789, %v1788
      %v1799 = vld [vmem:[%s5] sm:$0xff]
      %v1800 = vld [vmem:[%s5 + $0x8] sm:$0xff]
      %v1801 = vld [vmem:[%s5 + $0x10] sm:$0xff]
      %v1802 = vld [vmem:[%s5 + $0x18] sm:$0xff]
      %v1803 = vld [vmem:[%s5 + $0x20] sm:$0xff]
      %v1804 = vld [vmem:[%s5 + $0x28] sm:$0xff]
      %v1805 = vld [vmem:[%s5 + $0x30] sm:$0xff]
      %v1806 = vld [vmem:[%s5 + $0x38] sm:$0xff]
      %v1807 = vld [vmem:[%s5 + $0x40] sm:$0xff]
      %1809 = vset.pattern.permute.xlu0 0
      %1810 = vperm.xlu0 %1809, %v1799
      %v1811 = vpop.permute.xlu0 %1810
      %1814 = vset.pattern.permute.xlu0 0
      %1815 = vperm.xlu0 %1814, %v1800
      %v1816 = vpop.permute.xlu0 %1815
      %1819 = vset.pattern.permute.xlu0 0
      %1820 = vperm.xlu0 %1819, %v1801
      %v1821 = vpop.permute.xlu0 %1820
      %1824 = vset.pattern.permute.xlu0 0
      %1825 = vperm.xlu0 %1824, %v1802
      %v1826 = vpop.permute.xlu0 %1825
      %1829 = vset.pattern.permute.xlu0 0
      %1830 = vperm.xlu0 %1829, %v1803
      %v1831 = vpop.permute.xlu0 %1830
      %1834 = vset.pattern.permute.xlu0 0
      %1835 = vperm.xlu0 %1834, %v1804
      %v1836 = vpop.permute.xlu0 %1835
      %1839 = vset.pattern.permute.xlu0 0
      %1840 = vperm.xlu0 %1839, %v1805
      %v1841 = vpop.permute.xlu0 %1840
      %1844 = vset.pattern.permute.xlu0 0
      %1845 = vperm.xlu0 %1844, %v1806
      %v1846 = vpop.permute.xlu0 %1845
      %1849 = vset.pattern.permute.xlu0 0
      %1850 = vperm.xlu0 %1849, %v1807
      %v1851 = vpop.permute.xlu0 %1850
      %v1853 = vmul.f32 %v1771, %v1811
      %v1854 = vmul.f32 %v1772, %v1816
      %v1855 = vmul.f32 %v1773, %v1821
      %v1856 = vmul.f32 %v1774, %v1826
      %v1857 = vmul.f32 %v1775, %v1831
      %v1858 = vmul.f32 %v1776, %v1836
      %v1859 = vmul.f32 %v1777, %v1841
      %v1860 = vmul.f32 %v1778, %v1846
      %v1861 = vmul.f32 %v1779, %v1851
      %v1862 = vsel %vm453, %v1853, 0.0
      %v1863 = vsel %vm453, %v1854, 0.0
      %v1864 = vadd.f32 %v1862, %v1863
      %v1865 = vsel %vm453, %v1855, 0.0
      %v1866 = vadd.f32 %v1864, %v1865
      %v1867 = vsel %vm453, %v1856, 0.0
      %v1868 = vadd.f32 %v1866, %v1867
      %v1869 = vsel %vm453, %v1857, 0.0
      %v1870 = vadd.f32 %v1868, %v1869
      %v1871 = vsel %vm453, %v1858, 0.0
      %v1872 = vadd.f32 %v1870, %v1871
      %v1873 = vsel %vm453, %v1859, 0.0
      %v1874 = vadd.f32 %v1872, %v1873
      %v1875 = vsel %vm453, %v1860, 0.0
      %v1876 = vadd.f32 %v1874, %v1875
      %v1877 = vsel %vm453, %v1861, 0.0
      %v1878 = vadd.f32 %v1876, %v1877
      %v1879 = vrot.slane %v1878, 4
      %v1880 = vadd.f32 %v1878, %v1879
      %v1881 = vrot.slane %v1880, 2
      %v1882 = vadd.f32 %v1880, %v1881
      %v1883 = vrot.slane %v1882, 1
      %v1884 = vadd.f32 %v1882, %v1883
      %v1885 = vmul.f32 %v1853, %v1771
      %v1886 = vmul.f32 %v1854, %v1772
      %v1887 = vmul.f32 %v1855, %v1773
      %v1888 = vmul.f32 %v1856, %v1774
      %v1889 = vmul.f32 %v1857, %v1775
      %v1890 = vmul.f32 %v1858, %v1776
      %v1891 = vmul.f32 %v1859, %v1777
      %v1892 = vmul.f32 %v1860, %v1778
      %v1893 = vmul.f32 %v1861, %v1779
      %v1894 = vsel %vm453, %v1885, 0.0
      %v1895 = vsel %vm453, %v1886, 0.0
      %v1896 = vadd.f32 %v1894, %v1895
      %v1897 = vsel %vm453, %v1887, 0.0
      %v1898 = vadd.f32 %v1896, %v1897
      %v1899 = vsel %vm453, %v1888, 0.0
      %v1900 = vadd.f32 %v1898, %v1899
      %v1901 = vsel %vm453, %v1889, 0.0
      %v1902 = vadd.f32 %v1900, %v1901
      %v1903 = vsel %vm453, %v1890, 0.0
      %v1904 = vadd.f32 %v1902, %v1903
      %v1905 = vsel %vm453, %v1891, 0.0
      %v1906 = vadd.f32 %v1904, %v1905
      %v1907 = vsel %vm453, %v1892, 0.0
      %v1908 = vadd.f32 %v1906, %v1907
      %v1909 = vsel %vm453, %v1893, 0.0
      %v1910 = vadd.f32 %v1908, %v1909
      %v1911 = vrot.slane %v1910, 4
      %v1912 = vadd.f32 %v1910, %v1911
      %v1913 = vrot.slane %v1912, 2
      %v1914 = vadd.f32 %v1912, %v1913
      %v1915 = vrot.slane %v1914, 1
      %v1916 = vadd.f32 %v1914, %v1915
      %vm1917 = vcmask 1040384
      %v1918 = vsel %vm1917, %v1884, %v1916
      %vm1919 = vcmask 25600
      %1920 = vst.msk [vmem:[%s369] sm:$0x3] %vm1919, %v1918
      %p1921 = scmp.lt.s32.totalorder %s23, 1
      %s1922 = scalar_select %p1921, %s23, 1
      %p1923 = scmp.lt.s32.totalorder %s24, 3
      %s1924 = scalar_select %p1923, %s24, 3
      %s1925 = smul.addr %s1924, 9
      %s1926 = smul.addr %s1922, 36
      %s1927 = sadd.s32 %s1925, %s1926
      %s1928 = smul.addr %s1927, 4
      %s1929 = scalar_lea.vmem %s6, %s1928
      %p1930 = scmp.lt.s32.totalorder %s23, 1
      %s1931 = scalar_select %p1930, %s23, 1
      %p1932 = scmp.lt.s32.totalorder %s24, 3
      %s1933 = scalar_select %p1932, %s24, 3
      %s1934 = smul.addr %s1931, 4
      %s1935 = sadd.s32 %s1933, %s1934
      %s1936 = smul.addr %s1935, 2
      %s1937 = scalar_lea.vmem %s7, %s1936
      // Predicated region
      $region45: #{up_block_forward.4} parent=43 // pred_check
        %p1938 = pneg %p191
      $region46: #{up_block_forward.4} parent=43 // pred_check_branch
        %1940 = sbr.rel (%p1938) target = $region48
      $region47: #{up_block_forward.4} parent=43 // pred_region
        _
      $region48: #{up_block_forward.4} parent=43 // pred_fallthru
        _
      // Predicated region
      $region49: #{up_block_forward.4} parent=43 // pred_check
        %p1941 = pneg %p219
      $region50: #{up_block_forward.4} parent=43 // pred_check_branch
        %1943 = sbr.rel (%p1941) target = $region52
      $region51: #{up_block_forward.4} parent=43 // pred_region
        _
      $region52: #{up_block_forward.4} parent=43 // pred_fallthru
        _
    $region44: #{up_block_forward.4} parent=5 // pred_fallthru
      _
    %p1944 = scmp.le.s32.totalorder 2, %s14
    // Predicated region
    $region53: #{up_block_forward.4} parent=5 // pred_check
      %p1945 = pneg %p1944
    $region54: #{up_block_forward.4} parent=5 // pred_check_branch
      %1947 = sbr.rel (%p1945) target = $region56
    $region55: #{up_block_forward.4} parent=5 // pred_region
      %s1948 = ssub.s32 %s14, 2
      // Predicated region
      $region57: #{up_block_forward.4} parent=55 // pred_check
        %p1949 = pneg %p197
      $region58: #{up_block_forward.4} parent=55 // pred_check_branch
        %1951 = sbr.rel (%p1949) target = $region60
      $region59: #{up_block_forward.4} parent=55 // pred_region
        %p1952 = scmp.lt.s32.totalorder %s25, 1
        %s1953 = scalar_select %p1952, %s25, 1
        %p1954 = scmp.lt.s32.totalorder %s26, 3
        %s1955 = scalar_select %p1954, %s26, 3
        %s1956 = smul.addr %s1955, 9
        %s1957 = smul.addr %s1953, 36
        %s1958 = sadd.s32 %s1956, %s1957
        %s1959 = smul.addr %s1958, 4
        %s1960 = scalar_lea.vmem %s6, %s1959
      $region60: #{up_block_forward.4} parent=55 // pred_fallthru
        _
      // Predicated region
      $region61: #{up_block_forward.4} parent=55 // pred_check
        %p1961 = pneg %p225
      $region62: #{up_block_forward.4} parent=55 // pred_check_branch
        %1963 = sbr.rel (%p1961) target = $region64
      $region63: #{up_block_forward.4} parent=55 // pred_region
        %p1964 = scmp.lt.s32.totalorder %s25, 1
        %s1965 = scalar_select %p1964, %s25, 1
        %p1966 = scmp.lt.s32.totalorder %s26, 3
        %s1967 = scalar_select %p1966, %s26, 3
        %s1968 = smul.addr %s1965, 4
        %s1969 = sadd.s32 %s1967, %s1968
        %s1970 = smul.addr %s1969, 2
        %s1971 = scalar_lea.vmem %s7, %s1970
      $region64: #{up_block_forward.4} parent=55 // pred_fallthru
        _
    $region56: #{up_block_forward.4} parent=5 // pred_fallthru
      _
  $region6: #{up_block_forward.4} parent=0 // loop_footer
    %s18 = sadd.s32 1, %s14
  $region7: #{up_block_forward.4} parent=0 // loop_footer_branch
    %13 = sbr.rel target = $region3
  $region8: #{up_block_forward.4} parent=0 // loop_exit
    _

</llo_original>
